<compile_context>
chip_gen: v7x
topology: tpu7x:2x2x1
jax: 0.10.0
libtpu: 0.0.40
codegen_flags: <defaults>
</compile_context>

<pallas_src>
import functools
import math

import jax
import jax.numpy as jnp
from jax.experimental import pallas as pl
from jax.experimental.pallas import tpu as pltpu


def _gelu_tanh(x):
    # tanh-approximate GELU (|err| vs exact erf GELU < ~1e-3, well inside test tol).
    c = math.sqrt(2.0 / math.pi)
    return 0.5 * x * (1.0 + jnp.tanh(c * (x + 0.044715 * (x * x * x))))


def _layernorm(x, g, b, eps=1e-5):
    # x: (M, C); g, b: (1, C).  Normalize over channels, torch eps=1e-5, f32 math.
    mu = jnp.mean(x, axis=-1, keepdims=True)
    xc = x - mu
    var = jnp.mean(xc * xc, axis=-1, keepdims=True)
    return xc * jax.lax.rsqrt(var + eps) * g + b


def transformer_sa_kernel(x_ref,
                          ln1_g_ref, ln1_b_ref,
                          wqkv_ref, bqkv_ref,
                          wo_ref, bo_ref,
                          ln2_g_ref, ln2_b_ref,
                          w1_ref, b1_ref, w2_ref, b2_ref,
                          out_ref,
                          qkv_scr, o_scr,
                          *, num_heads, batch_tile, seq_len):
    # ---- hoist every parameter read to a single load (JAX does not CSE broadcasts) ----
    ln1_g, ln1_b = ln1_g_ref[...], ln1_b_ref[...]          # (1, C) f32
    ln2_g, ln2_b = ln2_g_ref[...], ln2_b_ref[...]
    wqkv, bqkv = wqkv_ref[...], bqkv_ref[...]               # (C, 3C) bf16 / (1, 3C) f32
    wo, bo = wo_ref[...], bo_ref[...]                       # (C, C) bf16 / (1, C) f32
    w1, b1 = w1_ref[...], b1_ref[...]                       # (C, hid) bf16 / (1, hid) f32
    w2, b2 = w2_ref[...], b2_ref[...]                       # (hid, C) bf16 / (1, C) f32

    H, L, BT = num_heads, seq_len, batch_tile
    C = wo.shape[-1]
    D = C // H
    bf16 = jnp.bfloat16
    NT = (((1,), (1,)), ((), ()))    # contract last dims: q @ k^T without a transpose op

    x = x_ref[...]                                           # (M, C) f32, M = BT*L

    # ---- LayerNorm 1 on the whole batch-folded slab ----
    x_ln = _layernorm(x, ln1_g, ln1_b)

    # ---- fused QKV projection: ONE (M, C) @ (C, 3C) matmul.
    #      1/sqrt(D) is already folded into the Q columns of wqkv/bqkv. ----
    qkv_scr[...] = jnp.dot(x_ln.astype(bf16), wqkv,
                           preferred_element_type=jnp.float32) + bqkv

    # ---- attention per (batch, head): D=8 keeps these matmuls inherently small;
    #      interleave score -> softmax -> PV per head (low vreg pressure). ----
    for b in range(BT):
        r0 = b * L
        for h in range(H):
            q = qkv_scr[r0:r0 + L, h * D:(h + 1) * D].astype(bf16)              # (L, D)
            k = qkv_scr[r0:r0 + L, C + h * D:C + (h + 1) * D].astype(bf16)      # (L, D)
            v = qkv_scr[r0:r0 + L, 2 * C + h * D:2 * C + (h + 1) * D].astype(bf16)

            s = jax.lax.dot_general(q, k, NT, preferred_element_type=jnp.float32)
            s = s - jnp.max(s, axis=-1, keepdims=True)
            e = jnp.exp(s)
            inv = pl.reciprocal(jnp.sum(e, axis=-1, keepdims=True), approx=True)  # EUP
            p = (e * inv).astype(bf16)

            # Lane-concatenate head outputs by writing each head's (L, D) slab into
            # its lane window of the (M, C) scratch (masked vst, idle-slot cheap).
            o_scr[r0:r0 + L, h * D:(h + 1) * D] = jnp.dot(
                p, v, preferred_element_type=jnp.float32)

    # ---- single fused output projection against the original (C, C) Wo ----
    attn = jnp.dot(o_scr[...].astype(bf16), wo,
                   preferred_element_type=jnp.float32) + bo

    # ---- residual 1 ----
    x = x + attn

    # ---- LayerNorm 2 + MLP (Linear -> GELU -> Linear -> GELU; dropout p=0 omitted) ----
    x_ln2 = _layernorm(x, ln2_g, ln2_b)
    h1 = _gelu_tanh(jnp.dot(x_ln2.astype(bf16), w1,
                            preferred_element_type=jnp.float32) + b1)
    h2 = _gelu_tanh(jnp.dot(h1.astype(bf16), w2,
                            preferred_element_type=jnp.float32) + b2)

    # ---- residual 2 ----
    out_ref[...] = x + h2


def prepare_params(params, *, num_heads):
    """One-time repack of the torch-style parameter dict into kernel layout:
    fused (C, 3C) QKV weight with 1/sqrt(D) folded into the Q columns, bf16 matmul
    weights, f32 biases / LayerNorm params.  Call once, reuse across forwards."""
    f32, bf16 = jnp.float32, jnp.bfloat16
    C = params["wq"].shape[0]
    D = C // num_heads
    scale = 1.0 / math.sqrt(D)
    wqkv = jnp.concatenate(
        [params["wq"] * scale, params["wk"], params["wv"]], axis=1).astype(bf16)
    bqkv = jnp.concatenate(
        [params["bq"] * scale, params["bk"], params["bv"]], axis=1).astype(f32)
    return dict(
        ln1_g=params["ln1_g"].astype(f32), ln1_b=params["ln1_b"].astype(f32),
        wqkv=wqkv, bqkv=bqkv,
        wo=params["wo"].astype(bf16), bo=params["bo"].astype(f32),
        ln2_g=params["ln2_g"].astype(f32), ln2_b=params["ln2_b"].astype(f32),
        w1=params["w1"].astype(bf16), b1=params["b1"].astype(f32),
        w2=params["w2"].astype(bf16), b2=params["b2"].astype(f32),
    )


def _pick_batch_tile(B, L):
    """Fold enough batch into M so matmuls see >=128 rows (fills a v5e MXU pass,
    half of v6e/v7x), while keeping equal-sized batch blocks."""
    bt = min(B, max(1, -(-128 // L)))     # ceil(128 / L), capped at B
    while B % bt:
        bt -= 1
    return max(bt, 1)


@functools.partial(jax.jit, static_argnames=("num_heads",))
def transformer_encoder_sa(x_nchw, prep, *, num_heads):
    B, C, Hs, Ws = x_nchw.shape
    L = Hs * Ws

    # NCHW -> (B*L, C)   (== .view(-1, C, L).permute(0, 2, 1) in the torch module);
    # stays inside this jitted call, so layout prep is 2 tiny XLA ops, not ~17.
    x = jnp.transpose(x_nchw.reshape(B, C, L), (0, 2, 1)).astype(jnp.float32)
    x = x.reshape(B * L, C)

    b_tile = _pick_batch_tile(B, L)
    M = b_tile * L
    n_blocks = B // b_tile

    weights = (prep["ln1_g"], prep["ln1_b"], prep["wqkv"], prep["bqkv"],
               prep["wo"], prep["bo"], prep["ln2_g"], prep["ln2_b"],
               prep["w1"], prep["b1"], prep["w2"], prep["b2"])

    def full_spec(arr):
        nd = arr.ndim
        return pl.BlockSpec(arr.shape, lambda i, _nd=nd: (0,) * _nd)   # constant block

    out = pl.pallas_call(
        functools.partial(transformer_sa_kernel, num_heads=num_heads,
                          batch_tile=b_tile, seq_len=L),
        out_shape=jax.ShapeDtypeStruct((B * L, C), jnp.float32),
        grid=(n_blocks,),
        in_specs=[pl.BlockSpec((M, C), lambda i: (i, 0))] + [full_spec(w) for w in weights],
        out_specs=pl.BlockSpec((M, C), lambda i: (i, 0)),
        scratch_shapes=[pltpu.VMEM((M, 3 * C), jnp.float32),   # fused QKV activations
                        pltpu.VMEM((M, C), jnp.float32)],      # lane-concatenated head outs
        compiler_params=pltpu.CompilerParams(dimension_semantics=("parallel",)),
    )(x, *weights)

    # (B*L, C) -> NCHW
    return jnp.transpose(out.reshape(B, L, C), (0, 2, 1)).reshape(B, C, Hs, Ws)


def reference(x_nchw, params, *, num_heads):
    """Pure-JAX f32 reference matching the PyTorch forward (dropout p=0)."""
    B, C, H, W = x_nchw.shape
    L = H * W
    D = C // num_heads
    x = jnp.transpose(x_nchw.reshape(B, C, L), (0, 2, 1)).astype(jnp.float32)

    def ln(y, g, b):
        mu = y.mean(-1, keepdims=True)
        var = ((y - mu) ** 2).mean(-1, keepdims=True)
        return (y - mu) / jnp.sqrt(var + 1e-5) * g + b

    x_ln = ln(x, params["ln1_g"], params["ln1_b"])
    q = x_ln @ params["wq"] + params["bq"]
    k = x_ln @ params["wk"] + params["bk"]
    v = x_ln @ params["wv"] + params["bv"]
    qh = q.reshape(B, L, num_heads, D).transpose(0, 2, 1, 3)
    kh = k.reshape(B, L, num_heads, D).transpose(0, 2, 1, 3)
    vh = v.reshape(B, L, num_heads, D).transpose(0, 2, 1, 3)
    s = jnp.einsum("bhld,bhmd->bhlm", qh, kh) / math.sqrt(D)
    p = jax.nn.softmax(s, axis=-1)
    o = jnp.einsum("bhlm,bhmd->bhld", p, vh).transpose(0, 2, 1, 3).reshape(B, L, C)
    o = o @ params["wo"] + params["bo"]
    x = o + x
    x2 = ln(x, params["ln2_g"], params["ln2_b"])
    h1 = jax.nn.gelu(x2 @ params["w1"] + params["b1"], approximate=False)
    h2 = jax.nn.gelu(h1 @ params["w2"] + params["b2"], approximate=False)
    x = x + h2
    return jnp.transpose(x, (0, 2, 1)).reshape(B, C, H, W)


def make_params(key, C, hidden):
    ks = jax.random.split(key, 12)
    r = lambda k, shp, s=0.05: (jax.random.normal(k, shp, jnp.float32) * s)
    return {
        "ln1_g": jnp.ones((1, C), jnp.float32) + r(ks[0], (1, C), 0.02),
        "ln1_b": r(ks[1], (1, C), 0.02),
        "wq": r(ks[2], (C, C)), "wk": r(ks[3], (C, C)), "wv": r(ks[4], (C, C)),
        "bq": r(ks[5], (1, C), 0.02), "bk": r(ks[6], (1, C), 0.02), "bv": r(ks[7], (1, C), 0.02),
        "wo": r(ks[8], (C, C)), "bo": r(ks[9], (1, C), 0.02),
        "ln2_g": jnp.ones((1, C), jnp.float32) + r(ks[10], (1, C), 0.02),
        "ln2_b": r(ks[11], (1, C), 0.02),
        "w1": r(jax.random.fold_in(key, 100), (C, hidden)),
        "b1": r(jax.random.fold_in(key, 101), (1, hidden), 0.02),
        "w2": r(jax.random.fold_in(key, 102), (hidden, C)),
        "b2": r(jax.random.fold_in(key, 103), (1, C), 0.02),
    }


if __name__ == "__main__":
    # small but consistent shapes: num_channels=32, size=8 -> L=64 tokens, 4 heads, hidden=64
    B, C, size, num_heads, hidden = 2, 32, 8, 4, 64

    key = jax.random.PRNGKey(0)
    kx, kp = jax.random.split(key)
    x = jax.random.normal(kx, (B, C, size, size), jnp.float32)
    params = make_params(kp, C, hidden)

    prep = prepare_params(params, num_heads=num_heads)        # one-time weight repack

    out = transformer_encoder_sa(x, prep, num_heads=num_heads)
    out = jax.block_until_ready(out)
    assert out.shape == (B, C, size, size), out.shape

    ref = reference(x, params, num_heads=num_heads)
    max_err = float(jnp.max(jnp.abs(out - ref)))
    # bf16 MXU operands + approx (EUP) reciprocal + tanh-GELU lose ~3 decimal digits
    # vs the pure-f32 exact-erf reference; 2e-2 abs/rel bounds that while still
    # catching structural bugs (wrong head/lane mapping would be O(0.1)).
    if not bool(jnp.allclose(out, ref, atol=2e-2, rtol=2e-2)):
        raise AssertionError(f"kernel/reference mismatch, max_err={max_err}")

    print("KERNEL_OK")
</pallas_src>

<mosaic_0001>
module attributes {stable_mosaic.version = 11 : i64} {
  func.func @transformer_sa_kernel(%arg0: i32, %arg1: memref<128x32xf32, #tpu.memory_space<vmem>>, %arg2: memref<1x32xf32, #tpu.memory_space<vmem>>, %arg3: memref<1x32xf32, #tpu.memory_space<vmem>>, %arg4: memref<32x96xbf16, #tpu.memory_space<vmem>>, %arg5: memref<1x96xf32, #tpu.memory_space<vmem>>, %arg6: memref<32x32xbf16, #tpu.memory_space<vmem>>, %arg7: memref<1x32xf32, #tpu.memory_space<vmem>>, %arg8: memref<1x32xf32, #tpu.memory_space<vmem>>, %arg9: memref<1x32xf32, #tpu.memory_space<vmem>>, %arg10: memref<32x64xbf16, #tpu.memory_space<vmem>>, %arg11: memref<1x64xf32, #tpu.memory_space<vmem>>, %arg12: memref<64x32xbf16, #tpu.memory_space<vmem>>, %arg13: memref<1x32xf32, #tpu.memory_space<vmem>>, %arg14: memref<128x32xf32, #tpu.memory_space<vmem>>, %arg15: memref<128x96xf32, #tpu.memory_space<vmem>>, %arg16: memref<128x32xf32, #tpu.memory_space<vmem>>) attributes {dimension_semantics = [#tpu.dimension_semantics<parallel>], iteration_bounds = array<i64: 1>, scalar_prefetch = 0 : i64, scratch_operands = 2 : i64, tpu.core_type = #tpu.core_type<tc>, window_params = [{transform_indices = @transform_0, window_bounds = array<i64: 128, 32>}, {pipeline_mode = #tpu.pipeline_mode<synchronous>, transform_indices = @transform_1, window_bounds = array<i64: 1, 32>}, {pipeline_mode = #tpu.pipeline_mode<synchronous>, transform_indices = @transform_2, window_bounds = array<i64: 1, 32>}, {pipeline_mode = #tpu.pipeline_mode<synchronous>, transform_indices = @transform_3, window_bounds = array<i64: 32, 96>}, {pipeline_mode = #tpu.pipeline_mode<synchronous>, transform_indices = @transform_4, window_bounds = array<i64: 1, 96>}, {pipeline_mode = #tpu.pipeline_mode<synchronous>, transform_indices = @transform_5, window_bounds = array<i64: 32, 32>}, {pipeline_mode = #tpu.pipeline_mode<synchronous>, transform_indices = @transform_6, window_bounds = array<i64: 1, 32>}, {pipeline_mode = #tpu.pipeline_mode<synchronous>, transform_indices = @transform_7, window_bounds = array<i64: 1, 32>}, {pipeline_mode = #tpu.pipeline_mode<synchronous>, transform_indices = @transform_8, window_bounds = array<i64: 1, 32>}, {pipeline_mode = #tpu.pipeline_mode<synchronous>, transform_indices = @transform_9, window_bounds = array<i64: 32, 64>}, {pipeline_mode = #tpu.pipeline_mode<synchronous>, transform_indices = @transform_10, window_bounds = array<i64: 1, 64>}, {pipeline_mode = #tpu.pipeline_mode<synchronous>, transform_indices = @transform_11, window_bounds = array<i64: 64, 32>}, {pipeline_mode = #tpu.pipeline_mode<synchronous>, transform_indices = @transform_12, window_bounds = array<i64: 1, 32>}, {transform_indices = @transform_13, window_bounds = array<i64: 128, 32>}]} {
    %c0 = arith.constant 0 : index
    %c0_0 = arith.constant 0 : index
    %0 = vector.load %arg2[%c0, %c0_0] : memref<1x32xf32, #tpu.memory_space<vmem>>, vector<1x32xf32>
    %c0_1 = arith.constant 0 : index
    %c0_2 = arith.constant 0 : index
    %1 = vector.load %arg3[%c0_1, %c0_2] : memref<1x32xf32, #tpu.memory_space<vmem>>, vector<1x32xf32>
    %c0_3 = arith.constant 0 : index
    %c0_4 = arith.constant 0 : index
    %2 = vector.load %arg8[%c0_3, %c0_4] : memref<1x32xf32, #tpu.memory_space<vmem>>, vector<1x32xf32>
    %c0_5 = arith.constant 0 : index
    %c0_6 = arith.constant 0 : index
    %3 = vector.load %arg9[%c0_5, %c0_6] : memref<1x32xf32, #tpu.memory_space<vmem>>, vector<1x32xf32>
    %c0_7 = arith.constant 0 : index
    %c0_8 = arith.constant 0 : index
    %4 = vector.load %arg4[%c0_7, %c0_8] : memref<32x96xbf16, #tpu.memory_space<vmem>>, vector<32x96xbf16>
    %c0_9 = arith.constant 0 : index
    %c0_10 = arith.constant 0 : index
    %5 = vector.load %arg5[%c0_9, %c0_10] : memref<1x96xf32, #tpu.memory_space<vmem>>, vector<1x96xf32>
    %c0_11 = arith.constant 0 : index
    %c0_12 = arith.constant 0 : index
    %6 = vector.load %arg6[%c0_11, %c0_12] : memref<32x32xbf16, #tpu.memory_space<vmem>>, vector<32x32xbf16>
    %c0_13 = arith.constant 0 : index
    %c0_14 = arith.constant 0 : index
    %7 = vector.load %arg7[%c0_13, %c0_14] : memref<1x32xf32, #tpu.memory_space<vmem>>, vector<1x32xf32>
    %c0_15 = arith.constant 0 : index
    %c0_16 = arith.constant 0 : index
    %8 = vector.load %arg10[%c0_15, %c0_16] : memref<32x64xbf16, #tpu.memory_space<vmem>>, vector<32x64xbf16>
    %c0_17 = arith.constant 0 : index
    %c0_18 = arith.constant 0 : index
    %9 = vector.load %arg11[%c0_17, %c0_18] : memref<1x64xf32, #tpu.memory_space<vmem>>, vector<1x64xf32>
    %c0_19 = arith.constant 0 : index
    %c0_20 = arith.constant 0 : index
    %10 = vector.load %arg12[%c0_19, %c0_20] : memref<64x32xbf16, #tpu.memory_space<vmem>>, vector<64x32xbf16>
    %c0_21 = arith.constant 0 : index
    %c0_22 = arith.constant 0 : index
    %11 = vector.load %arg13[%c0_21, %c0_22] : memref<1x32xf32, #tpu.memory_space<vmem>>, vector<1x32xf32>
    %c0_23 = arith.constant 0 : index
    %c0_24 = arith.constant 0 : index
    %12 = vector.load %arg1[%c0_23, %c0_24] : memref<128x32xf32, #tpu.memory_space<vmem>>, vector<128x32xf32>
    %cst = arith.constant dense<0.000000e+00> : vector<128xf32>
    %13 = vector.multi_reduction <add>, %12, %cst [1] : vector<128x32xf32> to vector<128xf32>
    %14 = vector.shape_cast %13 : vector<128xf32> to vector<128x1xf32>
    %cst_25 = arith.constant 3.200000e+01 : f32
    %15 = vector.broadcast %cst_25 : f32 to vector<128x1xf32>
    %16 = arith.divf %14, %15 : vector<128x1xf32>
    %17 = vector.broadcast %16 : vector<128x1xf32> to vector<128x32xf32>
    %18 = arith.subf %12, %17 : vector<128x32xf32>
    %19 = arith.mulf %18, %18 : vector<128x32xf32>
    %cst_26 = arith.constant dense<0.000000e+00> : vector<128xf32>
    %20 = vector.multi_reduction <add>, %19, %cst_26 [1] : vector<128x32xf32> to vector<128xf32>
    %21 = vector.shape_cast %20 : vector<128xf32> to vector<128x1xf32>
    %cst_27 = arith.constant 3.200000e+01 : f32
    %22 = vector.broadcast %cst_27 : f32 to vector<128x1xf32>
    %23 = arith.divf %21, %22 : vector<128x1xf32>
    %cst_28 = arith.constant 9.99999974E-6 : f32
    %24 = vector.broadcast %cst_28 : f32 to vector<128x1xf32>
    %25 = arith.addf %23, %24 : vector<128x1xf32>
    %26 = math.rsqrt %25 : vector<128x1xf32>
    %27 = vector.broadcast %26 : vector<128x1xf32> to vector<128x32xf32>
    %28 = arith.mulf %18, %27 : vector<128x32xf32>
    %29 = vector.broadcast %0 : vector<1x32xf32> to vector<128x32xf32>
    %30 = arith.mulf %28, %29 : vector<128x32xf32>
    %31 = vector.broadcast %1 : vector<1x32xf32> to vector<128x32xf32>
    %32 = arith.addf %30, %31 : vector<128x32xf32>
    %33 = arith.truncf %32 : vector<128x32xf32> to vector<128x32xbf16>
    %cst_29 = arith.constant dense<0.000000e+00> : vector<128x96xf32>
    %34 = tpu.matmul %33, %4, %cst_29 {dimension_numbers = #tpu.dot_dimension_numbers<[1], [0], [0], [1], [0, 0, 1, 1], [], []>} : vector<128x32xbf16>, vector<32x96xbf16>, vector<128x96xf32> -> vector<128x96xf32>
    %35 = vector.broadcast %5 : vector<1x96xf32> to vector<128x96xf32>
    %36 = arith.addf %34, %35 : vector<128x96xf32>
    %c0_30 = arith.constant 0 : index
    %c0_31 = arith.constant 0 : index
    %37 = vector.load %arg15[%c0_30, %c0_31] : memref<128x96xf32, #tpu.memory_space<vmem>>, vector<128x96xf32>
    tpu.vector_store %arg15[%c0_30, %c0_31], %36 {strides = array<i32>} : memref<128x96xf32, #tpu.memory_space<vmem>>, vector<128x96xf32>,
    %c0_32 = arith.constant 0 : index
    %c0_33 = arith.constant 0 : index
    %38 = vector.load %arg15[%c0_32, %c0_33] : memref<128x96xf32, #tpu.memory_space<vmem>>, vector<64x8xf32>
    %39 = arith.truncf %38 : vector<64x8xf32> to vector<64x8xbf16>
    %c0_34 = arith.constant 0 : index
    %c32 = arith.constant 32 : index
    %40 = vector.load %arg15[%c0_34, %c32] : memref<128x96xf32, #tpu.memory_space<vmem>>, vector<64x8xf32>
    %41 = arith.truncf %40 : vector<64x8xf32> to vector<64x8xbf16>
    %c0_35 = arith.constant 0 : index
    %c64 = arith.constant 64 : index
    %42 = vector.load %arg15[%c0_35, %c64] : memref<128x96xf32, #tpu.memory_space<vmem>>, vector<64x8xf32>
    %43 = arith.truncf %42 : vector<64x8xf32> to vector<64x8xbf16>
    %cst_36 = arith.constant dense<0.000000e+00> : vector<64x64xf32>
    %44 = tpu.matmul %39, %41, %cst_36 {dimension_numbers = #tpu.dot_dimension_numbers<[1], [1], [0], [0], [0, 0, 1, 0], [], []>} : vector<64x8xbf16>, vector<64x8xbf16>, vector<64x64xf32> -> vector<64x64xf32>
    %cst_37 = arith.constant dense<0xFF800000> : vector<64xf32>
    %45 = vector.multi_reduction <maximumf>, %44, %cst_37 [1] : vector<64x64xf32> to vector<64xf32>
    %46 = vector.shape_cast %45 : vector<64xf32> to vector<64x1xf32>
    %47 = vector.broadcast %46 : vector<64x1xf32> to vector<64x64xf32>
    %48 = arith.subf %44, %47 : vector<64x64xf32>
    %49 = math.exp %48 : vector<64x64xf32>
    %cst_38 = arith.constant dense<0.000000e+00> : vector<64xf32>
    %50 = vector.multi_reduction <add>, %49, %cst_38 [1] : vector<64x64xf32> to vector<64xf32>
    %51 = vector.shape_cast %50 : vector<64xf32> to vector<64x1xf32>
    %52 = tpu.reciprocal %51 {approx = true} : vector<64x1xf32> -> vector<64x1xf32>
    %53 = vector.broadcast %52 : vector<64x1xf32> to vector<64x64xf32>
    %54 = arith.mulf %49, %53 : vector<64x64xf32>
    %55 = arith.truncf %54 : vector<64x64xf32> to vector<64x64xbf16>
    %cst_39 = arith.constant dense<0.000000e+00> : vector<64x8xf32>
    %56 = tpu.matmul %55, %43, %cst_39 {dimension_numbers = #tpu.dot_dimension_numbers<[1], [0], [0], [1], [0, 0, 1, 1], [], []>} : vector<64x64xbf16>, vector<64x8xbf16>, vector<64x8xf32> -> vector<64x8xf32>
    %c0_40 = arith.constant 0 : index
    %c0_41 = arith.constant 0 : index
    %57 = vector.load %arg16[%c0_40, %c0_41] : memref<128x32xf32, #tpu.memory_space<vmem>>, vector<64x8xf32>
    tpu.vector_store %arg16[%c0_40, %c0_41], %56 {strides = array<i32>} : memref<128x32xf32, #tpu.memory_space<vmem>>, vector<64x8xf32>,
    %c0_42 = arith.constant 0 : index
    %c8 = arith.constant 8 : index
    %58 = vector.load %arg15[%c0_42, %c8] : memref<128x96xf32, #tpu.memory_space<vmem>>, vector<64x8xf32>
    %59 = arith.truncf %58 : vector<64x8xf32> to vector<64x8xbf16>
    %c0_43 = arith.constant 0 : index
    %c40 = arith.constant 40 : index
    %60 = vector.load %arg15[%c0_43, %c40] : memref<128x96xf32, #tpu.memory_space<vmem>>, vector<64x8xf32>
    %61 = arith.truncf %60 : vector<64x8xf32> to vector<64x8xbf16>
    %c0_44 = arith.constant 0 : index
    %c72 = arith.constant 72 : index
    %62 = vector.load %arg15[%c0_44, %c72] : memref<128x96xf32, #tpu.memory_space<vmem>>, vector<64x8xf32>
    %63 = arith.truncf %62 : vector<64x8xf32> to vector<64x8xbf16>
    %cst_45 = arith.constant dense<0.000000e+00> : vector<64x64xf32>
    %64 = tpu.matmul %59, %61, %cst_45 {dimension_numbers = #tpu.dot_dimension_numbers<[1], [1], [0], [0], [0, 0, 1, 0], [], []>} : vector<64x8xbf16>, vector<64x8xbf16>, vector<64x64xf32> -> vector<64x64xf32>
    %cst_46 = arith.constant dense<0xFF800000> : vector<64xf32>
    %65 = vector.multi_reduction <maximumf>, %64, %cst_46 [1] : vector<64x64xf32> to vector<64xf32>
    %66 = vector.shape_cast %65 : vector<64xf32> to vector<64x1xf32>
    %67 = vector.broadcast %66 : vector<64x1xf32> to vector<64x64xf32>
    %68 = arith.subf %64, %67 : vector<64x64xf32>
    %69 = math.exp %68 : vector<64x64xf32>
    %cst_47 = arith.constant dense<0.000000e+00> : vector<64xf32>
    %70 = vector.multi_reduction <add>, %69, %cst_47 [1] : vector<64x64xf32> to vector<64xf32>
    %71 = vector.shape_cast %70 : vector<64xf32> to vector<64x1xf32>
    %72 = tpu.reciprocal %71 {approx = true} : vector<64x1xf32> -> vector<64x1xf32>
    %73 = vector.broadcast %72 : vector<64x1xf32> to vector<64x64xf32>
    %74 = arith.mulf %69, %73 : vector<64x64xf32>
    %75 = arith.truncf %74 : vector<64x64xf32> to vector<64x64xbf16>
    %cst_48 = arith.constant dense<0.000000e+00> : vector<64x8xf32>
    %76 = tpu.matmul %75, %63, %cst_48 {dimension_numbers = #tpu.dot_dimension_numbers<[1], [0], [0], [1], [0, 0, 1, 1], [], []>} : vector<64x64xbf16>, vector<64x8xbf16>, vector<64x8xf32> -> vector<64x8xf32>
    %c0_49 = arith.constant 0 : index
    %c8_50 = arith.constant 8 : index
    %77 = vector.load %arg16[%c0_49, %c8_50] : memref<128x32xf32, #tpu.memory_space<vmem>>, vector<64x8xf32>
    tpu.vector_store %arg16[%c0_49, %c8_50], %76 {strides = array<i32>} : memref<128x32xf32, #tpu.memory_space<vmem>>, vector<64x8xf32>,
    %c0_51 = arith.constant 0 : index
    %c16 = arith.constant 16 : index
    %78 = vector.load %arg15[%c0_51, %c16] : memref<128x96xf32, #tpu.memory_space<vmem>>, vector<64x8xf32>
    %79 = arith.truncf %78 : vector<64x8xf32> to vector<64x8xbf16>
    %c0_52 = arith.constant 0 : index
    %c48 = arith.constant 48 : index
    %80 = vector.load %arg15[%c0_52, %c48] : memref<128x96xf32, #tpu.memory_space<vmem>>, vector<64x8xf32>
    %81 = arith.truncf %80 : vector<64x8xf32> to vector<64x8xbf16>
    %c0_53 = arith.constant 0 : index
    %c80 = arith.constant 80 : index
    %82 = vector.load %arg15[%c0_53, %c80] : memref<128x96xf32, #tpu.memory_space<vmem>>, vector<64x8xf32>
    %83 = arith.truncf %82 : vector<64x8xf32> to vector<64x8xbf16>
    %cst_54 = arith.constant dense<0.000000e+00> : vector<64x64xf32>
    %84 = tpu.matmul %79, %81, %cst_54 {dimension_numbers = #tpu.dot_dimension_numbers<[1], [1], [0], [0], [0, 0, 1, 0], [], []>} : vector<64x8xbf16>, vector<64x8xbf16>, vector<64x64xf32> -> vector<64x64xf32>
    %cst_55 = arith.constant dense<0xFF800000> : vector<64xf32>
    %85 = vector.multi_reduction <maximumf>, %84, %cst_55 [1] : vector<64x64xf32> to vector<64xf32>
    %86 = vector.shape_cast %85 : vector<64xf32> to vector<64x1xf32>
    %87 = vector.broadcast %86 : vector<64x1xf32> to vector<64x64xf32>
    %88 = arith.subf %84, %87 : vector<64x64xf32>
    %89 = math.exp %88 : vector<64x64xf32>
    %cst_56 = arith.constant dense<0.000000e+00> : vector<64xf32>
    %90 = vector.multi_reduction <add>, %89, %cst_56 [1] : vector<64x64xf32> to vector<64xf32>
    %91 = vector.shape_cast %90 : vector<64xf32> to vector<64x1xf32>
    %92 = tpu.reciprocal %91 {approx = true} : vector<64x1xf32> -> vector<64x1xf32>
    %93 = vector.broadcast %92 : vector<64x1xf32> to vector<64x64xf32>
    %94 = arith.mulf %89, %93 : vector<64x64xf32>
    %95 = arith.truncf %94 : vector<64x64xf32> to vector<64x64xbf16>
    %cst_57 = arith.constant dense<0.000000e+00> : vector<64x8xf32>
    %96 = tpu.matmul %95, %83, %cst_57 {dimension_numbers = #tpu.dot_dimension_numbers<[1], [0], [0], [1], [0, 0, 1, 1], [], []>} : vector<64x64xbf16>, vector<64x8xbf16>, vector<64x8xf32> -> vector<64x8xf32>
    %c0_58 = arith.constant 0 : index
    %c16_59 = arith.constant 16 : index
    %97 = vector.load %arg16[%c0_58, %c16_59] : memref<128x32xf32, #tpu.memory_space<vmem>>, vector<64x8xf32>
    tpu.vector_store %arg16[%c0_58, %c16_59], %96 {strides = array<i32>} : memref<128x32xf32, #tpu.memory_space<vmem>>, vector<64x8xf32>,
    %c0_60 = arith.constant 0 : index
    %c24 = arith.constant 24 : index
    %98 = vector.load %arg15[%c0_60, %c24] : memref<128x96xf32, #tpu.memory_space<vmem>>, vector<64x8xf32>
    %99 = arith.truncf %98 : vector<64x8xf32> to vector<64x8xbf16>
    %c0_61 = arith.constant 0 : index
    %c56 = arith.constant 56 : index
    %100 = vector.load %arg15[%c0_61, %c56] : memref<128x96xf32, #tpu.memory_space<vmem>>, vector<64x8xf32>
    %101 = arith.truncf %100 : vector<64x8xf32> to vector<64x8xbf16>
    %c0_62 = arith.constant 0 : index
    %c88 = arith.constant 88 : index
    %102 = vector.load %arg15[%c0_62, %c88] : memref<128x96xf32, #tpu.memory_space<vmem>>, vector<64x8xf32>
    %103 = arith.truncf %102 : vector<64x8xf32> to vector<64x8xbf16>
    %cst_63 = arith.constant dense<0.000000e+00> : vector<64x64xf32>
    %104 = tpu.matmul %99, %101, %cst_63 {dimension_numbers = #tpu.dot_dimension_numbers<[1], [1], [0], [0], [0, 0, 1, 0], [], []>} : vector<64x8xbf16>, vector<64x8xbf16>, vector<64x64xf32> -> vector<64x64xf32>
    %cst_64 = arith.constant dense<0xFF800000> : vector<64xf32>
    %105 = vector.multi_reduction <maximumf>, %104, %cst_64 [1] : vector<64x64xf32> to vector<64xf32>
    %106 = vector.shape_cast %105 : vector<64xf32> to vector<64x1xf32>
    %107 = vector.broadcast %106 : vector<64x1xf32> to vector<64x64xf32>
    %108 = arith.subf %104, %107 : vector<64x64xf32>
    %109 = math.exp %108 : vector<64x64xf32>
    %cst_65 = arith.constant dense<0.000000e+00> : vector<64xf32>
    %110 = vector.multi_reduction <add>, %109, %cst_65 [1] : vector<64x64xf32> to vector<64xf32>
    %111 = vector.shape_cast %110 : vector<64xf32> to vector<64x1xf32>
    %112 = tpu.reciprocal %111 {approx = true} : vector<64x1xf32> -> vector<64x1xf32>
    %113 = vector.broadcast %112 : vector<64x1xf32> to vector<64x64xf32>
    %114 = arith.mulf %109, %113 : vector<64x64xf32>
    %115 = arith.truncf %114 : vector<64x64xf32> to vector<64x64xbf16>
    %cst_66 = arith.constant dense<0.000000e+00> : vector<64x8xf32>
    %116 = tpu.matmul %115, %103, %cst_66 {dimension_numbers = #tpu.dot_dimension_numbers<[1], [0], [0], [1], [0, 0, 1, 1], [], []>} : vector<64x64xbf16>, vector<64x8xbf16>, vector<64x8xf32> -> vector<64x8xf32>
    %c0_67 = arith.constant 0 : index
    %c24_68 = arith.constant 24 : index
    %117 = vector.load %arg16[%c0_67, %c24_68] : memref<128x32xf32, #tpu.memory_space<vmem>>, vector<64x8xf32>
    tpu.vector_store %arg16[%c0_67, %c24_68], %116 {strides = array<i32>} : memref<128x32xf32, #tpu.memory_space<vmem>>, vector<64x8xf32>,
    %c64_69 = arith.constant 64 : index
    %c0_70 = arith.constant 0 : index
    %118 = vector.load %arg15[%c64_69, %c0_70] : memref<128x96xf32, #tpu.memory_space<vmem>>, vector<64x8xf32>
    %119 = arith.truncf %118 : vector<64x8xf32> to vector<64x8xbf16>
    %c64_71 = arith.constant 64 : index
    %c32_72 = arith.constant 32 : index
    %120 = vector.load %arg15[%c64_71, %c32_72] : memref<128x96xf32, #tpu.memory_space<vmem>>, vector<64x8xf32>
    %121 = arith.truncf %120 : vector<64x8xf32> to vector<64x8xbf16>
    %c64_73 = arith.constant 64 : index
    %c64_74 = arith.constant 64 : index
    %122 = vector.load %arg15[%c64_73, %c64_74] : memref<128x96xf32, #tpu.memory_space<vmem>>, vector<64x8xf32>
    %123 = arith.truncf %122 : vector<64x8xf32> to vector<64x8xbf16>
    %cst_75 = arith.constant dense<0.000000e+00> : vector<64x64xf32>
    %124 = tpu.matmul %119, %121, %cst_75 {dimension_numbers = #tpu.dot_dimension_numbers<[1], [1], [0], [0], [0, 0, 1, 0], [], []>} : vector<64x8xbf16>, vector<64x8xbf16>, vector<64x64xf32> -> vector<64x64xf32>
    %cst_76 = arith.constant dense<0xFF800000> : vector<64xf32>
    %125 = vector.multi_reduction <maximumf>, %124, %cst_76 [1] : vector<64x64xf32> to vector<64xf32>
    %126 = vector.shape_cast %125 : vector<64xf32> to vector<64x1xf32>
    %127 = vector.broadcast %126 : vector<64x1xf32> to vector<64x64xf32>
    %128 = arith.subf %124, %127 : vector<64x64xf32>
    %129 = math.exp %128 : vector<64x64xf32>
    %cst_77 = arith.constant dense<0.000000e+00> : vector<64xf32>
    %130 = vector.multi_reduction <add>, %129, %cst_77 [1] : vector<64x64xf32> to vector<64xf32>
    %131 = vector.shape_cast %130 : vector<64xf32> to vector<64x1xf32>
    %132 = tpu.reciprocal %131 {approx = true} : vector<64x1xf32> -> vector<64x1xf32>
    %133 = vector.broadcast %132 : vector<64x1xf32> to vector<64x64xf32>
    %134 = arith.mulf %129, %133 : vector<64x64xf32>
    %135 = arith.truncf %134 : vector<64x64xf32> to vector<64x64xbf16>
    %cst_78 = arith.constant dense<0.000000e+00> : vector<64x8xf32>
    %136 = tpu.matmul %135, %123, %cst_78 {dimension_numbers = #tpu.dot_dimension_numbers<[1], [0], [0], [1], [0, 0, 1, 1], [], []>} : vector<64x64xbf16>, vector<64x8xbf16>, vector<64x8xf32> -> vector<64x8xf32>
    %c64_79 = arith.constant 64 : index
    %c0_80 = arith.constant 0 : index
    %137 = vector.load %arg16[%c64_79, %c0_80] : memref<128x32xf32, #tpu.memory_space<vmem>>, vector<64x8xf32>
    tpu.vector_store %arg16[%c64_79, %c0_80], %136 {strides = array<i32>} : memref<128x32xf32, #tpu.memory_space<vmem>>, vector<64x8xf32>,
    %c64_81 = arith.constant 64 : index
    %c8_82 = arith.constant 8 : index
    %138 = vector.load %arg15[%c64_81, %c8_82] : memref<128x96xf32, #tpu.memory_space<vmem>>, vector<64x8xf32>
    %139 = arith.truncf %138 : vector<64x8xf32> to vector<64x8xbf16>
    %c64_83 = arith.constant 64 : index
    %c40_84 = arith.constant 40 : index
    %140 = vector.load %arg15[%c64_83, %c40_84] : memref<128x96xf32, #tpu.memory_space<vmem>>, vector<64x8xf32>
    %141 = arith.truncf %140 : vector<64x8xf32> to vector<64x8xbf16>
    %c64_85 = arith.constant 64 : index
    %c72_86 = arith.constant 72 : index
    %142 = vector.load %arg15[%c64_85, %c72_86] : memref<128x96xf32, #tpu.memory_space<vmem>>, vector<64x8xf32>
    %143 = arith.truncf %142 : vector<64x8xf32> to vector<64x8xbf16>
    %cst_87 = arith.constant dense<0.000000e+00> : vector<64x64xf32>
    %144 = tpu.matmul %139, %141, %cst_87 {dimension_numbers = #tpu.dot_dimension_numbers<[1], [1], [0], [0], [0, 0, 1, 0], [], []>} : vector<64x8xbf16>, vector<64x8xbf16>, vector<64x64xf32> -> vector<64x64xf32>
    %cst_88 = arith.constant dense<0xFF800000> : vector<64xf32>
    %145 = vector.multi_reduction <maximumf>, %144, %cst_88 [1] : vector<64x64xf32> to vector<64xf32>
    %146 = vector.shape_cast %145 : vector<64xf32> to vector<64x1xf32>
    %147 = vector.broadcast %146 : vector<64x1xf32> to vector<64x64xf32>
    %148 = arith.subf %144, %147 : vector<64x64xf32>
    %149 = math.exp %148 : vector<64x64xf32>
    %cst_89 = arith.constant dense<0.000000e+00> : vector<64xf32>
    %150 = vector.multi_reduction <add>, %149, %cst_89 [1] : vector<64x64xf32> to vector<64xf32>
    %151 = vector.shape_cast %150 : vector<64xf32> to vector<64x1xf32>
    %152 = tpu.reciprocal %151 {approx = true} : vector<64x1xf32> -> vector<64x1xf32>
    %153 = vector.broadcast %152 : vector<64x1xf32> to vector<64x64xf32>
    %154 = arith.mulf %149, %153 : vector<64x64xf32>
    %155 = arith.truncf %154 : vector<64x64xf32> to vector<64x64xbf16>
    %cst_90 = arith.constant dense<0.000000e+00> : vector<64x8xf32>
    %156 = tpu.matmul %155, %143, %cst_90 {dimension_numbers = #tpu.dot_dimension_numbers<[1], [0], [0], [1], [0, 0, 1, 1], [], []>} : vector<64x64xbf16>, vector<64x8xbf16>, vector<64x8xf32> -> vector<64x8xf32>
    %c64_91 = arith.constant 64 : index
    %c8_92 = arith.constant 8 : index
    %157 = vector.load %arg16[%c64_91, %c8_92] : memref<128x32xf32, #tpu.memory_space<vmem>>, vector<64x8xf32>
    tpu.vector_store %arg16[%c64_91, %c8_92], %156 {strides = array<i32>} : memref<128x32xf32, #tpu.memory_space<vmem>>, vector<64x8xf32>,
    %c64_93 = arith.constant 64 : index
    %c16_94 = arith.constant 16 : index
    %158 = vector.load %arg15[%c64_93, %c16_94] : memref<128x96xf32, #tpu.memory_space<vmem>>, vector<64x8xf32>
    %159 = arith.truncf %158 : vector<64x8xf32> to vector<64x8xbf16>
    %c64_95 = arith.constant 64 : index
    %c48_96 = arith.constant 48 : index
    %160 = vector.load %arg15[%c64_95, %c48_96] : memref<128x96xf32, #tpu.memory_space<vmem>>, vector<64x8xf32>
    %161 = arith.truncf %160 : vector<64x8xf32> to vector<64x8xbf16>
    %c64_97 = arith.constant 64 : index
    %c80_98 = arith.constant 80 : index
    %162 = vector.load %arg15[%c64_97, %c80_98] : memref<128x96xf32, #tpu.memory_space<vmem>>, vector<64x8xf32>
    %163 = arith.truncf %162 : vector<64x8xf32> to vector<64x8xbf16>
    %cst_99 = arith.constant dense<0.000000e+00> : vector<64x64xf32>
    %164 = tpu.matmul %159, %161, %cst_99 {dimension_numbers = #tpu.dot_dimension_numbers<[1], [1], [0], [0], [0, 0, 1, 0], [], []>} : vector<64x8xbf16>, vector<64x8xbf16>, vector<64x64xf32> -> vector<64x64xf32>
    %cst_100 = arith.constant dense<0xFF800000> : vector<64xf32>
    %165 = vector.multi_reduction <maximumf>, %164, %cst_100 [1] : vector<64x64xf32> to vector<64xf32>
    %166 = vector.shape_cast %165 : vector<64xf32> to vector<64x1xf32>
    %167 = vector.broadcast %166 : vector<64x1xf32> to vector<64x64xf32>
    %168 = arith.subf %164, %167 : vector<64x64xf32>
    %169 = math.exp %168 : vector<64x64xf32>
    %cst_101 = arith.constant dense<0.000000e+00> : vector<64xf32>
    %170 = vector.multi_reduction <add>, %169, %cst_101 [1] : vector<64x64xf32> to vector<64xf32>
    %171 = vector.shape_cast %170 : vector<64xf32> to vector<64x1xf32>
    %172 = tpu.reciprocal %171 {approx = true} : vector<64x1xf32> -> vector<64x1xf32>
    %173 = vector.broadcast %172 : vector<64x1xf32> to vector<64x64xf32>
    %174 = arith.mulf %169, %173 : vector<64x64xf32>
    %175 = arith.truncf %174 : vector<64x64xf32> to vector<64x64xbf16>
    %cst_102 = arith.constant dense<0.000000e+00> : vector<64x8xf32>
    %176 = tpu.matmul %175, %163, %cst_102 {dimension_numbers = #tpu.dot_dimension_numbers<[1], [0], [0], [1], [0, 0, 1, 1], [], []>} : vector<64x64xbf16>, vector<64x8xbf16>, vector<64x8xf32> -> vector<64x8xf32>
    %c64_103 = arith.constant 64 : index
    %c16_104 = arith.constant 16 : index
    %177 = vector.load %arg16[%c64_103, %c16_104] : memref<128x32xf32, #tpu.memory_space<vmem>>, vector<64x8xf32>
    tpu.vector_store %arg16[%c64_103, %c16_104], %176 {strides = array<i32>} : memref<128x32xf32, #tpu.memory_space<vmem>>, vector<64x8xf32>,
    %c64_105 = arith.constant 64 : index
    %c24_106 = arith.constant 24 : index
    %178 = vector.load %arg15[%c64_105, %c24_106] : memref<128x96xf32, #tpu.memory_space<vmem>>, vector<64x8xf32>
    %179 = arith.truncf %178 : vector<64x8xf32> to vector<64x8xbf16>
    %c64_107 = arith.constant 64 : index
    %c56_108 = arith.constant 56 : index
    %180 = vector.load %arg15[%c64_107, %c56_108] : memref<128x96xf32, #tpu.memory_space<vmem>>, vector<64x8xf32>
    %181 = arith.truncf %180 : vector<64x8xf32> to vector<64x8xbf16>
    %c64_109 = arith.constant 64 : index
    %c88_110 = arith.constant 88 : index
    %182 = vector.load %arg15[%c64_109, %c88_110] : memref<128x96xf32, #tpu.memory_space<vmem>>, vector<64x8xf32>
    %183 = arith.truncf %182 : vector<64x8xf32> to vector<64x8xbf16>
    %cst_111 = arith.constant dense<0.000000e+00> : vector<64x64xf32>
    %184 = tpu.matmul %179, %181, %cst_111 {dimension_numbers = #tpu.dot_dimension_numbers<[1], [1], [0], [0], [0, 0, 1, 0], [], []>} : vector<64x8xbf16>, vector<64x8xbf16>, vector<64x64xf32> -> vector<64x64xf32>
    %cst_112 = arith.constant dense<0xFF800000> : vector<64xf32>
    %185 = vector.multi_reduction <maximumf>, %184, %cst_112 [1] : vector<64x64xf32> to vector<64xf32>
    %186 = vector.shape_cast %185 : vector<64xf32> to vector<64x1xf32>
    %187 = vector.broadcast %186 : vector<64x1xf32> to vector<64x64xf32>
    %188 = arith.subf %184, %187 : vector<64x64xf32>
    %189 = math.exp %188 : vector<64x64xf32>
    %cst_113 = arith.constant dense<0.000000e+00> : vector<64xf32>
    %190 = vector.multi_reduction <add>, %189, %cst_113 [1] : vector<64x64xf32> to vector<64xf32>
    %191 = vector.shape_cast %190 : vector<64xf32> to vector<64x1xf32>
    %192 = tpu.reciprocal %191 {approx = true} : vector<64x1xf32> -> vector<64x1xf32>
    %193 = vector.broadcast %192 : vector<64x1xf32> to vector<64x64xf32>
    %194 = arith.mulf %189, %193 : vector<64x64xf32>
    %195 = arith.truncf %194 : vector<64x64xf32> to vector<64x64xbf16>
    %cst_114 = arith.constant dense<0.000000e+00> : vector<64x8xf32>
    %196 = tpu.matmul %195, %183, %cst_114 {dimension_numbers = #tpu.dot_dimension_numbers<[1], [0], [0], [1], [0, 0, 1, 1], [], []>} : vector<64x64xbf16>, vector<64x8xbf16>, vector<64x8xf32> -> vector<64x8xf32>
    %c64_115 = arith.constant 64 : index
    %c24_116 = arith.constant 24 : index
    %197 = vector.load %arg16[%c64_115, %c24_116] : memref<128x32xf32, #tpu.memory_space<vmem>>, vector<64x8xf32>
    tpu.vector_store %arg16[%c64_115, %c24_116], %196 {strides = array<i32>} : memref<128x32xf32, #tpu.memory_space<vmem>>, vector<64x8xf32>,
    %c0_117 = arith.constant 0 : index
    %c0_118 = arith.constant 0 : index
    %198 = vector.load %arg16[%c0_117, %c0_118] : memref<128x32xf32, #tpu.memory_space<vmem>>, vector<128x32xf32>
    %199 = arith.truncf %198 : vector<128x32xf32> to vector<128x32xbf16>
    %cst_119 = arith.constant dense<0.000000e+00> : vector<128x32xf32>
    %200 = tpu.matmul %199, %6, %cst_119 {dimension_numbers = #tpu.dot_dimension_numbers<[1], [0], [0], [1], [0, 0, 1, 1], [], []>} : vector<128x32xbf16>, vector<32x32xbf16>, vector<128x32xf32> -> vector<128x32xf32>
    %201 = vector.broadcast %7 : vector<1x32xf32> to vector<128x32xf32>
    %202 = arith.addf %200, %201 : vector<128x32xf32>
    %203 = arith.addf %12, %202 : vector<128x32xf32>
    %cst_120 = arith.constant dense<0.000000e+00> : vector<128xf32>
    %204 = vector.multi_reduction <add>, %203, %cst_120 [1] : vector<128x32xf32> to vector<128xf32>
    %205 = vector.shape_cast %204 : vector<128xf32> to vector<128x1xf32>
    %cst_121 = arith.constant 3.200000e+01 : f32
    %206 = vector.broadcast %cst_121 : f32 to vector<128x1xf32>
    %207 = arith.divf %205, %206 : vector<128x1xf32>
    %208 = vector.broadcast %207 : vector<128x1xf32> to vector<128x32xf32>
    %209 = arith.subf %203, %208 : vector<128x32xf32>
    %210 = arith.mulf %209, %209 : vector<128x32xf32>
    %cst_122 = arith.constant dense<0.000000e+00> : vector<128xf32>
    %211 = vector.multi_reduction <add>, %210, %cst_122 [1] : vector<128x32xf32> to vector<128xf32>
    %212 = vector.shape_cast %211 : vector<128xf32> to vector<128x1xf32>
    %cst_123 = arith.constant 3.200000e+01 : f32
    %213 = vector.broadcast %cst_123 : f32 to vector<128x1xf32>
    %214 = arith.divf %212, %213 : vector<128x1xf32>
    %cst_124 = arith.constant 9.99999974E-6 : f32
    %215 = vector.broadcast %cst_124 : f32 to vector<128x1xf32>
    %216 = arith.addf %214, %215 : vector<128x1xf32>
    %217 = math.rsqrt %216 : vector<128x1xf32>
    %218 = vector.broadcast %217 : vector<128x1xf32> to vector<128x32xf32>
    %219 = arith.mulf %209, %218 : vector<128x32xf32>
    %220 = vector.broadcast %2 : vector<1x32xf32> to vector<128x32xf32>
    %221 = arith.mulf %219, %220 : vector<128x32xf32>
    %222 = vector.broadcast %3 : vector<1x32xf32> to vector<128x32xf32>
    %223 = arith.addf %221, %222 : vector<128x32xf32>
    %224 = arith.truncf %223 : vector<128x32xf32> to vector<128x32xbf16>
    %cst_125 = arith.constant dense<0.000000e+00> : vector<128x64xf32>
    %225 = tpu.matmul %224, %8, %cst_125 {dimension_numbers = #tpu.dot_dimension_numbers<[1], [0], [0], [1], [0, 0, 1, 1], [], []>} : vector<128x32xbf16>, vector<32x64xbf16>, vector<128x64xf32> -> vector<128x64xf32>
    %226 = vector.broadcast %9 : vector<1x64xf32> to vector<128x64xf32>
    %227 = arith.addf %225, %226 : vector<128x64xf32>
    %cst_126 = arith.constant 5.000000e-01 : f32
    %228 = vector.broadcast %cst_126 : f32 to vector<128x64xf32>
    %229 = arith.mulf %228, %227 : vector<128x64xf32>
    %230 = arith.mulf %227, %227 : vector<128x64xf32>
    %231 = arith.mulf %230, %227 : vector<128x64xf32>
    %cst_127 = arith.constant 4.471500e-02 : f32
    %232 = vector.broadcast %cst_127 : f32 to vector<128x64xf32>
    %233 = arith.mulf %232, %231 : vector<128x64xf32>
    %234 = arith.addf %227, %233 : vector<128x64xf32>
    %cst_128 = arith.constant 0.797884583 : f32
    %235 = vector.broadcast %cst_128 : f32 to vector<128x64xf32>
    %236 = arith.mulf %235, %234 : vector<128x64xf32>
    %237 = math.tanh %236 : vector<128x64xf32>
    %cst_129 = arith.constant 1.000000e+00 : f32
    %238 = vector.broadcast %cst_129 : f32 to vector<128x64xf32>
    %239 = arith.addf %238, %237 : vector<128x64xf32>
    %240 = arith.mulf %229, %239 : vector<128x64xf32>
    %241 = arith.truncf %240 : vector<128x64xf32> to vector<128x64xbf16>
    %cst_130 = arith.constant dense<0.000000e+00> : vector<128x32xf32>
    %242 = tpu.matmul %241, %10, %cst_130 {dimension_numbers = #tpu.dot_dimension_numbers<[1], [0], [0], [1], [0, 0, 1, 1], [], []>} : vector<128x64xbf16>, vector<64x32xbf16>, vector<128x32xf32> -> vector<128x32xf32>
    %243 = vector.broadcast %11 : vector<1x32xf32> to vector<128x32xf32>
    %244 = arith.addf %242, %243 : vector<128x32xf32>
    %cst_131 = arith.constant 5.000000e-01 : f32
    %245 = vector.broadcast %cst_131 : f32 to vector<128x32xf32>
    %246 = arith.mulf %245, %244 : vector<128x32xf32>
    %247 = arith.mulf %244, %244 : vector<128x32xf32>
    %248 = arith.mulf %247, %244 : vector<128x32xf32>
    %cst_132 = arith.constant 4.471500e-02 : f32
    %249 = vector.broadcast %cst_132 : f32 to vector<128x32xf32>
    %250 = arith.mulf %249, %248 : vector<128x32xf32>
    %251 = arith.addf %244, %250 : vector<128x32xf32>
    %cst_133 = arith.constant 0.797884583 : f32
    %252 = vector.broadcast %cst_133 : f32 to vector<128x32xf32>
    %253 = arith.mulf %252, %251 : vector<128x32xf32>
    %254 = math.tanh %253 : vector<128x32xf32>
    %cst_134 = arith.constant 1.000000e+00 : f32
    %255 = vector.broadcast %cst_134 : f32 to vector<128x32xf32>
    %256 = arith.addf %255, %254 : vector<128x32xf32>
    %257 = arith.mulf %246, %256 : vector<128x32xf32>
    %258 = arith.addf %203, %257 : vector<128x32xf32>
    %c0_135 = arith.constant 0 : index
    %c0_136 = arith.constant 0 : index
    %259 = vector.load %arg14[%c0_135, %c0_136] : memref<128x32xf32, #tpu.memory_space<vmem>>, vector<128x32xf32>
    tpu.vector_store %arg14[%c0_135, %c0_136], %258 {strides = array<i32>} : memref<128x32xf32, #tpu.memory_space<vmem>>, vector<128x32xf32>,
    return
  }
  func.func @transform_0(%arg0: i32) -> (i32, i32) {
    %c0_i32 = arith.constant 0 : i32
    %c0_i32_0 = arith.constant 0 : i32
    return %arg0, %c0_i32 : i32, i32
  }
  func.func @transform_1(%arg0: i32) -> (i32, i32) {
    %c0_i32 = arith.constant 0 : i32
    %c0_i32_0 = arith.constant 0 : i32
    %c0_i32_1 = arith.constant 0 : i32
    return %c0_i32, %c0_i32_0 : i32, i32
  }
  func.func @transform_2(%arg0: i32) -> (i32, i32) {
    %c0_i32 = arith.constant 0 : i32
    %c0_i32_0 = arith.constant 0 : i32
    %c0_i32_1 = arith.constant 0 : i32
    return %c0_i32, %c0_i32_0 : i32, i32
  }
  func.func @transform_3(%arg0: i32) -> (i32, i32) {
    %c0_i32 = arith.constant 0 : i32
    %c0_i32_0 = arith.constant 0 : i32
    %c0_i32_1 = arith.constant 0 : i32
    return %c0_i32, %c0_i32_0 : i32, i32
  }
  func.func @transform_4(%arg0: i32) -> (i32, i32) {
    %c0_i32 = arith.constant 0 : i32
    %c0_i32_0 = arith.constant 0 : i32
    %c0_i32_1 = arith.constant 0 : i32
    return %c0_i32, %c0_i32_0 : i32, i32
  }
  func.func @transform_5(%arg0: i32) -> (i32, i32) {
    %c0_i32 = arith.constant 0 : i32
    %c0_i32_0 = arith.constant 0 : i32
    %c0_i32_1 = arith.constant 0 : i32
    return %c0_i32, %c0_i32_0 : i32, i32
  }
  func.func @transform_6(%arg0: i32) -> (i32, i32) {
    %c0_i32 = arith.constant 0 : i32
    %c0_i32_0 = arith.constant 0 : i32
    %c0_i32_1 = arith.constant 0 : i32
    return %c0_i32, %c0_i32_0 : i32, i32
  }
  func.func @transform_7(%arg0: i32) -> (i32, i32) {
    %c0_i32 = arith.constant 0 : i32
    %c0_i32_0 = arith.constant 0 : i32
    %c0_i32_1 = arith.constant 0 : i32
    return %c0_i32, %c0_i32_0 : i32, i32
  }
  func.func @transform_8(%arg0: i32) -> (i32, i32) {
    %c0_i32 = arith.constant 0 : i32
    %c0_i32_0 = arith.constant 0 : i32
    %c0_i32_1 = arith.constant 0 : i32
    return %c0_i32, %c0_i32_0 : i32, i32
  }
  func.func @transform_9(%arg0: i32) -> (i32, i32) {
    %c0_i32 = arith.constant 0 : i32
    %c0_i32_0 = arith.constant 0 : i32
    %c0_i32_1 = arith.constant 0 : i32
    return %c0_i32, %c0_i32_0 : i32, i32
  }
  func.func @transform_10(%arg0: i32) -> (i32, i32) {
    %c0_i32 = arith.constant 0 : i32
    %c0_i32_0 = arith.constant 0 : i32
    %c0_i32_1 = arith.constant 0 : i32
    return %c0_i32, %c0_i32_0 : i32, i32
  }
  func.func @transform_11(%arg0: i32) -> (i32, i32) {
    %c0_i32 = arith.constant 0 : i32
    %c0_i32_0 = arith.constant 0 : i32
    %c0_i32_1 = arith.constant 0 : i32
    return %c0_i32, %c0_i32_0 : i32, i32
  }
  func.func @transform_12(%arg0: i32) -> (i32, i32) {
    %c0_i32 = arith.constant 0 : i32
    %c0_i32_0 = arith.constant 0 : i32
    %c0_i32_1 = arith.constant 0 : i32
    return %c0_i32, %c0_i32_0 : i32, i32
  }
  func.func @transform_13(%arg0: i32) -> (i32, i32) {
    %c0_i32 = arith.constant 0 : i32
    %c0_i32_0 = arith.constant 0 : i32
    return %arg0, %c0_i32 : i32, i32
  }
}

</mosaic_0001>

<llo_original>
// kernel: transformer_encoder_sa.1
$region0: #{transformer_encoder_sa.1}
  #allocation0 [shape = 'u32[]', space=smem, size = 0x4, offset = 0x4, fixed_abs, tag = 'smem constant byte address 0x4 - core index']
  #allocation1 [shape = 'u32[144,128]{1,0:T(1,128)}', space=vmem, size = 0x12000, scoped, tag = 'internal scratch']
  #allocation2 [shape = 'f32[128,96]{1,0:T(8,128)}', space=vmem, size = 0x10000, scoped, tag = 'scratch operand']
  #allocation3 [shape = 'f32[128,32]{1,0:T(8,128)}', space=vmem, size = 0x10000, scoped, tag = 'scratch operand']
  %s0 = inlined_call_operand.hbm [shape: f32[128,32], index: 0, kind: input, shape index: {}]
  %s1 = inlined_call_operand.vmem [shape: f32[1,32], index: 1, kind: input, shape index: {}]
  %s2 = inlined_call_operand.vmem [shape: f32[1,32], index: 2, kind: input, shape index: {}]
  %s3 = inlined_call_operand.vmem [shape: bf16[32,96], index: 3, kind: input, shape index: {}]
  %s4 = inlined_call_operand.vmem [shape: f32[1,96], index: 4, kind: input, shape index: {}]
  %s5 = inlined_call_operand.vmem [shape: bf16[32,32], index: 5, kind: input, shape index: {}]
  %s6 = inlined_call_operand.vmem [shape: f32[1,32], index: 6, kind: input, shape index: {}]
  %s7 = inlined_call_operand.vmem [shape: f32[1,32], index: 7, kind: input, shape index: {}]
  %s8 = inlined_call_operand.vmem [shape: f32[1,32], index: 8, kind: input, shape index: {}]
  %s9 = inlined_call_operand.vmem [shape: bf16[32,64], index: 9, kind: input, shape index: {}]
  %s10 = inlined_call_operand.vmem [shape: f32[1,64], index: 10, kind: input, shape index: {}]
  %s11 = inlined_call_operand.vmem [shape: bf16[64,32], index: 11, kind: input, shape index: {}]
  %s12 = inlined_call_operand.vmem [shape: f32[1,32], index: 12, kind: input, shape index: {}]
  %s13 = inlined_call_operand.hbm [shape: f32[128,32], index: 13, kind: output, shape index: {}]
  %s14 = sld [smem:[#allocation0]]
  $region66: #{transformer_encoder_sa.1} parent=0
    _
  %s16 = ssub.s32 1, %s14
  %s17 = scalar_select 0, %s16, %s14
  $region1: #{transformer_encoder_sa.1} parent=0
    #allocation4 [shape = 'u8[65536]{0}', space=vmem, size = 0x10000, scoped, tag = 'input window, operand 0, single buffered']
    #allocation5 [shape = 's32[1]{0}', space=sflag, size = 0x4, scoped, tag = 'scoped memory for transformer_encoder_sa.1']
    #allocation6 [shape = 's32[1]{0}', space=sflag, size = 0x4, scoped, tag = 'scoped memory for transformer_encoder_sa.1']
    #allocation7 [shape = 'u8[65536]{0}', space=vmem, size = 0x10000, scoped, tag = 'output window, operand 0, single buffered']
    %18 = vsyncpa [#allocation5], 0
    %19 = vsyncpa [#allocation6], 0
    // Predicated region
    $region2: #{transformer_encoder_sa.1} parent=1 // pred_check
      _
    $region3: #{transformer_encoder_sa.1} parent=1 // pred_check_branch
      %21 = sbr.rel (0) target = $region5
    $region4: #{transformer_encoder_sa.1} parent=1 // pred_region
      %s23 = ssub.s32 2048, 2048
      %24 = vsyncadd [#allocation5], %s23
      %s25 = sshll.u32 [#allocation4], 4
      %s26 = int_to_ptr.vmem [resolvable:$true] %s25
      %31 = dma.hbm_to_vmem [thread:$0]  %s0, 2048, %s26, [#allocation5], 128, 128, 8
    $region5: #{transformer_encoder_sa.1} parent=1 // pred_fallthru
      _
    // Predicated region
    $region6: #{transformer_encoder_sa.1} parent=1 // pred_check
      _
    $region7: #{transformer_encoder_sa.1} parent=1 // pred_check_branch
      %33 = sbr.rel (0) target = $region9
    $region8: #{transformer_encoder_sa.1} parent=1 // pred_region
      _
    $region9: #{transformer_encoder_sa.1} parent=1 // pred_fallthru
      _
    // Predicated region
    $region10: #{transformer_encoder_sa.1} parent=1 // pred_check
      _
    $region11: #{transformer_encoder_sa.1} parent=1 // pred_check_branch
      %35 = sbr.rel (0) target = $region13
    $region12: #{transformer_encoder_sa.1} parent=1 // pred_region
      _
    $region13: #{transformer_encoder_sa.1} parent=1 // pred_fallthru
      _
    // Predicated region
    $region14: #{transformer_encoder_sa.1} parent=1 // pred_check
      _
    $region15: #{transformer_encoder_sa.1} parent=1 // pred_check_branch
      %37 = sbr.rel (0) target = $region17
    $region16: #{transformer_encoder_sa.1} parent=1 // pred_region
      _
    $region17: #{transformer_encoder_sa.1} parent=1 // pred_fallthru
      _
    // Predicated region
    $region18: #{transformer_encoder_sa.1} parent=1 // pred_check
      _
    $region19: #{transformer_encoder_sa.1} parent=1 // pred_check_branch
      %39 = sbr.rel (0) target = $region21
    $region20: #{transformer_encoder_sa.1} parent=1 // pred_region
      _
    $region21: #{transformer_encoder_sa.1} parent=1 // pred_fallthru
      _
    // Predicated region
    $region22: #{transformer_encoder_sa.1} parent=1 // pred_check
      _
    $region23: #{transformer_encoder_sa.1} parent=1 // pred_check_branch
      %41 = sbr.rel (0) target = $region25
    $region24: #{transformer_encoder_sa.1} parent=1 // pred_region
      _
    $region25: #{transformer_encoder_sa.1} parent=1 // pred_fallthru
      _
    // Predicated region
    $region26: #{transformer_encoder_sa.1} parent=1 // pred_check
      _
    $region27: #{transformer_encoder_sa.1} parent=1 // pred_check_branch
      %43 = sbr.rel (0) target = $region29
    $region28: #{transformer_encoder_sa.1} parent=1 // pred_region
      _
    $region29: #{transformer_encoder_sa.1} parent=1 // pred_fallthru
      _
    // Predicated region
    $region30: #{transformer_encoder_sa.1} parent=1 // pred_check
      _
    $region31: #{transformer_encoder_sa.1} parent=1 // pred_check_branch
      %45 = sbr.rel (0) target = $region33
    $region32: #{transformer_encoder_sa.1} parent=1 // pred_region
      _
    $region33: #{transformer_encoder_sa.1} parent=1 // pred_fallthru
      _
    // Predicated region
    $region34: #{transformer_encoder_sa.1} parent=1 // pred_check
      _
    $region35: #{transformer_encoder_sa.1} parent=1 // pred_check_branch
      %47 = sbr.rel (0) target = $region37
    $region36: #{transformer_encoder_sa.1} parent=1 // pred_region
      _
    $region37: #{transformer_encoder_sa.1} parent=1 // pred_fallthru
      _
    // Predicated region
    $region38: #{transformer_encoder_sa.1} parent=1 // pred_check
      _
    $region39: #{transformer_encoder_sa.1} parent=1 // pred_check_branch
      %49 = sbr.rel (0) target = $region41
    $region40: #{transformer_encoder_sa.1} parent=1 // pred_region
      _
    $region41: #{transformer_encoder_sa.1} parent=1 // pred_fallthru
      _
    // Predicated region
    $region42: #{transformer_encoder_sa.1} parent=1 // pred_check
      _
    $region43: #{transformer_encoder_sa.1} parent=1 // pred_check_branch
      %51 = sbr.rel (0) target = $region45
    $region44: #{transformer_encoder_sa.1} parent=1 // pred_region
      _
    $region45: #{transformer_encoder_sa.1} parent=1 // pred_fallthru
      _
    // Predicated region
    $region46: #{transformer_encoder_sa.1} parent=1 // pred_check
      _
    $region47: #{transformer_encoder_sa.1} parent=1 // pred_check_branch
      %53 = sbr.rel (0) target = $region49
    $region48: #{transformer_encoder_sa.1} parent=1 // pred_region
      _
    $region49: #{transformer_encoder_sa.1} parent=1 // pred_fallthru
      _
    // Predicated region
    $region50: #{transformer_encoder_sa.1} parent=1 // pred_check
      _
    $region51: #{transformer_encoder_sa.1} parent=1 // pred_check_branch
      %55 = sbr.rel (0) target = $region53
    $region52: #{transformer_encoder_sa.1} parent=1 // pred_region
      _
    $region53: #{transformer_encoder_sa.1} parent=1 // pred_fallthru
      _
    // Predicated region
    $region54: #{transformer_encoder_sa.1} parent=1 // pred_check
      _
    $region55: #{transformer_encoder_sa.1} parent=1 // pred_check_branch
      %57 = sbr.rel (0) target = $region57
    $region56: #{transformer_encoder_sa.1} parent=1 // pred_region
      %58 = dma.done [#allocation5], 2048
    $region57: #{transformer_encoder_sa.1} parent=1 // pred_fallthru
      _
    %v60 = vld [vmem:[%s1] sm:$0x1]
    %v61 = vld [vmem:[%s2] sm:$0x1]
    %v62 = vld [vmem:[%s7] sm:$0x1]
    %v63 = vld [vmem:[%s8] sm:$0x1]
    %v64 = vld [vmem:[%s3] sm:$0xf]
    %v65 = vld [vmem:[%s3 + $0x4] sm:$0xf]
    %v66 = vld [vmem:[%s3 + $0x8] sm:$0xf]
    %v67 = vld [vmem:[%s3 + $0xc] sm:$0xf]
    %v68 = vld [vmem:[%s4] sm:$0x1]
    %v69 = vld [vmem:[%s5] sm:$0xf]
    %v70 = vld [vmem:[%s5 + $0x4] sm:$0xf]
    %v71 = vld [vmem:[%s5 + $0x8] sm:$0xf]
    %v72 = vld [vmem:[%s5 + $0xc] sm:$0xf]
    %v73 = vld [vmem:[%s6] sm:$0x1]
    %v74 = vld [vmem:[%s9] sm:$0xf]
    %v75 = vld [vmem:[%s9 + $0x4] sm:$0xf]
    %v76 = vld [vmem:[%s9 + $0x8] sm:$0xf]
    %v77 = vld [vmem:[%s9 + $0xc] sm:$0xf]
    %v78 = vld [vmem:[%s10] sm:$0x1]
    %v79 = vld [vmem:[%s11] sm:$0xf]
    %v80 = vld [vmem:[%s11 + $0x4] sm:$0xf]
    %v81 = vld [vmem:[%s11 + $0x8] sm:$0xf]
    %v82 = vld [vmem:[%s11 + $0xc] sm:$0xf]
    %v83 = vld [vmem:[%s11 + $0x10] sm:$0xf]
    %v84 = vld [vmem:[%s11 + $0x14] sm:$0xf]
    %v85 = vld [vmem:[%s11 + $0x18] sm:$0xf]
    %v86 = vld [vmem:[%s11 + $0x1c] sm:$0xf]
    %v87 = vld [vmem:[%s12] sm:$0x1]
    %v88 = vld [vmem:[#allocation4] sm:$0xff]
    %v89 = vld [vmem:[#allocation4 + $0x8] sm:$0xff]
    %v90 = vld [vmem:[#allocation4 + $0x10] sm:$0xff]
    %v91 = vld [vmem:[#allocation4 + $0x18] sm:$0xff]
    %v92 = vld [vmem:[#allocation4 + $0x20] sm:$0xff]
    %v93 = vld [vmem:[#allocation4 + $0x28] sm:$0xff]
    %v94 = vld [vmem:[#allocation4 + $0x30] sm:$0xff]
    %v95 = vld [vmem:[#allocation4 + $0x38] sm:$0xff]
    %v96 = vld [vmem:[#allocation4 + $0x40] sm:$0xff]
    %v97 = vld [vmem:[#allocation4 + $0x48] sm:$0xff]
    %v98 = vld [vmem:[#allocation4 + $0x50] sm:$0xff]
    %v99 = vld [vmem:[#allocation4 + $0x58] sm:$0xff]
    %v100 = vld [vmem:[#allocation4 + $0x60] sm:$0xff]
    %v101 = vld [vmem:[#allocation4 + $0x68] sm:$0xff]
    %v102 = vld [vmem:[#allocation4 + $0x70] sm:$0xff]
    %v103 = vld [vmem:[#allocation4 + $0x78] sm:$0xff]
    %vm104 = vcmask 261120
    %v105 = vsel %vm104, %v88, 0.0
    %106 = vadd.xlane.f32.xlu0 %v105
    %v107 = vpop.xlane.xlu0 %106
    %v108 = vsel %vm104, %v89, 0.0
    %109 = vadd.xlane.f32.xlu0 %v108
    %v110 = vpop.xlane.xlu0 %109
    %v111 = vsel %vm104, %v90, 0.0
    %112 = vadd.xlane.f32.xlu0 %v111
    %v113 = vpop.xlane.xlu0 %112
    %v114 = vsel %vm104, %v91, 0.0
    %115 = vadd.xlane.f32.xlu0 %v114
    %v116 = vpop.xlane.xlu0 %115
    %v117 = vsel %vm104, %v92, 0.0
    %118 = vadd.xlane.f32.xlu0 %v117
    %v119 = vpop.xlane.xlu0 %118
    %v120 = vsel %vm104, %v93, 0.0
    %121 = vadd.xlane.f32.xlu0 %v120
    %v122 = vpop.xlane.xlu0 %121
    %v123 = vsel %vm104, %v94, 0.0
    %124 = vadd.xlane.f32.xlu0 %v123
    %v125 = vpop.xlane.xlu0 %124
    %v126 = vsel %vm104, %v95, 0.0
    %127 = vadd.xlane.f32.xlu0 %v126
    %v128 = vpop.xlane.xlu0 %127
    %v129 = vsel %vm104, %v96, 0.0
    %130 = vadd.xlane.f32.xlu0 %v129
    %v131 = vpop.xlane.xlu0 %130
    %v132 = vsel %vm104, %v97, 0.0
    %133 = vadd.xlane.f32.xlu0 %v132
    %v134 = vpop.xlane.xlu0 %133
    %v135 = vsel %vm104, %v98, 0.0
    %136 = vadd.xlane.f32.xlu0 %v135
    %v137 = vpop.xlane.xlu0 %136
    %v138 = vsel %vm104, %v99, 0.0
    %139 = vadd.xlane.f32.xlu0 %v138
    %v140 = vpop.xlane.xlu0 %139
    %v141 = vsel %vm104, %v100, 0.0
    %142 = vadd.xlane.f32.xlu0 %v141
    %v143 = vpop.xlane.xlu0 %142
    %v144 = vsel %vm104, %v101, 0.0
    %145 = vadd.xlane.f32.xlu0 %v144
    %v146 = vpop.xlane.xlu0 %145
    %v147 = vsel %vm104, %v102, 0.0
    %148 = vadd.xlane.f32.xlu0 %v147
    %v149 = vpop.xlane.xlu0 %148
    %v150 = vsel %vm104, %v103, 0.0
    %151 = vadd.xlane.f32.xlu0 %v150
    %v152 = vpop.xlane.xlu0 %151
    %v153 = vrcp.pop 32.0
    %v154 = vmul.f32 %v107, %v153
    %v155 = vmul.f32 %v110, %v153
    %v156 = vmul.f32 %v113, %v153
    %v157 = vmul.f32 %v116, %v153
    %v158 = vmul.f32 %v119, %v153
    %v159 = vmul.f32 %v122, %v153
    %v160 = vmul.f32 %v125, %v153
    %v161 = vmul.f32 %v128, %v153
    %v162 = vmul.f32 %v131, %v153
    %v163 = vmul.f32 %v134, %v153
    %v164 = vmul.f32 %v137, %v153
    %v165 = vmul.f32 %v140, %v153
    %v166 = vmul.f32 %v143, %v153
    %v167 = vmul.f32 %v146, %v153
    %v168 = vmul.f32 %v149, %v153
    %v169 = vmul.f32 %v152, %v153
    %v170 = vsub.f32 %v88, %v154
    %v171 = vsub.f32 %v89, %v155
    %v172 = vsub.f32 %v90, %v156
    %v173 = vsub.f32 %v91, %v157
    %v174 = vsub.f32 %v92, %v158
    %v175 = vsub.f32 %v93, %v159
    %v176 = vsub.f32 %v94, %v160
    %v177 = vsub.f32 %v95, %v161
    %v178 = vsub.f32 %v96, %v162
    %v179 = vsub.f32 %v97, %v163
    %v180 = vsub.f32 %v98, %v164
    %v181 = vsub.f32 %v99, %v165
    %v182 = vsub.f32 %v100, %v166
    %v183 = vsub.f32 %v101, %v167
    %v184 = vsub.f32 %v102, %v168
    %v185 = vsub.f32 %v103, %v169
    %v186 = vmul.f32 %v170, %v170
    %v187 = vmul.f32 %v171, %v171
    %v188 = vmul.f32 %v172, %v172
    %v189 = vmul.f32 %v173, %v173
    %v190 = vmul.f32 %v174, %v174
    %v191 = vmul.f32 %v175, %v175
    %v192 = vmul.f32 %v176, %v176
    %v193 = vmul.f32 %v177, %v177
    %v194 = vmul.f32 %v178, %v178
    %v195 = vmul.f32 %v179, %v179
    %v196 = vmul.f32 %v180, %v180
    %v197 = vmul.f32 %v181, %v181
    %v198 = vmul.f32 %v182, %v182
    %v199 = vmul.f32 %v183, %v183
    %v200 = vmul.f32 %v184, %v184
    %v201 = vmul.f32 %v185, %v185
    %v202 = vsel %vm104, %v186, 0.0
    %203 = vadd.xlane.f32.xlu0 %v202
    %v204 = vpop.xlane.xlu0 %203
    %v205 = vsel %vm104, %v187, 0.0
    %206 = vadd.xlane.f32.xlu0 %v205
    %v207 = vpop.xlane.xlu0 %206
    %v208 = vsel %vm104, %v188, 0.0
    %209 = vadd.xlane.f32.xlu0 %v208
    %v210 = vpop.xlane.xlu0 %209
    %v211 = vsel %vm104, %v189, 0.0
    %212 = vadd.xlane.f32.xlu0 %v211
    %v213 = vpop.xlane.xlu0 %212
    %v214 = vsel %vm104, %v190, 0.0
    %215 = vadd.xlane.f32.xlu0 %v214
    %v216 = vpop.xlane.xlu0 %215
    %v217 = vsel %vm104, %v191, 0.0
    %218 = vadd.xlane.f32.xlu0 %v217
    %v219 = vpop.xlane.xlu0 %218
    %v220 = vsel %vm104, %v192, 0.0
    %221 = vadd.xlane.f32.xlu0 %v220
    %v222 = vpop.xlane.xlu0 %221
    %v223 = vsel %vm104, %v193, 0.0
    %224 = vadd.xlane.f32.xlu0 %v223
    %v225 = vpop.xlane.xlu0 %224
    %v226 = vsel %vm104, %v194, 0.0
    %227 = vadd.xlane.f32.xlu0 %v226
    %v228 = vpop.xlane.xlu0 %227
    %v229 = vsel %vm104, %v195, 0.0
    %230 = vadd.xlane.f32.xlu0 %v229
    %v231 = vpop.xlane.xlu0 %230
    %v232 = vsel %vm104, %v196, 0.0
    %233 = vadd.xlane.f32.xlu0 %v232
    %v234 = vpop.xlane.xlu0 %233
    %v235 = vsel %vm104, %v197, 0.0
    %236 = vadd.xlane.f32.xlu0 %v235
    %v237 = vpop.xlane.xlu0 %236
    %v238 = vsel %vm104, %v198, 0.0
    %239 = vadd.xlane.f32.xlu0 %v238
    %v240 = vpop.xlane.xlu0 %239
    %v241 = vsel %vm104, %v199, 0.0
    %242 = vadd.xlane.f32.xlu0 %v241
    %v243 = vpop.xlane.xlu0 %242
    %v244 = vsel %vm104, %v200, 0.0
    %245 = vadd.xlane.f32.xlu0 %v244
    %v246 = vpop.xlane.xlu0 %245
    %v247 = vsel %vm104, %v201, 0.0
    %248 = vadd.xlane.f32.xlu0 %v247
    %v249 = vpop.xlane.xlu0 %248
    %v250 = vmul.f32 %v204, %v153
    %v251 = vmul.f32 %v207, %v153
    %v252 = vmul.f32 %v210, %v153
    %v253 = vmul.f32 %v213, %v153
    %v254 = vmul.f32 %v216, %v153
    %v255 = vmul.f32 %v219, %v153
    %v256 = vmul.f32 %v222, %v153
    %v257 = vmul.f32 %v225, %v153
    %v258 = vmul.f32 %v228, %v153
    %v259 = vmul.f32 %v231, %v153
    %v260 = vmul.f32 %v234, %v153
    %v261 = vmul.f32 %v237, %v153
    %v262 = vmul.f32 %v240, %v153
    %v263 = vmul.f32 %v243, %v153
    %v264 = vmul.f32 %v246, %v153
    %v265 = vmul.f32 %v249, %v153
    %v266 = vadd.f32 %v250, 1e-05
    %v267 = vadd.f32 %v251, 1e-05
    %v268 = vadd.f32 %v252, 1e-05
    %v269 = vadd.f32 %v253, 1e-05
    %v270 = vadd.f32 %v254, 1e-05
    %v271 = vadd.f32 %v255, 1e-05
    %v272 = vadd.f32 %v256, 1e-05
    %v273 = vadd.f32 %v257, 1e-05
    %v274 = vadd.f32 %v258, 1e-05
    %v275 = vadd.f32 %v259, 1e-05
    %v276 = vadd.f32 %v260, 1e-05
    %v277 = vadd.f32 %v261, 1e-05
    %v278 = vadd.f32 %v262, 1e-05
    %v279 = vadd.f32 %v263, 1e-05
    %v280 = vadd.f32 %v264, 1e-05
    %v281 = vadd.f32 %v265, 1e-05
    %v282 = vrsqrt.pop %v266
    %v283 = vrsqrt.pop %v267
    %v284 = vrsqrt.pop %v268
    %v285 = vrsqrt.pop %v269
    %v286 = vrsqrt.pop %v270
    %v287 = vrsqrt.pop %v271
    %v288 = vrsqrt.pop %v272
    %v289 = vrsqrt.pop %v273
    %v290 = vrsqrt.pop %v274
    %v291 = vrsqrt.pop %v275
    %v292 = vrsqrt.pop %v276
    %v293 = vrsqrt.pop %v277
    %v294 = vrsqrt.pop %v278
    %v295 = vrsqrt.pop %v279
    %v296 = vrsqrt.pop %v280
    %v297 = vrsqrt.pop %v281
    %v298 = vmul.f32 %v170, %v282
    %v299 = vmul.f32 %v171, %v283
    %v300 = vmul.f32 %v172, %v284
    %v301 = vmul.f32 %v173, %v285
    %v302 = vmul.f32 %v174, %v286
    %v303 = vmul.f32 %v175, %v287
    %v304 = vmul.f32 %v176, %v288
    %v305 = vmul.f32 %v177, %v289
    %v306 = vmul.f32 %v178, %v290
    %v307 = vmul.f32 %v179, %v291
    %v308 = vmul.f32 %v180, %v292
    %v309 = vmul.f32 %v181, %v293
    %v310 = vmul.f32 %v182, %v294
    %v311 = vmul.f32 %v183, %v295
    %v312 = vmul.f32 %v184, %v296
    %v313 = vmul.f32 %v185, %v297
    %v315 = vlaneseq
    %v316 = vshrl.u32 %v315, 7
    %v317 = vsub.s32 0, %v316
    %v318 = vrot.slane %v60, %v317
    %v320 = vmul.f32 %v298, %v318
    %v321 = vmul.f32 %v299, %v318
    %v322 = vmul.f32 %v300, %v318
    %v323 = vmul.f32 %v301, %v318
    %v324 = vmul.f32 %v302, %v318
    %v325 = vmul.f32 %v303, %v318
    %v326 = vmul.f32 %v304, %v318
    %v327 = vmul.f32 %v305, %v318
    %v328 = vmul.f32 %v306, %v318
    %v329 = vmul.f32 %v307, %v318
    %v330 = vmul.f32 %v308, %v318
    %v331 = vmul.f32 %v309, %v318
    %v332 = vmul.f32 %v310, %v318
    %v333 = vmul.f32 %v311, %v318
    %v334 = vmul.f32 %v312, %v318
    %v335 = vmul.f32 %v313, %v318
    %v337 = vlaneseq
    %v338 = vshrl.u32 %v337, 7
    %v339 = vsub.s32 0, %v338
    %v340 = vrot.slane %v61, %v339
    %v342 = vadd.f32 %v320, %v340
    %v343 = vadd.f32 %v321, %v340
    %v344 = vadd.f32 %v322, %v340
    %v345 = vadd.f32 %v323, %v340
    %v346 = vadd.f32 %v324, %v340
    %v347 = vadd.f32 %v325, %v340
    %v348 = vadd.f32 %v326, %v340
    %v349 = vadd.f32 %v327, %v340
    %v350 = vadd.f32 %v328, %v340
    %v351 = vadd.f32 %v329, %v340
    %v352 = vadd.f32 %v330, %v340
    %v353 = vadd.f32 %v331, %v340
    %v354 = vadd.f32 %v332, %v340
    %v355 = vadd.f32 %v333, %v340
    %v356 = vadd.f32 %v334, %v340
    %v357 = vadd.f32 %v335, %v340
    %v358 = vpack.c.bf16 %v343, %v342
    %v359 = vpack.c.bf16 %v345, %v344
    %v360 = vpack.c.bf16 %v347, %v346
    %v361 = vpack.c.bf16 %v349, %v348
    %v362 = vpack.c.bf16 %v351, %v350
    %v363 = vpack.c.bf16 %v353, %v352
    %v364 = vpack.c.bf16 %v355, %v354
    %v365 = vpack.c.bf16 %v357, %v356
    %v367 = vlaneseq
    %v368 = vshrl.u32 %v367, 7
    %v369 = vsub.s32 0, %v368
    %v370 = vrot.slane %v68, %v369
    %v376 = vunpack.c.l.b16 %v64
    %v377 = vunpack.c.l.b16 %v65
    %v378 = vunpack.c.l.b16 %v66
    %v379 = vunpack.c.l.b16 %v67
    %v380 = vpack.c.b16 %v377, %v376
    %v381 = vpack.c.b16 %v379, %v378
    %v385 = vsel %vm104, %v358, 0
    %v388 = vsel %vm104, %v359, 0
    %v391 = vsel %vm104, %v360, 0
    %v394 = vsel %vm104, %v361, 0
    %v397 = vsel %vm104, %v362, 0
    %v400 = vsel %vm104, %v363, 0
    %v403 = vsel %vm104, %v364, 0
    %v406 = vsel %vm104, %v365, 0
    %408 = vmatprep.subr.bf16.mxu0 0
    %409 = vmatpush1.bf16.msra.mxu0 %v380
    %410 = vmatprep.subr.bf16.mxu0 0
    %411 = vmatpush1.bf16.msra.mxu0 %v381
    %412 = vmatprep.subr.bf16.mxu0 0
    %413 = vmatpush1.bf16.msra.mxu0 0
    %414 = vmatprep.subr.bf16.mxu0 0
    %415 = vmatpush1.bf16.msra.mxu0 0
    %416 = vmatprep.subr.bf16.mxu0 0
    %417 = vmatpush1.bf16.msra.mxu0 0
    %418 = vmatprep.subr.bf16.mxu0 0
    %419 = vmatpush1.bf16.msra.mxu0 0
    %420 = vmatprep.subr.bf16.mxu0 0
    %421 = vmatpush1.bf16.msra.mxu0 0
    %422 = vmatprep.subr.bf16.mxu0 0
    %423 = vmatpush1.bf16.msra.mxu0 0
    %424 = vmatprep.subr.bf16.mxu0 0
    %425 = vmatpush1.bf16.msra.mxu0 0
    %426 = vmatprep.subr.bf16.mxu0 0
    %427 = vmatpush1.bf16.msra.mxu0 0
    %428 = vmatprep.subr.bf16.mxu0 0
    %429 = vmatpush1.bf16.msra.mxu0 0
    %430 = vmatprep.subr.bf16.mxu0 0
    %431 = vmatpush1.bf16.msra.mxu0 0
    %432 = vmatprep.subr.bf16.mxu0 0
    %433 = vmatpush1.bf16.msra.mxu0 0
    %434 = vmatprep.subr.bf16.mxu0 0
    %435 = vmatpush1.bf16.msra.mxu0 0
    %436 = vmatprep.subr.bf16.mxu0 0
    %437 = vmatpush1.bf16.msra.mxu0 0
    %438 = vmatprep.subr.bf16.mxu0 0
    %439 = vmatpush1.bf16.msra.mxu0 0
    %440 = vmatprep.mubr.bf16.mxu0 0
    %441 = vmatmul.mubr.bf16.gmra.mrb[0].mxu0 %v385
    %v442 = vpop.f32.mrb[0].mxu0
    %v443 = vadd.f32 %v370, %v442
    %v444 = vpop.f32.mrb[0].mxu0
    %v445 = vpop.f32.mrb[0].mxu0
    %v446 = vadd.f32 %v370, %v445
    %v447 = vpop.f32.mrb[0].mxu0
    %448 = vmatprep.mubr.bf16.mxu0 0
    %449 = vmatmul.mubr.bf16.gmra.mrb[0].mxu0 %v388
    %v450 = vpop.f32.mrb[0].mxu0
    %v451 = vadd.f32 %v370, %v450
    %v452 = vpop.f32.mrb[0].mxu0
    %v453 = vpop.f32.mrb[0].mxu0
    %v454 = vadd.f32 %v370, %v453
    %v455 = vpop.f32.mrb[0].mxu0
    %456 = vmatprep.mubr.bf16.mxu0 0
    %457 = vmatmul.mubr.bf16.gmra.mrb[0].mxu0 %v391
    %v458 = vpop.f32.mrb[0].mxu0
    %v459 = vadd.f32 %v370, %v458
    %v460 = vpop.f32.mrb[0].mxu0
    %v461 = vpop.f32.mrb[0].mxu0
    %v462 = vadd.f32 %v370, %v461
    %v463 = vpop.f32.mrb[0].mxu0
    %464 = vmatprep.mubr.bf16.mxu0 0
    %465 = vmatmul.mubr.bf16.gmra.mrb[0].mxu0 %v394
    %v466 = vpop.f32.mrb[0].mxu0
    %v467 = vadd.f32 %v370, %v466
    %v468 = vpop.f32.mrb[0].mxu0
    %v469 = vpop.f32.mrb[0].mxu0
    %v470 = vadd.f32 %v370, %v469
    %v471 = vpop.f32.mrb[0].mxu0
    %472 = vmatprep.mubr.bf16.mxu0 0
    %473 = vmatmul.mubr.bf16.gmra.mrb[0].mxu0 %v397
    %v474 = vpop.f32.mrb[0].mxu0
    %v475 = vadd.f32 %v370, %v474
    %v476 = vpop.f32.mrb[0].mxu0
    %v477 = vpop.f32.mrb[0].mxu0
    %v478 = vadd.f32 %v370, %v477
    %v479 = vpop.f32.mrb[0].mxu0
    %480 = vmatprep.mubr.bf16.mxu0 0
    %481 = vmatmul.mubr.bf16.gmra.mrb[0].mxu0 %v400
    %v482 = vpop.f32.mrb[0].mxu0
    %v483 = vadd.f32 %v370, %v482
    %v484 = vpop.f32.mrb[0].mxu0
    %v485 = vpop.f32.mrb[0].mxu0
    %v486 = vadd.f32 %v370, %v485
    %v487 = vpop.f32.mrb[0].mxu0
    %488 = vmatprep.mubr.bf16.mxu0 0
    %489 = vmatmul.mubr.bf16.gmra.mrb[0].mxu0 %v403
    %v490 = vpop.f32.mrb[0].mxu0
    %v491 = vadd.f32 %v370, %v490
    %v492 = vpop.f32.mrb[0].mxu0
    %v493 = vpop.f32.mrb[0].mxu0
    %v494 = vadd.f32 %v370, %v493
    %v495 = vpop.f32.mrb[0].mxu0
    %496 = vmatprep.mubr.bf16.mxu0 0
    %497 = vmatmul.mubr.bf16.gmra.mrb[0].mxu0 %v406
    %v498 = vpop.f32.mrb[0].mxu0
    %v499 = vadd.f32 %v370, %v498
    %v500 = vpop.f32.mrb[0].mxu0
    %v501 = vpop.f32.mrb[0].mxu0
    %v502 = vadd.f32 %v370, %v501
    %v503 = vpop.f32.mrb[0].mxu0
    %504 = vdwg.mxu0
    %vm505 = vcmask 785408
    %506 = vst.msk [vmem:[#allocation2] sm:$0xff] %vm505, %v443
    %507 = vst.msk [vmem:[#allocation2 + $0x8] sm:$0xff] %vm505, %v446
    %508 = vst.msk [vmem:[#allocation2 + $0x10] sm:$0xff] %vm505, %v451
    %509 = vst.msk [vmem:[#allocation2 + $0x18] sm:$0xff] %vm505, %v454
    %510 = vst.msk [vmem:[#allocation2 + $0x20] sm:$0xff] %vm505, %v459
    %511 = vst.msk [vmem:[#allocation2 + $0x28] sm:$0xff] %vm505, %v462
    %512 = vst.msk [vmem:[#allocation2 + $0x30] sm:$0xff] %vm505, %v467
    %513 = vst.msk [vmem:[#allocation2 + $0x38] sm:$0xff] %vm505, %v470
    %514 = vst.msk [vmem:[#allocation2 + $0x40] sm:$0xff] %vm505, %v475
    %515 = vst.msk [vmem:[#allocation2 + $0x48] sm:$0xff] %vm505, %v478
    %516 = vst.msk [vmem:[#allocation2 + $0x50] sm:$0xff] %vm505, %v483
    %517 = vst.msk [vmem:[#allocation2 + $0x58] sm:$0xff] %vm505, %v486
    %518 = vst.msk [vmem:[#allocation2 + $0x60] sm:$0xff] %vm505, %v491
    %519 = vst.msk [vmem:[#allocation2 + $0x68] sm:$0xff] %vm505, %v494
    %520 = vst.msk [vmem:[#allocation2 + $0x70] sm:$0xff] %vm505, %v499
    %521 = vst.msk [vmem:[#allocation2 + $0x78] sm:$0xff] %vm505, %v502
    %v522 = vld [vmem:[#allocation2] sm:$0xff]
    %v523 = vld [vmem:[#allocation2 + $0x8] sm:$0xff]
    %v524 = vld [vmem:[#allocation2 + $0x10] sm:$0xff]
    %v525 = vld [vmem:[#allocation2 + $0x18] sm:$0xff]
    %v526 = vld [vmem:[#allocation2 + $0x20] sm:$0xff]
    %v527 = vld [vmem:[#allocation2 + $0x28] sm:$0xff]
    %v528 = vld [vmem:[#allocation2 + $0x30] sm:$0xff]
    %v529 = vld [vmem:[#allocation2 + $0x38] sm:$0xff]
    %v530 = vpack.c.bf16 %v523, %v522
    %v531 = vpack.c.bf16 %v525, %v524
    %v532 = vpack.c.bf16 %v527, %v526
    %v533 = vpack.c.bf16 %v529, %v528
    %538 = vrot.lane.b32.xlu0 %v530, 96
    %v539 = vpop.permute.xlu0 %538
    %540 = vrot.lane.b32.xlu0 %v531, 96
    %v541 = vpop.permute.xlu0 %540
    %542 = vrot.lane.b32.xlu0 %v532, 96
    %v543 = vpop.permute.xlu0 %542
    %544 = vrot.lane.b32.xlu0 %v533, 96
    %v545 = vpop.permute.xlu0 %544
    %vm546 = vcmask 64512
    %v548 = vsel %vm546, %v530, 0
    %v551 = vsel %vm546, %v531, 0
    %v554 = vsel %vm546, %v532, 0
    %v557 = vsel %vm546, %v533, 0
    %v560 = vsel %vm546, %v539, 0
    %v563 = vsel %vm546, %v541, 0
    %v566 = vsel %vm546, %v543, 0
    %v569 = vsel %vm546, %v545, 0
    %571 = vmatprep.subr.bf16.mxu0 0
    %572 = vmatpush1.bf16.xpose.msra.mxu0 %v560
    %573 = vmatprep.subr.bf16.mxu0 0
    %574 = vmatpush1.bf16.xpose.msra.mxu0 %v563
    %575 = vmatprep.subr.bf16.mxu0 0
    %576 = vmatpush1.bf16.xpose.msra.mxu0 %v566
    %577 = vmatprep.subr.bf16.mxu0 0
    %578 = vmatpush1.bf16.xpose.msra.mxu0 %v569
    %579 = vmatprep.subr.bf16.mxu0 0
    %580 = vmatpush1.bf16.xpose.msra.mxu0 0
    %581 = vmatprep.subr.bf16.mxu0 0
    %582 = vmatpush1.bf16.xpose.msra.mxu0 0
    %583 = vmatprep.subr.bf16.mxu0 0
    %584 = vmatpush1.bf16.xpose.msra.mxu0 0
    %585 = vmatprep.subr.bf16.mxu0 0
    %586 = vmatpush1.bf16.xpose.msra.mxu0 0
    %587 = vmatprep.subr.bf16.mxu0 0
    %588 = vmatpush1.bf16.xpose.msra.mxu0 0
    %589 = vmatprep.subr.bf16.mxu0 0
    %590 = vmatpush1.bf16.xpose.msra.mxu0 0
    %591 = vmatprep.subr.bf16.mxu0 0
    %592 = vmatpush1.bf16.xpose.msra.mxu0 0
    %593 = vmatprep.subr.bf16.mxu0 0
    %594 = vmatpush1.bf16.xpose.msra.mxu0 0
    %595 = vmatprep.subr.bf16.mxu0 0
    %596 = vmatpush1.bf16.xpose.msra.mxu0 0
    %597 = vmatprep.subr.bf16.mxu0 0
    %598 = vmatpush1.bf16.xpose.msra.mxu0 0
    %599 = vmatprep.subr.bf16.mxu0 0
    %600 = vmatpush1.bf16.xpose.msra.mxu0 0
    %601 = vmatprep.subr.bf16.mxu0 0
    %602 = vmatpush1.bf16.xpose.msra.mxu0 0
    %603 = vmatprep.mubr.bf16.mxu0 0
    %604 = vmatmul.mubr.bf16.gmra.mrb[0].mxu0 %v548
    %v605 = vpop.f32.mrb[0].mxu0
    %v606 = vadd.f32 0.0, %v605
    %v607 = vpop.f32.mrb[0].mxu0
    %v608 = vpop.f32.mrb[0].mxu0
    %v609 = vadd.f32 0.0, %v608
    %v610 = vpop.f32.mrb[0].mxu0
    %611 = vmatprep.mubr.bf16.mxu0 0
    %612 = vmatmul.mubr.bf16.gmra.mrb[0].mxu0 %v551
    %v613 = vpop.f32.mrb[0].mxu0
    %v614 = vadd.f32 0.0, %v613
    %v615 = vpop.f32.mrb[0].mxu0
    %v616 = vpop.f32.mrb[0].mxu0
    %v617 = vadd.f32 0.0, %v616
    %v618 = vpop.f32.mrb[0].mxu0
    %619 = vmatprep.mubr.bf16.mxu0 0
    %620 = vmatmul.mubr.bf16.gmra.mrb[0].mxu0 %v554
    %v621 = vpop.f32.mrb[0].mxu0
    %v622 = vadd.f32 0.0, %v621
    %v623 = vpop.f32.mrb[0].mxu0
    %v624 = vpop.f32.mrb[0].mxu0
    %v625 = vadd.f32 0.0, %v624
    %v626 = vpop.f32.mrb[0].mxu0
    %627 = vmatprep.mubr.bf16.mxu0 0
    %628 = vmatmul.mubr.bf16.gmra.mrb[0].mxu0 %v557
    %v629 = vpop.f32.mrb[0].mxu0
    %v630 = vadd.f32 0.0, %v629
    %v631 = vpop.f32.mrb[0].mxu0
    %v632 = vpop.f32.mrb[0].mxu0
    %v633 = vadd.f32 0.0, %v632
    %v634 = vpop.f32.mrb[0].mxu0
    %635 = vdwg.mxu0
    %vm636 = vcmask 523264
    %v637 = vsel %vm636, %v606, -inf
    %638 = vmax.xlane.f32.xlu0 %v637
    %v639 = vpop.xlane.xlu0 %638
    %v640 = vsel %vm636, %v609, -inf
    %641 = vmax.xlane.f32.xlu0 %v640
    %v642 = vpop.xlane.xlu0 %641
    %v643 = vsel %vm636, %v614, -inf
    %644 = vmax.xlane.f32.xlu0 %v643
    %v645 = vpop.xlane.xlu0 %644
    %v646 = vsel %vm636, %v617, -inf
    %647 = vmax.xlane.f32.xlu0 %v646
    %v648 = vpop.xlane.xlu0 %647
    %v649 = vsel %vm636, %v622, -inf
    %650 = vmax.xlane.f32.xlu0 %v649
    %v651 = vpop.xlane.xlu0 %650
    %v652 = vsel %vm636, %v625, -inf
    %653 = vmax.xlane.f32.xlu0 %v652
    %v654 = vpop.xlane.xlu0 %653
    %v655 = vsel %vm636, %v630, -inf
    %656 = vmax.xlane.f32.xlu0 %v655
    %v657 = vpop.xlane.xlu0 %656
    %v658 = vsel %vm636, %v633, -inf
    %659 = vmax.xlane.f32.xlu0 %v658
    %v660 = vpop.xlane.xlu0 %659
    %v661 = vsub.f32 %v606, %v639
    %v662 = vsub.f32 %v609, %v642
    %v663 = vsub.f32 %v614, %v645
    %v664 = vsub.f32 %v617, %v648
    %v665 = vsub.f32 %v622, %v651
    %v666 = vsub.f32 %v625, %v654
    %v667 = vsub.f32 %v630, %v657
    %v668 = vsub.f32 %v633, %v660
    %v669 = vmul.f32 %v661, 1.442695
    %v670 = vpow.pop %v669
    %v671 = vmul.f32 %v662, 1.442695
    %v672 = vpow.pop %v671
    %v673 = vmul.f32 %v663, 1.442695
    %v674 = vpow.pop %v673
    %v675 = vmul.f32 %v664, 1.442695
    %v676 = vpow.pop %v675
    %v677 = vmul.f32 %v665, 1.442695
    %v678 = vpow.pop %v677
    %v679 = vmul.f32 %v666, 1.442695
    %v680 = vpow.pop %v679
    %v681 = vmul.f32 %v667, 1.442695
    %v682 = vpow.pop %v681
    %v683 = vmul.f32 %v668, 1.442695
    %v684 = vpow.pop %v683
    %v685 = vsel %vm636, %v670, 0.0
    %686 = vadd.xlane.f32.xlu0 %v685
    %v687 = vpop.xlane.xlu0 %686
    %v688 = vsel %vm636, %v672, 0.0
    %689 = vadd.xlane.f32.xlu0 %v688
    %v690 = vpop.xlane.xlu0 %689
    %v691 = vsel %vm636, %v674, 0.0
    %692 = vadd.xlane.f32.xlu0 %v691
    %v693 = vpop.xlane.xlu0 %692
    %v694 = vsel %vm636, %v676, 0.0
    %695 = vadd.xlane.f32.xlu0 %v694
    %v696 = vpop.xlane.xlu0 %695
    %v697 = vsel %vm636, %v678, 0.0
    %698 = vadd.xlane.f32.xlu0 %v697
    %v699 = vpop.xlane.xlu0 %698
    %v700 = vsel %vm636, %v680, 0.0
    %701 = vadd.xlane.f32.xlu0 %v700
    %v702 = vpop.xlane.xlu0 %701
    %v703 = vsel %vm636, %v682, 0.0
    %704 = vadd.xlane.f32.xlu0 %v703
    %v705 = vpop.xlane.xlu0 %704
    %v706 = vsel %vm636, %v684, 0.0
    %707 = vadd.xlane.f32.xlu0 %v706
    %v708 = vpop.xlane.xlu0 %707
    %v709 = vrcp.pop %v687
    %v710 = vrcp.pop %v690
    %v711 = vrcp.pop %v693
    %v712 = vrcp.pop %v696
    %v713 = vrcp.pop %v699
    %v714 = vrcp.pop %v702
    %v715 = vrcp.pop %v705
    %v716 = vrcp.pop %v708
    %v717 = vmul.f32 %v670, %v709
    %v718 = vmul.f32 %v672, %v710
    %v719 = vmul.f32 %v674, %v711
    %v720 = vmul.f32 %v676, %v712
    %v721 = vmul.f32 %v678, %v713
    %v722 = vmul.f32 %v680, %v714
    %v723 = vmul.f32 %v682, %v715
    %v724 = vmul.f32 %v684, %v716
    %v725 = vpack.c.bf16 %v718, %v717
    %v726 = vpack.c.bf16 %v720, %v719
    %v727 = vpack.c.bf16 %v722, %v721
    %v728 = vpack.c.bf16 %v724, %v723
    %729 = vrot.lane.b32.xlu0 %v530, 64
    %v730 = vpop.permute.xlu0 %729
    %731 = vrot.lane.b32.xlu0 %v531, 64
    %v732 = vpop.permute.xlu0 %731
    %733 = vrot.lane.b32.xlu0 %v532, 64
    %v734 = vpop.permute.xlu0 %733
    %735 = vrot.lane.b32.xlu0 %v533, 64
    %v736 = vpop.permute.xlu0 %735
    %v742 = vsel %vm636, %v725, 0
    %v745 = vsel %vm636, %v726, 0
    %v748 = vsel %vm636, %v727, 0
    %v751 = vsel %vm636, %v728, 0
    %753 = vmatprep.subr.bf16.mxu0 0
    %754 = vmatpush1.bf16.msra.mxu0 %v730
    %755 = vmatprep.subr.bf16.mxu0 0
    %756 = vmatpush1.bf16.msra.mxu0 %v732
    %757 = vmatprep.subr.bf16.mxu0 0
    %758 = vmatpush1.bf16.msra.mxu0 %v734
    %759 = vmatprep.subr.bf16.mxu0 0
    %760 = vmatpush1.bf16.msra.mxu0 %v736
    %761 = vmatprep.subr.bf16.mxu0 0
    %762 = vmatpush1.bf16.msra.mxu0 0
    %763 = vmatprep.subr.bf16.mxu0 0
    %764 = vmatpush1.bf16.msra.mxu0 0
    %765 = vmatprep.subr.bf16.mxu0 0
    %766 = vmatpush1.bf16.msra.mxu0 0
    %767 = vmatprep.subr.bf16.mxu0 0
    %768 = vmatpush1.bf16.msra.mxu0 0
    %769 = vmatprep.subr.bf16.mxu0 0
    %770 = vmatpush1.bf16.msra.mxu0 0
    %771 = vmatprep.subr.bf16.mxu0 0
    %772 = vmatpush1.bf16.msra.mxu0 0
    %773 = vmatprep.subr.bf16.mxu0 0
    %774 = vmatpush1.bf16.msra.mxu0 0
    %775 = vmatprep.subr.bf16.mxu0 0
    %776 = vmatpush1.bf16.msra.mxu0 0
    %777 = vmatprep.subr.bf16.mxu0 0
    %778 = vmatpush1.bf16.msra.mxu0 0
    %779 = vmatprep.subr.bf16.mxu0 0
    %780 = vmatpush1.bf16.msra.mxu0 0
    %781 = vmatprep.subr.bf16.mxu0 0
    %782 = vmatpush1.bf16.msra.mxu0 0
    %783 = vmatprep.subr.bf16.mxu0 0
    %784 = vmatpush1.bf16.msra.mxu0 0
    %785 = vmatprep.mubr.bf16.mxu0 0
    %786 = vmatmul.mubr.bf16.gmra.mrb[0].mxu0 %v742
    %v787 = vpop.f32.mrb[0].mxu0
    %v788 = vadd.f32 0.0, %v787
    %v789 = vpop.f32.mrb[0].mxu0
    %v790 = vpop.f32.mrb[0].mxu0
    %v791 = vadd.f32 0.0, %v790
    %v792 = vpop.f32.mrb[0].mxu0
    %793 = vmatprep.mubr.bf16.mxu0 0
    %794 = vmatmul.mubr.bf16.gmra.mrb[0].mxu0 %v745
    %v795 = vpop.f32.mrb[0].mxu0
    %v796 = vadd.f32 0.0, %v795
    %v797 = vpop.f32.mrb[0].mxu0
    %v798 = vpop.f32.mrb[0].mxu0
    %v799 = vadd.f32 0.0, %v798
    %v800 = vpop.f32.mrb[0].mxu0
    %801 = vmatprep.mubr.bf16.mxu0 0
    %802 = vmatmul.mubr.bf16.gmra.mrb[0].mxu0 %v748
    %v803 = vpop.f32.mrb[0].mxu0
    %v804 = vadd.f32 0.0, %v803
    %v805 = vpop.f32.mrb[0].mxu0
    %v806 = vpop.f32.mrb[0].mxu0
    %v807 = vadd.f32 0.0, %v806
    %v808 = vpop.f32.mrb[0].mxu0
    %809 = vmatprep.mubr.bf16.mxu0 0
    %810 = vmatmul.mubr.bf16.gmra.mrb[0].mxu0 %v751
    %v811 = vpop.f32.mrb[0].mxu0
    %v812 = vadd.f32 0.0, %v811
    %v813 = vpop.f32.mrb[0].mxu0
    %v814 = vpop.f32.mrb[0].mxu0
    %v815 = vadd.f32 0.0, %v814
    %v816 = vpop.f32.mrb[0].mxu0
    %817 = vdwg.mxu0
    %818 = vst.msk [vmem:[#allocation3] sm:$0xff] %vm546, %v788
    %819 = vst.msk [vmem:[#allocation3 + $0x8] sm:$0xff] %vm546, %v791
    %820 = vst.msk [vmem:[#allocation3 + $0x10] sm:$0xff] %vm546, %v796
    %821 = vst.msk [vmem:[#allocation3 + $0x18] sm:$0xff] %vm546, %v799
    %822 = vst.msk [vmem:[#allocation3 + $0x20] sm:$0xff] %vm546, %v804
    %823 = vst.msk [vmem:[#allocation3 + $0x28] sm:$0xff] %vm546, %v807
    %824 = vst.msk [vmem:[#allocation3 + $0x30] sm:$0xff] %vm546, %v812
    %825 = vst.msk [vmem:[#allocation3 + $0x38] sm:$0xff] %vm546, %v815
    %v826 = vld [vmem:[#allocation2] sm:$0xff]
    %v827 = vld [vmem:[#allocation2 + $0x8] sm:$0xff]
    %v828 = vld [vmem:[#allocation2 + $0x10] sm:$0xff]
    %v829 = vld [vmem:[#allocation2 + $0x18] sm:$0xff]
    %v830 = vld [vmem:[#allocation2 + $0x20] sm:$0xff]
    %v831 = vld [vmem:[#allocation2 + $0x28] sm:$0xff]
    %v832 = vld [vmem:[#allocation2 + $0x30] sm:$0xff]
    %v833 = vld [vmem:[#allocation2 + $0x38] sm:$0xff]
    %v834 = vpack.c.bf16 %v827, %v826
    %v835 = vpack.c.bf16 %v829, %v828
    %v836 = vpack.c.bf16 %v831, %v830
    %v837 = vpack.c.bf16 %v833, %v832
    %842 = vrot.lane.b32.xlu0 %v834, 120
    %v843 = vpop.permute.xlu0 %842
    %844 = vrot.lane.b32.xlu0 %v835, 120
    %v845 = vpop.permute.xlu0 %844
    %846 = vrot.lane.b32.xlu0 %v836, 120
    %v847 = vpop.permute.xlu0 %846
    %848 = vrot.lane.b32.xlu0 %v837, 120
    %v849 = vpop.permute.xlu0 %848
    %850 = vrot.lane.b32.xlu0 %v834, 88
    %v851 = vpop.permute.xlu0 %850
    %852 = vrot.lane.b32.xlu0 %v835, 88
    %v853 = vpop.permute.xlu0 %852
    %854 = vrot.lane.b32.xlu0 %v836, 88
    %v855 = vpop.permute.xlu0 %854
    %856 = vrot.lane.b32.xlu0 %v837, 88
    %v857 = vpop.permute.xlu0 %856
    %v859 = vsel %vm546, %v843, 0
    %v862 = vsel %vm546, %v845, 0
    %v865 = vsel %vm546, %v847, 0
    %v868 = vsel %vm546, %v849, 0
    %v871 = vsel %vm546, %v851, 0
    %v874 = vsel %vm546, %v853, 0
    %v877 = vsel %vm546, %v855, 0
    %v880 = vsel %vm546, %v857, 0
    %882 = vmatprep.subr.bf16.mxu0 0
    %883 = vmatpush1.bf16.xpose.msra.mxu0 %v871
    %884 = vmatprep.subr.bf16.mxu0 0
    %885 = vmatpush1.bf16.xpose.msra.mxu0 %v874
    %886 = vmatprep.subr.bf16.mxu0 0
    %887 = vmatpush1.bf16.xpose.msra.mxu0 %v877
    %888 = vmatprep.subr.bf16.mxu0 0
    %889 = vmatpush1.bf16.xpose.msra.mxu0 %v880
    %890 = vmatprep.subr.bf16.mxu0 0
    %891 = vmatpush1.bf16.xpose.msra.mxu0 0
    %892 = vmatprep.subr.bf16.mxu0 0
    %893 = vmatpush1.bf16.xpose.msra.mxu0 0
    %894 = vmatprep.subr.bf16.mxu0 0
    %895 = vmatpush1.bf16.xpose.msra.mxu0 0
    %896 = vmatprep.subr.bf16.mxu0 0
    %897 = vmatpush1.bf16.xpose.msra.mxu0 0
    %898 = vmatprep.subr.bf16.mxu0 0
    %899 = vmatpush1.bf16.xpose.msra.mxu0 0
    %900 = vmatprep.subr.bf16.mxu0 0
    %901 = vmatpush1.bf16.xpose.msra.mxu0 0
    %902 = vmatprep.subr.bf16.mxu0 0
    %903 = vmatpush1.bf16.xpose.msra.mxu0 0
    %904 = vmatprep.subr.bf16.mxu0 0
    %905 = vmatpush1.bf16.xpose.msra.mxu0 0
    %906 = vmatprep.subr.bf16.mxu0 0
    %907 = vmatpush1.bf16.xpose.msra.mxu0 0
    %908 = vmatprep.subr.bf16.mxu0 0
    %909 = vmatpush1.bf16.xpose.msra.mxu0 0
    %910 = vmatprep.subr.bf16.mxu0 0
    %911 = vmatpush1.bf16.xpose.msra.mxu0 0
    %912 = vmatprep.subr.bf16.mxu0 0
    %913 = vmatpush1.bf16.xpose.msra.mxu0 0
    %914 = vmatprep.mubr.bf16.mxu0 0
    %915 = vmatmul.mubr.bf16.gmra.mrb[0].mxu0 %v859
    %v916 = vpop.f32.mrb[0].mxu0
    %v917 = vadd.f32 0.0, %v916
    %v918 = vpop.f32.mrb[0].mxu0
    %v919 = vpop.f32.mrb[0].mxu0
    %v920 = vadd.f32 0.0, %v919
    %v921 = vpop.f32.mrb[0].mxu0
    %922 = vmatprep.mubr.bf16.mxu0 0
    %923 = vmatmul.mubr.bf16.gmra.mrb[0].mxu0 %v862
    %v924 = vpop.f32.mrb[0].mxu0
    %v925 = vadd.f32 0.0, %v924
    %v926 = vpop.f32.mrb[0].mxu0
    %v927 = vpop.f32.mrb[0].mxu0
    %v928 = vadd.f32 0.0, %v927
    %v929 = vpop.f32.mrb[0].mxu0
    %930 = vmatprep.mubr.bf16.mxu0 0
    %931 = vmatmul.mubr.bf16.gmra.mrb[0].mxu0 %v865
    %v932 = vpop.f32.mrb[0].mxu0
    %v933 = vadd.f32 0.0, %v932
    %v934 = vpop.f32.mrb[0].mxu0
    %v935 = vpop.f32.mrb[0].mxu0
    %v936 = vadd.f32 0.0, %v935
    %v937 = vpop.f32.mrb[0].mxu0
    %938 = vmatprep.mubr.bf16.mxu0 0
    %939 = vmatmul.mubr.bf16.gmra.mrb[0].mxu0 %v868
    %v940 = vpop.f32.mrb[0].mxu0
    %v941 = vadd.f32 0.0, %v940
    %v942 = vpop.f32.mrb[0].mxu0
    %v943 = vpop.f32.mrb[0].mxu0
    %v944 = vadd.f32 0.0, %v943
    %v945 = vpop.f32.mrb[0].mxu0
    %946 = vdwg.mxu0
    %v947 = vsel %vm636, %v917, -inf
    %948 = vmax.xlane.f32.xlu0 %v947
    %v949 = vpop.xlane.xlu0 %948
    %v950 = vsel %vm636, %v920, -inf
    %951 = vmax.xlane.f32.xlu0 %v950
    %v952 = vpop.xlane.xlu0 %951
    %v953 = vsel %vm636, %v925, -inf
    %954 = vmax.xlane.f32.xlu0 %v953
    %v955 = vpop.xlane.xlu0 %954
    %v956 = vsel %vm636, %v928, -inf
    %957 = vmax.xlane.f32.xlu0 %v956
    %v958 = vpop.xlane.xlu0 %957
    %v959 = vsel %vm636, %v933, -inf
    %960 = vmax.xlane.f32.xlu0 %v959
    %v961 = vpop.xlane.xlu0 %960
    %v962 = vsel %vm636, %v936, -inf
    %963 = vmax.xlane.f32.xlu0 %v962
    %v964 = vpop.xlane.xlu0 %963
    %v965 = vsel %vm636, %v941, -inf
    %966 = vmax.xlane.f32.xlu0 %v965
    %v967 = vpop.xlane.xlu0 %966
    %v968 = vsel %vm636, %v944, -inf
    %969 = vmax.xlane.f32.xlu0 %v968
    %v970 = vpop.xlane.xlu0 %969
    %v971 = vsub.f32 %v917, %v949
    %v972 = vsub.f32 %v920, %v952
    %v973 = vsub.f32 %v925, %v955
    %v974 = vsub.f32 %v928, %v958
    %v975 = vsub.f32 %v933, %v961
    %v976 = vsub.f32 %v936, %v964
    %v977 = vsub.f32 %v941, %v967
    %v978 = vsub.f32 %v944, %v970
    %v979 = vmul.f32 %v971, 1.442695
    %v980 = vpow.pop %v979
    %v981 = vmul.f32 %v972, 1.442695
    %v982 = vpow.pop %v981
    %v983 = vmul.f32 %v973, 1.442695
    %v984 = vpow.pop %v983
    %v985 = vmul.f32 %v974, 1.442695
    %v986 = vpow.pop %v985
    %v987 = vmul.f32 %v975, 1.442695
    %v988 = vpow.pop %v987
    %v989 = vmul.f32 %v976, 1.442695
    %v990 = vpow.pop %v989
    %v991 = vmul.f32 %v977, 1.442695
    %v992 = vpow.pop %v991
    %v993 = vmul.f32 %v978, 1.442695
    %v994 = vpow.pop %v993
    %v995 = vsel %vm636, %v980, 0.0
    %996 = vadd.xlane.f32.xlu0 %v995
    %v997 = vpop.xlane.xlu0 %996
    %v998 = vsel %vm636, %v982, 0.0
    %999 = vadd.xlane.f32.xlu0 %v998
    %v1000 = vpop.xlane.xlu0 %999
    %v1001 = vsel %vm636, %v984, 0.0
    %1002 = vadd.xlane.f32.xlu0 %v1001
    %v1003 = vpop.xlane.xlu0 %1002
    %v1004 = vsel %vm636, %v986, 0.0
    %1005 = vadd.xlane.f32.xlu0 %v1004
    %v1006 = vpop.xlane.xlu0 %1005
    %v1007 = vsel %vm636, %v988, 0.0
    %1008 = vadd.xlane.f32.xlu0 %v1007
    %v1009 = vpop.xlane.xlu0 %1008
    %v1010 = vsel %vm636, %v990, 0.0
    %1011 = vadd.xlane.f32.xlu0 %v1010
    %v1012 = vpop.xlane.xlu0 %1011
    %v1013 = vsel %vm636, %v992, 0.0
    %1014 = vadd.xlane.f32.xlu0 %v1013
    %v1015 = vpop.xlane.xlu0 %1014
    %v1016 = vsel %vm636, %v994, 0.0
    %1017 = vadd.xlane.f32.xlu0 %v1016
    %v1018 = vpop.xlane.xlu0 %1017
    %v1019 = vrcp.pop %v997
    %v1020 = vrcp.pop %v1000
    %v1021 = vrcp.pop %v1003
    %v1022 = vrcp.pop %v1006
    %v1023 = vrcp.pop %v1009
    %v1024 = vrcp.pop %v1012
    %v1025 = vrcp.pop %v1015
    %v1026 = vrcp.pop %v1018
    %v1027 = vmul.f32 %v980, %v1019
    %v1028 = vmul.f32 %v982, %v1020
    %v1029 = vmul.f32 %v984, %v1021
    %v1030 = vmul.f32 %v986, %v1022
    %v1031 = vmul.f32 %v988, %v1023
    %v1032 = vmul.f32 %v990, %v1024
    %v1033 = vmul.f32 %v992, %v1025
    %v1034 = vmul.f32 %v994, %v1026
    %v1035 = vpack.c.bf16 %v1028, %v1027
    %v1036 = vpack.c.bf16 %v1030, %v1029
    %v1037 = vpack.c.bf16 %v1032, %v1031
    %v1038 = vpack.c.bf16 %v1034, %v1033
    %1039 = vrot.lane.b32.xlu0 %v834, 56
    %v1040 = vpop.permute.xlu0 %1039
    %1041 = vrot.lane.b32.xlu0 %v835, 56
    %v1042 = vpop.permute.xlu0 %1041
    %1043 = vrot.lane.b32.xlu0 %v836, 56
    %v1044 = vpop.permute.xlu0 %1043
    %1045 = vrot.lane.b32.xlu0 %v837, 56
    %v1046 = vpop.permute.xlu0 %1045
    %v1052 = vsel %vm636, %v1035, 0
    %v1055 = vsel %vm636, %v1036, 0
    %v1058 = vsel %vm636, %v1037, 0
    %v1061 = vsel %vm636, %v1038, 0
    %1063 = vmatprep.subr.bf16.mxu0 0
    %1064 = vmatpush1.bf16.msra.mxu0 %v1040
    %1065 = vmatprep.subr.bf16.mxu0 0
    %1066 = vmatpush1.bf16.msra.mxu0 %v1042
    %1067 = vmatprep.subr.bf16.mxu0 0
    %1068 = vmatpush1.bf16.msra.mxu0 %v1044
    %1069 = vmatprep.subr.bf16.mxu0 0
    %1070 = vmatpush1.bf16.msra.mxu0 %v1046
    %1071 = vmatprep.subr.bf16.mxu0 0
    %1072 = vmatpush1.bf16.msra.mxu0 0
    %1073 = vmatprep.subr.bf16.mxu0 0
    %1074 = vmatpush1.bf16.msra.mxu0 0
    %1075 = vmatprep.subr.bf16.mxu0 0
    %1076 = vmatpush1.bf16.msra.mxu0 0
    %1077 = vmatprep.subr.bf16.mxu0 0
    %1078 = vmatpush1.bf16.msra.mxu0 0
    %1079 = vmatprep.subr.bf16.mxu0 0
    %1080 = vmatpush1.bf16.msra.mxu0 0
    %1081 = vmatprep.subr.bf16.mxu0 0
    %1082 = vmatpush1.bf16.msra.mxu0 0
    %1083 = vmatprep.subr.bf16.mxu0 0
    %1084 = vmatpush1.bf16.msra.mxu0 0
    %1085 = vmatprep.subr.bf16.mxu0 0
    %1086 = vmatpush1.bf16.msra.mxu0 0
    %1087 = vmatprep.subr.bf16.mxu0 0
    %1088 = vmatpush1.bf16.msra.mxu0 0
    %1089 = vmatprep.subr.bf16.mxu0 0
    %1090 = vmatpush1.bf16.msra.mxu0 0
    %1091 = vmatprep.subr.bf16.mxu0 0
    %1092 = vmatpush1.bf16.msra.mxu0 0
    %1093 = vmatprep.subr.bf16.mxu0 0
    %1094 = vmatpush1.bf16.msra.mxu0 0
    %1095 = vmatprep.mubr.bf16.mxu0 0
    %1096 = vmatmul.mubr.bf16.gmra.mrb[0].mxu0 %v1052
    %v1097 = vpop.f32.mrb[0].mxu0
    %v1098 = vadd.f32 0.0, %v1097
    %v1099 = vpop.f32.mrb[0].mxu0
    %v1100 = vpop.f32.mrb[0].mxu0
    %v1101 = vadd.f32 0.0, %v1100
    %v1102 = vpop.f32.mrb[0].mxu0
    %1103 = vmatprep.mubr.bf16.mxu0 0
    %1104 = vmatmul.mubr.bf16.gmra.mrb[0].mxu0 %v1055
    %v1105 = vpop.f32.mrb[0].mxu0
    %v1106 = vadd.f32 0.0, %v1105
    %v1107 = vpop.f32.mrb[0].mxu0
    %v1108 = vpop.f32.mrb[0].mxu0
    %v1109 = vadd.f32 0.0, %v1108
    %v1110 = vpop.f32.mrb[0].mxu0
    %1111 = vmatprep.mubr.bf16.mxu0 0
    %1112 = vmatmul.mubr.bf16.gmra.mrb[0].mxu0 %v1058
    %v1113 = vpop.f32.mrb[0].mxu0
    %v1114 = vadd.f32 0.0, %v1113
    %v1115 = vpop.f32.mrb[0].mxu0
    %v1116 = vpop.f32.mrb[0].mxu0
    %v1117 = vadd.f32 0.0, %v1116
    %v1118 = vpop.f32.mrb[0].mxu0
    %1119 = vmatprep.mubr.bf16.mxu0 0
    %1120 = vmatmul.mubr.bf16.gmra.mrb[0].mxu0 %v1061
    %v1121 = vpop.f32.mrb[0].mxu0
    %v1122 = vadd.f32 0.0, %v1121
    %v1123 = vpop.f32.mrb[0].mxu0
    %v1124 = vpop.f32.mrb[0].mxu0
    %v1125 = vadd.f32 0.0, %v1124
    %v1126 = vpop.f32.mrb[0].mxu0
    %1127 = vdwg.mxu0
    %1136 = vrot.lane.b32.xlu0 %v1098, 8
    %v1137 = vpop.permute.xlu0 %1136
    %1138 = vrot.lane.b32.xlu0 %v1101, 8
    %v1139 = vpop.permute.xlu0 %1138
    %1140 = vrot.lane.b32.xlu0 %v1106, 8
    %v1141 = vpop.permute.xlu0 %1140
    %1142 = vrot.lane.b32.xlu0 %v1109, 8
    %v1143 = vpop.permute.xlu0 %1142
    %1144 = vrot.lane.b32.xlu0 %v1114, 8
    %v1145 = vpop.permute.xlu0 %1144
    %1146 = vrot.lane.b32.xlu0 %v1117, 8
    %v1147 = vpop.permute.xlu0 %1146
    %1148 = vrot.lane.b32.xlu0 %v1122, 8
    %v1149 = vpop.permute.xlu0 %1148
    %1150 = vrot.lane.b32.xlu0 %v1125, 8
    %v1151 = vpop.permute.xlu0 %1150
    %vm1160 = vcmask 130112
    %1161 = vst.msk [vmem:[#allocation3] sm:$0xff] %vm1160, %v1137
    %1162 = vst.msk [vmem:[#allocation3 + $0x8] sm:$0xff] %vm1160, %v1139
    %1163 = vst.msk [vmem:[#allocation3 + $0x10] sm:$0xff] %vm1160, %v1141
    %1164 = vst.msk [vmem:[#allocation3 + $0x18] sm:$0xff] %vm1160, %v1143
    %1165 = vst.msk [vmem:[#allocation3 + $0x20] sm:$0xff] %vm1160, %v1145
    %1166 = vst.msk [vmem:[#allocation3 + $0x28] sm:$0xff] %vm1160, %v1147
    %1167 = vst.msk [vmem:[#allocation3 + $0x30] sm:$0xff] %vm1160, %v1149
    %1168 = vst.msk [vmem:[#allocation3 + $0x38] sm:$0xff] %vm1160, %v1151
    %v1169 = vld [vmem:[#allocation2] sm:$0xff]
    %v1170 = vld [vmem:[#allocation2 + $0x8] sm:$0xff]
    %v1171 = vld [vmem:[#allocation2 + $0x10] sm:$0xff]
    %v1172 = vld [vmem:[#allocation2 + $0x18] sm:$0xff]
    %v1173 = vld [vmem:[#allocation2 + $0x20] sm:$0xff]
    %v1174 = vld [vmem:[#allocation2 + $0x28] sm:$0xff]
    %v1175 = vld [vmem:[#allocation2 + $0x30] sm:$0xff]
    %v1176 = vld [vmem:[#allocation2 + $0x38] sm:$0xff]
    %v1177 = vpack.c.bf16 %v1170, %v1169
    %v1178 = vpack.c.bf16 %v1172, %v1171
    %v1179 = vpack.c.bf16 %v1174, %v1173
    %v1180 = vpack.c.bf16 %v1176, %v1175
    %1185 = vrot.lane.b32.xlu0 %v1177, 112
    %v1186 = vpop.permute.xlu0 %1185
    %1187 = vrot.lane.b32.xlu0 %v1178, 112
    %v1188 = vpop.permute.xlu0 %1187
    %1189 = vrot.lane.b32.xlu0 %v1179, 112
    %v1190 = vpop.permute.xlu0 %1189
    %1191 = vrot.lane.b32.xlu0 %v1180, 112
    %v1192 = vpop.permute.xlu0 %1191
    %1193 = vrot.lane.b32.xlu0 %v1177, 80
    %v1194 = vpop.permute.xlu0 %1193
    %1195 = vrot.lane.b32.xlu0 %v1178, 80
    %v1196 = vpop.permute.xlu0 %1195
    %1197 = vrot.lane.b32.xlu0 %v1179, 80
    %v1198 = vpop.permute.xlu0 %1197
    %1199 = vrot.lane.b32.xlu0 %v1180, 80
    %v1200 = vpop.permute.xlu0 %1199
    %v1202 = vsel %vm546, %v1186, 0
    %v1205 = vsel %vm546, %v1188, 0
    %v1208 = vsel %vm546, %v1190, 0
    %v1211 = vsel %vm546, %v1192, 0
    %v1214 = vsel %vm546, %v1194, 0
    %v1217 = vsel %vm546, %v1196, 0
    %v1220 = vsel %vm546, %v1198, 0
    %v1223 = vsel %vm546, %v1200, 0
    %1225 = vmatprep.subr.bf16.mxu0 0
    %1226 = vmatpush1.bf16.xpose.msra.mxu0 %v1214
    %1227 = vmatprep.subr.bf16.mxu0 0
    %1228 = vmatpush1.bf16.xpose.msra.mxu0 %v1217
    %1229 = vmatprep.subr.bf16.mxu0 0
    %1230 = vmatpush1.bf16.xpose.msra.mxu0 %v1220
    %1231 = vmatprep.subr.bf16.mxu0 0
    %1232 = vmatpush1.bf16.xpose.msra.mxu0 %v1223
    %1233 = vmatprep.subr.bf16.mxu0 0
    %1234 = vmatpush1.bf16.xpose.msra.mxu0 0
    %1235 = vmatprep.subr.bf16.mxu0 0
    %1236 = vmatpush1.bf16.xpose.msra.mxu0 0
    %1237 = vmatprep.subr.bf16.mxu0 0
    %1238 = vmatpush1.bf16.xpose.msra.mxu0 0
    %1239 = vmatprep.subr.bf16.mxu0 0
    %1240 = vmatpush1.bf16.xpose.msra.mxu0 0
    %1241 = vmatprep.subr.bf16.mxu0 0
    %1242 = vmatpush1.bf16.xpose.msra.mxu0 0
    %1243 = vmatprep.subr.bf16.mxu0 0
    %1244 = vmatpush1.bf16.xpose.msra.mxu0 0
    %1245 = vmatprep.subr.bf16.mxu0 0
    %1246 = vmatpush1.bf16.xpose.msra.mxu0 0
    %1247 = vmatprep.subr.bf16.mxu0 0
    %1248 = vmatpush1.bf16.xpose.msra.mxu0 0
    %1249 = vmatprep.subr.bf16.mxu0 0
    %1250 = vmatpush1.bf16.xpose.msra.mxu0 0
    %1251 = vmatprep.subr.bf16.mxu0 0
    %1252 = vmatpush1.bf16.xpose.msra.mxu0 0
    %1253 = vmatprep.subr.bf16.mxu0 0
    %1254 = vmatpush1.bf16.xpose.msra.mxu0 0
    %1255 = vmatprep.subr.bf16.mxu0 0
    %1256 = vmatpush1.bf16.xpose.msra.mxu0 0
    %1257 = vmatprep.mubr.bf16.mxu0 0
    %1258 = vmatmul.mubr.bf16.gmra.mrb[0].mxu0 %v1202
    %v1259 = vpop.f32.mrb[0].mxu0
    %v1260 = vadd.f32 0.0, %v1259
    %v1261 = vpop.f32.mrb[0].mxu0
    %v1262 = vpop.f32.mrb[0].mxu0
    %v1263 = vadd.f32 0.0, %v1262
    %v1264 = vpop.f32.mrb[0].mxu0
    %1265 = vmatprep.mubr.bf16.mxu0 0
    %1266 = vmatmul.mubr.bf16.gmra.mrb[0].mxu0 %v1205
    %v1267 = vpop.f32.mrb[0].mxu0
    %v1268 = vadd.f32 0.0, %v1267
    %v1269 = vpop.f32.mrb[0].mxu0
    %v1270 = vpop.f32.mrb[0].mxu0
    %v1271 = vadd.f32 0.0, %v1270
    %v1272 = vpop.f32.mrb[0].mxu0
    %1273 = vmatprep.mubr.bf16.mxu0 0
    %1274 = vmatmul.mubr.bf16.gmra.mrb[0].mxu0 %v1208
    %v1275 = vpop.f32.mrb[0].mxu0
    %v1276 = vadd.f32 0.0, %v1275
    %v1277 = vpop.f32.mrb[0].mxu0
    %v1278 = vpop.f32.mrb[0].mxu0
    %v1279 = vadd.f32 0.0, %v1278
    %v1280 = vpop.f32.mrb[0].mxu0
    %1281 = vmatprep.mubr.bf16.mxu0 0
    %1282 = vmatmul.mubr.bf16.gmra.mrb[0].mxu0 %v1211
    %v1283 = vpop.f32.mrb[0].mxu0
    %v1284 = vadd.f32 0.0, %v1283
    %v1285 = vpop.f32.mrb[0].mxu0
    %v1286 = vpop.f32.mrb[0].mxu0
    %v1287 = vadd.f32 0.0, %v1286
    %v1288 = vpop.f32.mrb[0].mxu0
    %1289 = vdwg.mxu0
    %v1290 = vsel %vm636, %v1260, -inf
    %1291 = vmax.xlane.f32.xlu0 %v1290
    %v1292 = vpop.xlane.xlu0 %1291
    %v1293 = vsel %vm636, %v1263, -inf
    %1294 = vmax.xlane.f32.xlu0 %v1293
    %v1295 = vpop.xlane.xlu0 %1294
    %v1296 = vsel %vm636, %v1268, -inf
    %1297 = vmax.xlane.f32.xlu0 %v1296
    %v1298 = vpop.xlane.xlu0 %1297
    %v1299 = vsel %vm636, %v1271, -inf
    %1300 = vmax.xlane.f32.xlu0 %v1299
    %v1301 = vpop.xlane.xlu0 %1300
    %v1302 = vsel %vm636, %v1276, -inf
    %1303 = vmax.xlane.f32.xlu0 %v1302
    %v1304 = vpop.xlane.xlu0 %1303
    %v1305 = vsel %vm636, %v1279, -inf
    %1306 = vmax.xlane.f32.xlu0 %v1305
    %v1307 = vpop.xlane.xlu0 %1306
    %v1308 = vsel %vm636, %v1284, -inf
    %1309 = vmax.xlane.f32.xlu0 %v1308
    %v1310 = vpop.xlane.xlu0 %1309
    %v1311 = vsel %vm636, %v1287, -inf
    %1312 = vmax.xlane.f32.xlu0 %v1311
    %v1313 = vpop.xlane.xlu0 %1312
    %v1314 = vsub.f32 %v1260, %v1292
    %v1315 = vsub.f32 %v1263, %v1295
    %v1316 = vsub.f32 %v1268, %v1298
    %v1317 = vsub.f32 %v1271, %v1301
    %v1318 = vsub.f32 %v1276, %v1304
    %v1319 = vsub.f32 %v1279, %v1307
    %v1320 = vsub.f32 %v1284, %v1310
    %v1321 = vsub.f32 %v1287, %v1313
    %v1322 = vmul.f32 %v1314, 1.442695
    %v1323 = vpow.pop %v1322
    %v1324 = vmul.f32 %v1315, 1.442695
    %v1325 = vpow.pop %v1324
    %v1326 = vmul.f32 %v1316, 1.442695
    %v1327 = vpow.pop %v1326
    %v1328 = vmul.f32 %v1317, 1.442695
    %v1329 = vpow.pop %v1328
    %v1330 = vmul.f32 %v1318, 1.442695
    %v1331 = vpow.pop %v1330
    %v1332 = vmul.f32 %v1319, 1.442695
    %v1333 = vpow.pop %v1332
    %v1334 = vmul.f32 %v1320, 1.442695
    %v1335 = vpow.pop %v1334
    %v1336 = vmul.f32 %v1321, 1.442695
    %v1337 = vpow.pop %v1336
    %v1338 = vsel %vm636, %v1323, 0.0
    %1339 = vadd.xlane.f32.xlu0 %v1338
    %v1340 = vpop.xlane.xlu0 %1339
    %v1341 = vsel %vm636, %v1325, 0.0
    %1342 = vadd.xlane.f32.xlu0 %v1341
    %v1343 = vpop.xlane.xlu0 %1342
    %v1344 = vsel %vm636, %v1327, 0.0
    %1345 = vadd.xlane.f32.xlu0 %v1344
    %v1346 = vpop.xlane.xlu0 %1345
    %v1347 = vsel %vm636, %v1329, 0.0
    %1348 = vadd.xlane.f32.xlu0 %v1347
    %v1349 = vpop.xlane.xlu0 %1348
    %v1350 = vsel %vm636, %v1331, 0.0
    %1351 = vadd.xlane.f32.xlu0 %v1350
    %v1352 = vpop.xlane.xlu0 %1351
    %v1353 = vsel %vm636, %v1333, 0.0
    %1354 = vadd.xlane.f32.xlu0 %v1353
    %v1355 = vpop.xlane.xlu0 %1354
    %v1356 = vsel %vm636, %v1335, 0.0
    %1357 = vadd.xlane.f32.xlu0 %v1356
    %v1358 = vpop.xlane.xlu0 %1357
    %v1359 = vsel %vm636, %v1337, 0.0
    %1360 = vadd.xlane.f32.xlu0 %v1359
    %v1361 = vpop.xlane.xlu0 %1360
    %v1362 = vrcp.pop %v1340
    %v1363 = vrcp.pop %v1343
    %v1364 = vrcp.pop %v1346
    %v1365 = vrcp.pop %v1349
    %v1366 = vrcp.pop %v1352
    %v1367 = vrcp.pop %v1355
    %v1368 = vrcp.pop %v1358
    %v1369 = vrcp.pop %v1361
    %v1370 = vmul.f32 %v1323, %v1362
    %v1371 = vmul.f32 %v1325, %v1363
    %v1372 = vmul.f32 %v1327, %v1364
    %v1373 = vmul.f32 %v1329, %v1365
    %v1374 = vmul.f32 %v1331, %v1366
    %v1375 = vmul.f32 %v1333, %v1367
    %v1376 = vmul.f32 %v1335, %v1368
    %v1377 = vmul.f32 %v1337, %v1369
    %v1378 = vpack.c.bf16 %v1371, %v1370
    %v1379 = vpack.c.bf16 %v1373, %v1372
    %v1380 = vpack.c.bf16 %v1375, %v1374
    %v1381 = vpack.c.bf16 %v1377, %v1376
    %1382 = vrot.lane.b32.xlu0 %v1177, 48
    %v1383 = vpop.permute.xlu0 %1382
    %1384 = vrot.lane.b32.xlu0 %v1178, 48
    %v1385 = vpop.permute.xlu0 %1384
    %1386 = vrot.lane.b32.xlu0 %v1179, 48
    %v1387 = vpop.permute.xlu0 %1386
    %1388 = vrot.lane.b32.xlu0 %v1180, 48
    %v1389 = vpop.permute.xlu0 %1388
    %v1395 = vsel %vm636, %v1378, 0
    %v1398 = vsel %vm636, %v1379, 0
    %v1401 = vsel %vm636, %v1380, 0
    %v1404 = vsel %vm636, %v1381, 0
    %1406 = vmatprep.subr.bf16.mxu0 0
    %1407 = vmatpush1.bf16.msra.mxu0 %v1383
    %1408 = vmatprep.subr.bf16.mxu0 0
    %1409 = vmatpush1.bf16.msra.mxu0 %v1385
    %1410 = vmatprep.subr.bf16.mxu0 0
    %1411 = vmatpush1.bf16.msra.mxu0 %v1387
    %1412 = vmatprep.subr.bf16.mxu0 0
    %1413 = vmatpush1.bf16.msra.mxu0 %v1389
    %1414 = vmatprep.subr.bf16.mxu0 0
    %1415 = vmatpush1.bf16.msra.mxu0 0
    %1416 = vmatprep.subr.bf16.mxu0 0
    %1417 = vmatpush1.bf16.msra.mxu0 0
    %1418 = vmatprep.subr.bf16.mxu0 0
    %1419 = vmatpush1.bf16.msra.mxu0 0
    %1420 = vmatprep.subr.bf16.mxu0 0
    %1421 = vmatpush1.bf16.msra.mxu0 0
    %1422 = vmatprep.subr.bf16.mxu0 0
    %1423 = vmatpush1.bf16.msra.mxu0 0
    %1424 = vmatprep.subr.bf16.mxu0 0
    %1425 = vmatpush1.bf16.msra.mxu0 0
    %1426 = vmatprep.subr.bf16.mxu0 0
    %1427 = vmatpush1.bf16.msra.mxu0 0
    %1428 = vmatprep.subr.bf16.mxu0 0
    %1429 = vmatpush1.bf16.msra.mxu0 0
    %1430 = vmatprep.subr.bf16.mxu0 0
    %1431 = vmatpush1.bf16.msra.mxu0 0
    %1432 = vmatprep.subr.bf16.mxu0 0
    %1433 = vmatpush1.bf16.msra.mxu0 0
    %1434 = vmatprep.subr.bf16.mxu0 0
    %1435 = vmatpush1.bf16.msra.mxu0 0
    %1436 = vmatprep.subr.bf16.mxu0 0
    %1437 = vmatpush1.bf16.msra.mxu0 0
    %1438 = vmatprep.mubr.bf16.mxu0 0
    %1439 = vmatmul.mubr.bf16.gmra.mrb[0].mxu0 %v1395
    %v1440 = vpop.f32.mrb[0].mxu0
    %v1441 = vadd.f32 0.0, %v1440
    %v1442 = vpop.f32.mrb[0].mxu0
    %v1443 = vpop.f32.mrb[0].mxu0
    %v1444 = vadd.f32 0.0, %v1443
    %v1445 = vpop.f32.mrb[0].mxu0
    %1446 = vmatprep.mubr.bf16.mxu0 0
    %1447 = vmatmul.mubr.bf16.gmra.mrb[0].mxu0 %v1398
    %v1448 = vpop.f32.mrb[0].mxu0
    %v1449 = vadd.f32 0.0, %v1448
    %v1450 = vpop.f32.mrb[0].mxu0
    %v1451 = vpop.f32.mrb[0].mxu0
    %v1452 = vadd.f32 0.0, %v1451
    %v1453 = vpop.f32.mrb[0].mxu0
    %1454 = vmatprep.mubr.bf16.mxu0 0
    %1455 = vmatmul.mubr.bf16.gmra.mrb[0].mxu0 %v1401
    %v1456 = vpop.f32.mrb[0].mxu0
    %v1457 = vadd.f32 0.0, %v1456
    %v1458 = vpop.f32.mrb[0].mxu0
    %v1459 = vpop.f32.mrb[0].mxu0
    %v1460 = vadd.f32 0.0, %v1459
    %v1461 = vpop.f32.mrb[0].mxu0
    %1462 = vmatprep.mubr.bf16.mxu0 0
    %1463 = vmatmul.mubr.bf16.gmra.mrb[0].mxu0 %v1404
    %v1464 = vpop.f32.mrb[0].mxu0
    %v1465 = vadd.f32 0.0, %v1464
    %v1466 = vpop.f32.mrb[0].mxu0
    %v1467 = vpop.f32.mrb[0].mxu0
    %v1468 = vadd.f32 0.0, %v1467
    %v1469 = vpop.f32.mrb[0].mxu0
    %1470 = vdwg.mxu0
    %1479 = vrot.lane.b32.xlu0 %v1441, 16
    %v1480 = vpop.permute.xlu0 %1479
    %1481 = vrot.lane.b32.xlu0 %v1444, 16
    %v1482 = vpop.permute.xlu0 %1481
    %1483 = vrot.lane.b32.xlu0 %v1449, 16
    %v1484 = vpop.permute.xlu0 %1483
    %1485 = vrot.lane.b32.xlu0 %v1452, 16
    %v1486 = vpop.permute.xlu0 %1485
    %1487 = vrot.lane.b32.xlu0 %v1457, 16
    %v1488 = vpop.permute.xlu0 %1487
    %1489 = vrot.lane.b32.xlu0 %v1460, 16
    %v1490 = vpop.permute.xlu0 %1489
    %1491 = vrot.lane.b32.xlu0 %v1465, 16
    %v1492 = vpop.permute.xlu0 %1491
    %1493 = vrot.lane.b32.xlu0 %v1468, 16
    %v1494 = vpop.permute.xlu0 %1493
    %vm1503 = vcmask 195712
    %1504 = vst.msk [vmem:[#allocation3] sm:$0xff] %vm1503, %v1480
    %1505 = vst.msk [vmem:[#allocation3 + $0x8] sm:$0xff] %vm1503, %v1482
    %1506 = vst.msk [vmem:[#allocation3 + $0x10] sm:$0xff] %vm1503, %v1484
    %1507 = vst.msk [vmem:[#allocation3 + $0x18] sm:$0xff] %vm1503, %v1486
    %1508 = vst.msk [vmem:[#allocation3 + $0x20] sm:$0xff] %vm1503, %v1488
    %1509 = vst.msk [vmem:[#allocation3 + $0x28] sm:$0xff] %vm1503, %v1490
    %1510 = vst.msk [vmem:[#allocation3 + $0x30] sm:$0xff] %vm1503, %v1492
    %1511 = vst.msk [vmem:[#allocation3 + $0x38] sm:$0xff] %vm1503, %v1494
    %v1512 = vld [vmem:[#allocation2] sm:$0xff]
    %v1513 = vld [vmem:[#allocation2 + $0x8] sm:$0xff]
    %v1514 = vld [vmem:[#allocation2 + $0x10] sm:$0xff]
    %v1515 = vld [vmem:[#allocation2 + $0x18] sm:$0xff]
    %v1516 = vld [vmem:[#allocation2 + $0x20] sm:$0xff]
    %v1517 = vld [vmem:[#allocation2 + $0x28] sm:$0xff]
    %v1518 = vld [vmem:[#allocation2 + $0x30] sm:$0xff]
    %v1519 = vld [vmem:[#allocation2 + $0x38] sm:$0xff]
    %v1520 = vpack.c.bf16 %v1513, %v1512
    %v1521 = vpack.c.bf16 %v1515, %v1514
    %v1522 = vpack.c.bf16 %v1517, %v1516
    %v1523 = vpack.c.bf16 %v1519, %v1518
    %1528 = vrot.lane.b32.xlu0 %v1520, 104
    %v1529 = vpop.permute.xlu0 %1528
    %1530 = vrot.lane.b32.xlu0 %v1521, 104
    %v1531 = vpop.permute.xlu0 %1530
    %1532 = vrot.lane.b32.xlu0 %v1522, 104
    %v1533 = vpop.permute.xlu0 %1532
    %1534 = vrot.lane.b32.xlu0 %v1523, 104
    %v1535 = vpop.permute.xlu0 %1534
    %1536 = vrot.lane.b32.xlu0 %v1520, 72
    %v1537 = vpop.permute.xlu0 %1536
    %1538 = vrot.lane.b32.xlu0 %v1521, 72
    %v1539 = vpop.permute.xlu0 %1538
    %1540 = vrot.lane.b32.xlu0 %v1522, 72
    %v1541 = vpop.permute.xlu0 %1540
    %1542 = vrot.lane.b32.xlu0 %v1523, 72
    %v1543 = vpop.permute.xlu0 %1542
    %v1545 = vsel %vm546, %v1529, 0
    %v1548 = vsel %vm546, %v1531, 0
    %v1551 = vsel %vm546, %v1533, 0
    %v1554 = vsel %vm546, %v1535, 0
    %v1557 = vsel %vm546, %v1537, 0
    %v1560 = vsel %vm546, %v1539, 0
    %v1563 = vsel %vm546, %v1541, 0
    %v1566 = vsel %vm546, %v1543, 0
    %1568 = vmatprep.subr.bf16.mxu0 0
    %1569 = vmatpush1.bf16.xpose.msra.mxu0 %v1557
    %1570 = vmatprep.subr.bf16.mxu0 0
    %1571 = vmatpush1.bf16.xpose.msra.mxu0 %v1560
    %1572 = vmatprep.subr.bf16.mxu0 0
    %1573 = vmatpush1.bf16.xpose.msra.mxu0 %v1563
    %1574 = vmatprep.subr.bf16.mxu0 0
    %1575 = vmatpush1.bf16.xpose.msra.mxu0 %v1566
    %1576 = vmatprep.subr.bf16.mxu0 0
    %1577 = vmatpush1.bf16.xpose.msra.mxu0 0
    %1578 = vmatprep.subr.bf16.mxu0 0
    %1579 = vmatpush1.bf16.xpose.msra.mxu0 0
    %1580 = vmatprep.subr.bf16.mxu0 0
    %1581 = vmatpush1.bf16.xpose.msra.mxu0 0
    %1582 = vmatprep.subr.bf16.mxu0 0
    %1583 = vmatpush1.bf16.xpose.msra.mxu0 0
    %1584 = vmatprep.subr.bf16.mxu0 0
    %1585 = vmatpush1.bf16.xpose.msra.mxu0 0
    %1586 = vmatprep.subr.bf16.mxu0 0
    %1587 = vmatpush1.bf16.xpose.msra.mxu0 0
    %1588 = vmatprep.subr.bf16.mxu0 0
    %1589 = vmatpush1.bf16.xpose.msra.mxu0 0
    %1590 = vmatprep.subr.bf16.mxu0 0
    %1591 = vmatpush1.bf16.xpose.msra.mxu0 0
    %1592 = vmatprep.subr.bf16.mxu0 0
    %1593 = vmatpush1.bf16.xpose.msra.mxu0 0
    %1594 = vmatprep.subr.bf16.mxu0 0
    %1595 = vmatpush1.bf16.xpose.msra.mxu0 0
    %1596 = vmatprep.subr.bf16.mxu0 0
    %1597 = vmatpush1.bf16.xpose.msra.mxu0 0
    %1598 = vmatprep.subr.bf16.mxu0 0
    %1599 = vmatpush1.bf16.xpose.msra.mxu0 0
    %1600 = vmatprep.mubr.bf16.mxu0 0
    %1601 = vmatmul.mubr.bf16.gmra.mrb[0].mxu0 %v1545
    %v1602 = vpop.f32.mrb[0].mxu0
    %v1603 = vadd.f32 0.0, %v1602
    %v1604 = vpop.f32.mrb[0].mxu0
    %v1605 = vpop.f32.mrb[0].mxu0
    %v1606 = vadd.f32 0.0, %v1605
    %v1607 = vpop.f32.mrb[0].mxu0
    %1608 = vmatprep.mubr.bf16.mxu0 0
    %1609 = vmatmul.mubr.bf16.gmra.mrb[0].mxu0 %v1548
    %v1610 = vpop.f32.mrb[0].mxu0
    %v1611 = vadd.f32 0.0, %v1610
    %v1612 = vpop.f32.mrb[0].mxu0
    %v1613 = vpop.f32.mrb[0].mxu0
    %v1614 = vadd.f32 0.0, %v1613
    %v1615 = vpop.f32.mrb[0].mxu0
    %1616 = vmatprep.mubr.bf16.mxu0 0
    %1617 = vmatmul.mubr.bf16.gmra.mrb[0].mxu0 %v1551
    %v1618 = vpop.f32.mrb[0].mxu0
    %v1619 = vadd.f32 0.0, %v1618
    %v1620 = vpop.f32.mrb[0].mxu0
    %v1621 = vpop.f32.mrb[0].mxu0
    %v1622 = vadd.f32 0.0, %v1621
    %v1623 = vpop.f32.mrb[0].mxu0
    %1624 = vmatprep.mubr.bf16.mxu0 0
    %1625 = vmatmul.mubr.bf16.gmra.mrb[0].mxu0 %v1554
    %v1626 = vpop.f32.mrb[0].mxu0
    %v1627 = vadd.f32 0.0, %v1626
    %v1628 = vpop.f32.mrb[0].mxu0
    %v1629 = vpop.f32.mrb[0].mxu0
    %v1630 = vadd.f32 0.0, %v1629
    %v1631 = vpop.f32.mrb[0].mxu0
    %1632 = vdwg.mxu0
    %v1633 = vsel %vm636, %v1603, -inf
    %1634 = vmax.xlane.f32.xlu0 %v1633
    %v1635 = vpop.xlane.xlu0 %1634
    %v1636 = vsel %vm636, %v1606, -inf
    %1637 = vmax.xlane.f32.xlu0 %v1636
    %v1638 = vpop.xlane.xlu0 %1637
    %v1639 = vsel %vm636, %v1611, -inf
    %1640 = vmax.xlane.f32.xlu0 %v1639
    %v1641 = vpop.xlane.xlu0 %1640
    %v1642 = vsel %vm636, %v1614, -inf
    %1643 = vmax.xlane.f32.xlu0 %v1642
    %v1644 = vpop.xlane.xlu0 %1643
    %v1645 = vsel %vm636, %v1619, -inf
    %1646 = vmax.xlane.f32.xlu0 %v1645
    %v1647 = vpop.xlane.xlu0 %1646
    %v1648 = vsel %vm636, %v1622, -inf
    %1649 = vmax.xlane.f32.xlu0 %v1648
    %v1650 = vpop.xlane.xlu0 %1649
    %v1651 = vsel %vm636, %v1627, -inf
    %1652 = vmax.xlane.f32.xlu0 %v1651
    %v1653 = vpop.xlane.xlu0 %1652
    %v1654 = vsel %vm636, %v1630, -inf
    %1655 = vmax.xlane.f32.xlu0 %v1654
    %v1656 = vpop.xlane.xlu0 %1655
    %v1657 = vsub.f32 %v1603, %v1635
    %v1658 = vsub.f32 %v1606, %v1638
    %v1659 = vsub.f32 %v1611, %v1641
    %v1660 = vsub.f32 %v1614, %v1644
    %v1661 = vsub.f32 %v1619, %v1647
    %v1662 = vsub.f32 %v1622, %v1650
    %v1663 = vsub.f32 %v1627, %v1653
    %v1664 = vsub.f32 %v1630, %v1656
    %v1665 = vmul.f32 %v1657, 1.442695
    %v1666 = vpow.pop %v1665
    %v1667 = vmul.f32 %v1658, 1.442695
    %v1668 = vpow.pop %v1667
    %v1669 = vmul.f32 %v1659, 1.442695
    %v1670 = vpow.pop %v1669
    %v1671 = vmul.f32 %v1660, 1.442695
    %v1672 = vpow.pop %v1671
    %v1673 = vmul.f32 %v1661, 1.442695
    %v1674 = vpow.pop %v1673
    %v1675 = vmul.f32 %v1662, 1.442695
    %v1676 = vpow.pop %v1675
    %v1677 = vmul.f32 %v1663, 1.442695
    %v1678 = vpow.pop %v1677
    %v1679 = vmul.f32 %v1664, 1.442695
    %v1680 = vpow.pop %v1679
    %v1681 = vsel %vm636, %v1666, 0.0
    %1682 = vadd.xlane.f32.xlu0 %v1681
    %v1683 = vpop.xlane.xlu0 %1682
    %v1684 = vsel %vm636, %v1668, 0.0
    %1685 = vadd.xlane.f32.xlu0 %v1684
    %v1686 = vpop.xlane.xlu0 %1685
    %v1687 = vsel %vm636, %v1670, 0.0
    %1688 = vadd.xlane.f32.xlu0 %v1687
    %v1689 = vpop.xlane.xlu0 %1688
    %v1690 = vsel %vm636, %v1672, 0.0
    %1691 = vadd.xlane.f32.xlu0 %v1690
    %v1692 = vpop.xlane.xlu0 %1691
    %v1693 = vsel %vm636, %v1674, 0.0
    %1694 = vadd.xlane.f32.xlu0 %v1693
    %v1695 = vpop.xlane.xlu0 %1694
    %v1696 = vsel %vm636, %v1676, 0.0
    %1697 = vadd.xlane.f32.xlu0 %v1696
    %v1698 = vpop.xlane.xlu0 %1697
    %v1699 = vsel %vm636, %v1678, 0.0
    %1700 = vadd.xlane.f32.xlu0 %v1699
    %v1701 = vpop.xlane.xlu0 %1700
    %v1702 = vsel %vm636, %v1680, 0.0
    %1703 = vadd.xlane.f32.xlu0 %v1702
    %v1704 = vpop.xlane.xlu0 %1703
    %v1705 = vrcp.pop %v1683
    %v1706 = vrcp.pop %v1686
    %v1707 = vrcp.pop %v1689
    %v1708 = vrcp.pop %v1692
    %v1709 = vrcp.pop %v1695
    %v1710 = vrcp.pop %v1698
    %v1711 = vrcp.pop %v1701
    %v1712 = vrcp.pop %v1704
    %v1713 = vmul.f32 %v1666, %v1705
    %v1714 = vmul.f32 %v1668, %v1706
    %v1715 = vmul.f32 %v1670, %v1707
    %v1716 = vmul.f32 %v1672, %v1708
    %v1717 = vmul.f32 %v1674, %v1709
    %v1718 = vmul.f32 %v1676, %v1710
    %v1719 = vmul.f32 %v1678, %v1711
    %v1720 = vmul.f32 %v1680, %v1712
    %v1721 = vpack.c.bf16 %v1714, %v1713
    %v1722 = vpack.c.bf16 %v1716, %v1715
    %v1723 = vpack.c.bf16 %v1718, %v1717
    %v1724 = vpack.c.bf16 %v1720, %v1719
    %1725 = vrot.lane.b32.xlu0 %v1520, 40
    %v1726 = vpop.permute.xlu0 %1725
    %1727 = vrot.lane.b32.xlu0 %v1521, 40
    %v1728 = vpop.permute.xlu0 %1727
    %1729 = vrot.lane.b32.xlu0 %v1522, 40
    %v1730 = vpop.permute.xlu0 %1729
    %1731 = vrot.lane.b32.xlu0 %v1523, 40
    %v1732 = vpop.permute.xlu0 %1731
    %v1738 = vsel %vm636, %v1721, 0
    %v1741 = vsel %vm636, %v1722, 0
    %v1744 = vsel %vm636, %v1723, 0
    %v1747 = vsel %vm636, %v1724, 0
    %1749 = vmatprep.subr.bf16.mxu0 0
    %1750 = vmatpush1.bf16.msra.mxu0 %v1726
    %1751 = vmatprep.subr.bf16.mxu0 0
    %1752 = vmatpush1.bf16.msra.mxu0 %v1728
    %1753 = vmatprep.subr.bf16.mxu0 0
    %1754 = vmatpush1.bf16.msra.mxu0 %v1730
    %1755 = vmatprep.subr.bf16.mxu0 0
    %1756 = vmatpush1.bf16.msra.mxu0 %v1732
    %1757 = vmatprep.subr.bf16.mxu0 0
    %1758 = vmatpush1.bf16.msra.mxu0 0
    %1759 = vmatprep.subr.bf16.mxu0 0
    %1760 = vmatpush1.bf16.msra.mxu0 0
    %1761 = vmatprep.subr.bf16.mxu0 0
    %1762 = vmatpush1.bf16.msra.mxu0 0
    %1763 = vmatprep.subr.bf16.mxu0 0
    %1764 = vmatpush1.bf16.msra.mxu0 0
    %1765 = vmatprep.subr.bf16.mxu0 0
    %1766 = vmatpush1.bf16.msra.mxu0 0
    %1767 = vmatprep.subr.bf16.mxu0 0
    %1768 = vmatpush1.bf16.msra.mxu0 0
    %1769 = vmatprep.subr.bf16.mxu0 0
    %1770 = vmatpush1.bf16.msra.mxu0 0
    %1771 = vmatprep.subr.bf16.mxu0 0
    %1772 = vmatpush1.bf16.msra.mxu0 0
    %1773 = vmatprep.subr.bf16.mxu0 0
    %1774 = vmatpush1.bf16.msra.mxu0 0
    %1775 = vmatprep.subr.bf16.mxu0 0
    %1776 = vmatpush1.bf16.msra.mxu0 0
    %1777 = vmatprep.subr.bf16.mxu0 0
    %1778 = vmatpush1.bf16.msra.mxu0 0
    %1779 = vmatprep.subr.bf16.mxu0 0
    %1780 = vmatpush1.bf16.msra.mxu0 0
    %1781 = vmatprep.mubr.bf16.mxu0 0
    %1782 = vmatmul.mubr.bf16.gmra.mrb[0].mxu0 %v1738
    %v1783 = vpop.f32.mrb[0].mxu0
    %v1784 = vadd.f32 0.0, %v1783
    %v1785 = vpop.f32.mrb[0].mxu0
    %v1786 = vpop.f32.mrb[0].mxu0
    %v1787 = vadd.f32 0.0, %v1786
    %v1788 = vpop.f32.mrb[0].mxu0
    %1789 = vmatprep.mubr.bf16.mxu0 0
    %1790 = vmatmul.mubr.bf16.gmra.mrb[0].mxu0 %v1741
    %v1791 = vpop.f32.mrb[0].mxu0
    %v1792 = vadd.f32 0.0, %v1791
    %v1793 = vpop.f32.mrb[0].mxu0
    %v1794 = vpop.f32.mrb[0].mxu0
    %v1795 = vadd.f32 0.0, %v1794
    %v1796 = vpop.f32.mrb[0].mxu0
    %1797 = vmatprep.mubr.bf16.mxu0 0
    %1798 = vmatmul.mubr.bf16.gmra.mrb[0].mxu0 %v1744
    %v1799 = vpop.f32.mrb[0].mxu0
    %v1800 = vadd.f32 0.0, %v1799
    %v1801 = vpop.f32.mrb[0].mxu0
    %v1802 = vpop.f32.mrb[0].mxu0
    %v1803 = vadd.f32 0.0, %v1802
    %v1804 = vpop.f32.mrb[0].mxu0
    %1805 = vmatprep.mubr.bf16.mxu0 0
    %1806 = vmatmul.mubr.bf16.gmra.mrb[0].mxu0 %v1747
    %v1807 = vpop.f32.mrb[0].mxu0
    %v1808 = vadd.f32 0.0, %v1807
    %v1809 = vpop.f32.mrb[0].mxu0
    %v1810 = vpop.f32.mrb[0].mxu0
    %v1811 = vadd.f32 0.0, %v1810
    %v1812 = vpop.f32.mrb[0].mxu0
    %1813 = vdwg.mxu0
    %1822 = vrot.lane.b32.xlu0 %v1784, 24
    %v1823 = vpop.permute.xlu0 %1822
    %1824 = vrot.lane.b32.xlu0 %v1787, 24
    %v1825 = vpop.permute.xlu0 %1824
    %1826 = vrot.lane.b32.xlu0 %v1792, 24
    %v1827 = vpop.permute.xlu0 %1826
    %1828 = vrot.lane.b32.xlu0 %v1795, 24
    %v1829 = vpop.permute.xlu0 %1828
    %1830 = vrot.lane.b32.xlu0 %v1800, 24
    %v1831 = vpop.permute.xlu0 %1830
    %1832 = vrot.lane.b32.xlu0 %v1803, 24
    %v1833 = vpop.permute.xlu0 %1832
    %1834 = vrot.lane.b32.xlu0 %v1808, 24
    %v1835 = vpop.permute.xlu0 %1834
    %1836 = vrot.lane.b32.xlu0 %v1811, 24
    %v1837 = vpop.permute.xlu0 %1836
    %vm1846 = vcmask 261312
    %1847 = vst.msk [vmem:[#allocation3] sm:$0xff] %vm1846, %v1823
    %1848 = vst.msk [vmem:[#allocation3 + $0x8] sm:$0xff] %vm1846, %v1825
    %1849 = vst.msk [vmem:[#allocation3 + $0x10] sm:$0xff] %vm1846, %v1827
    %1850 = vst.msk [vmem:[#allocation3 + $0x18] sm:$0xff] %vm1846, %v1829
    %1851 = vst.msk [vmem:[#allocation3 + $0x20] sm:$0xff] %vm1846, %v1831
    %1852 = vst.msk [vmem:[#allocation3 + $0x28] sm:$0xff] %vm1846, %v1833
    %1853 = vst.msk [vmem:[#allocation3 + $0x30] sm:$0xff] %vm1846, %v1835
    %1854 = vst.msk [vmem:[#allocation3 + $0x38] sm:$0xff] %vm1846, %v1837
    %v1855 = vld [vmem:[#allocation2 + $0x40] sm:$0xff]
    %v1856 = vld [vmem:[#allocation2 + $0x48] sm:$0xff]
    %v1857 = vld [vmem:[#allocation2 + $0x50] sm:$0xff]
    %v1858 = vld [vmem:[#allocation2 + $0x58] sm:$0xff]
    %v1859 = vld [vmem:[#allocation2 + $0x60] sm:$0xff]
    %v1860 = vld [vmem:[#allocation2 + $0x68] sm:$0xff]
    %v1861 = vld [vmem:[#allocation2 + $0x70] sm:$0xff]
    %v1862 = vld [vmem:[#allocation2 + $0x78] sm:$0xff]
    %v1863 = vpack.c.bf16 %v1856, %v1855
    %v1864 = vpack.c.bf16 %v1858, %v1857
    %v1865 = vpack.c.bf16 %v1860, %v1859
    %v1866 = vpack.c.bf16 %v1862, %v1861
    %1871 = vrot.lane.b32.xlu0 %v1863, 96
    %v1872 = vpop.permute.xlu0 %1871
    %1873 = vrot.lane.b32.xlu0 %v1864, 96
    %v1874 = vpop.permute.xlu0 %1873
    %1875 = vrot.lane.b32.xlu0 %v1865, 96
    %v1876 = vpop.permute.xlu0 %1875
    %1877 = vrot.lane.b32.xlu0 %v1866, 96
    %v1878 = vpop.permute.xlu0 %1877
    %v1880 = vsel %vm546, %v1863, 0
    %v1883 = vsel %vm546, %v1864, 0
    %v1886 = vsel %vm546, %v1865, 0
    %v1889 = vsel %vm546, %v1866, 0
    %v1892 = vsel %vm546, %v1872, 0
    %v1895 = vsel %vm546, %v1874, 0
    %v1898 = vsel %vm546, %v1876, 0
    %v1901 = vsel %vm546, %v1878, 0
    %1903 = vmatprep.subr.bf16.mxu0 0
    %1904 = vmatpush1.bf16.xpose.msra.mxu0 %v1892
    %1905 = vmatprep.subr.bf16.mxu0 0
    %1906 = vmatpush1.bf16.xpose.msra.mxu0 %v1895
    %1907 = vmatprep.subr.bf16.mxu0 0
    %1908 = vmatpush1.bf16.xpose.msra.mxu0 %v1898
    %1909 = vmatprep.subr.bf16.mxu0 0
    %1910 = vmatpush1.bf16.xpose.msra.mxu0 %v1901
    %1911 = vmatprep.subr.bf16.mxu0 0
    %1912 = vmatpush1.bf16.xpose.msra.mxu0 0
    %1913 = vmatprep.subr.bf16.mxu0 0
    %1914 = vmatpush1.bf16.xpose.msra.mxu0 0
    %1915 = vmatprep.subr.bf16.mxu0 0
    %1916 = vmatpush1.bf16.xpose.msra.mxu0 0
    %1917 = vmatprep.subr.bf16.mxu0 0
    %1918 = vmatpush1.bf16.xpose.msra.mxu0 0
    %1919 = vmatprep.subr.bf16.mxu0 0
    %1920 = vmatpush1.bf16.xpose.msra.mxu0 0
    %1921 = vmatprep.subr.bf16.mxu0 0
    %1922 = vmatpush1.bf16.xpose.msra.mxu0 0
    %1923 = vmatprep.subr.bf16.mxu0 0
    %1924 = vmatpush1.bf16.xpose.msra.mxu0 0
    %1925 = vmatprep.subr.bf16.mxu0 0
    %1926 = vmatpush1.bf16.xpose.msra.mxu0 0
    %1927 = vmatprep.subr.bf16.mxu0 0
    %1928 = vmatpush1.bf16.xpose.msra.mxu0 0
    %1929 = vmatprep.subr.bf16.mxu0 0
    %1930 = vmatpush1.bf16.xpose.msra.mxu0 0
    %1931 = vmatprep.subr.bf16.mxu0 0
    %1932 = vmatpush1.bf16.xpose.msra.mxu0 0
    %1933 = vmatprep.subr.bf16.mxu0 0
    %1934 = vmatpush1.bf16.xpose.msra.mxu0 0
    %1935 = vmatprep.mubr.bf16.mxu0 0
    %1936 = vmatmul.mubr.bf16.gmra.mrb[0].mxu0 %v1880
    %v1937 = vpop.f32.mrb[0].mxu0
    %v1938 = vadd.f32 0.0, %v1937
    %v1939 = vpop.f32.mrb[0].mxu0
    %v1940 = vpop.f32.mrb[0].mxu0
    %v1941 = vadd.f32 0.0, %v1940
    %v1942 = vpop.f32.mrb[0].mxu0
    %1943 = vmatprep.mubr.bf16.mxu0 0
    %1944 = vmatmul.mubr.bf16.gmra.mrb[0].mxu0 %v1883
    %v1945 = vpop.f32.mrb[0].mxu0
    %v1946 = vadd.f32 0.0, %v1945
    %v1947 = vpop.f32.mrb[0].mxu0
    %v1948 = vpop.f32.mrb[0].mxu0
    %v1949 = vadd.f32 0.0, %v1948
    %v1950 = vpop.f32.mrb[0].mxu0
    %1951 = vmatprep.mubr.bf16.mxu0 0
    %1952 = vmatmul.mubr.bf16.gmra.mrb[0].mxu0 %v1886
    %v1953 = vpop.f32.mrb[0].mxu0
    %v1954 = vadd.f32 0.0, %v1953
    %v1955 = vpop.f32.mrb[0].mxu0
    %v1956 = vpop.f32.mrb[0].mxu0
    %v1957 = vadd.f32 0.0, %v1956
    %v1958 = vpop.f32.mrb[0].mxu0
    %1959 = vmatprep.mubr.bf16.mxu0 0
    %1960 = vmatmul.mubr.bf16.gmra.mrb[0].mxu0 %v1889
    %v1961 = vpop.f32.mrb[0].mxu0
    %v1962 = vadd.f32 0.0, %v1961
    %v1963 = vpop.f32.mrb[0].mxu0
    %v1964 = vpop.f32.mrb[0].mxu0
    %v1965 = vadd.f32 0.0, %v1964
    %v1966 = vpop.f32.mrb[0].mxu0
    %1967 = vdwg.mxu0
    %v1968 = vsel %vm636, %v1938, -inf
    %1969 = vmax.xlane.f32.xlu0 %v1968
    %v1970 = vpop.xlane.xlu0 %1969
    %v1971 = vsel %vm636, %v1941, -inf
    %1972 = vmax.xlane.f32.xlu0 %v1971
    %v1973 = vpop.xlane.xlu0 %1972
    %v1974 = vsel %vm636, %v1946, -inf
    %1975 = vmax.xlane.f32.xlu0 %v1974
    %v1976 = vpop.xlane.xlu0 %1975
    %v1977 = vsel %vm636, %v1949, -inf
    %1978 = vmax.xlane.f32.xlu0 %v1977
    %v1979 = vpop.xlane.xlu0 %1978
    %v1980 = vsel %vm636, %v1954, -inf
    %1981 = vmax.xlane.f32.xlu0 %v1980
    %v1982 = vpop.xlane.xlu0 %1981
    %v1983 = vsel %vm636, %v1957, -inf
    %1984 = vmax.xlane.f32.xlu0 %v1983
    %v1985 = vpop.xlane.xlu0 %1984
    %v1986 = vsel %vm636, %v1962, -inf
    %1987 = vmax.xlane.f32.xlu0 %v1986
    %v1988 = vpop.xlane.xlu0 %1987
    %v1989 = vsel %vm636, %v1965, -inf
    %1990 = vmax.xlane.f32.xlu0 %v1989
    %v1991 = vpop.xlane.xlu0 %1990
    %v1992 = vsub.f32 %v1938, %v1970
    %v1993 = vsub.f32 %v1941, %v1973
    %v1994 = vsub.f32 %v1946, %v1976
    %v1995 = vsub.f32 %v1949, %v1979
    %v1996 = vsub.f32 %v1954, %v1982
    %v1997 = vsub.f32 %v1957, %v1985
    %v1998 = vsub.f32 %v1962, %v1988
    %v1999 = vsub.f32 %v1965, %v1991
    %v2000 = vmul.f32 %v1992, 1.442695
    %v2001 = vpow.pop %v2000
    %v2002 = vmul.f32 %v1993, 1.442695
    %v2003 = vpow.pop %v2002
    %v2004 = vmul.f32 %v1994, 1.442695
    %v2005 = vpow.pop %v2004
    %v2006 = vmul.f32 %v1995, 1.442695
    %v2007 = vpow.pop %v2006
    %v2008 = vmul.f32 %v1996, 1.442695
    %v2009 = vpow.pop %v2008
    %v2010 = vmul.f32 %v1997, 1.442695
    %v2011 = vpow.pop %v2010
    %v2012 = vmul.f32 %v1998, 1.442695
    %v2013 = vpow.pop %v2012
    %v2014 = vmul.f32 %v1999, 1.442695
    %v2015 = vpow.pop %v2014
    %v2016 = vsel %vm636, %v2001, 0.0
    %2017 = vadd.xlane.f32.xlu0 %v2016
    %v2018 = vpop.xlane.xlu0 %2017
    %v2019 = vsel %vm636, %v2003, 0.0
    %2020 = vadd.xlane.f32.xlu0 %v2019
    %v2021 = vpop.xlane.xlu0 %2020
    %v2022 = vsel %vm636, %v2005, 0.0
    %2023 = vadd.xlane.f32.xlu0 %v2022
    %v2024 = vpop.xlane.xlu0 %2023
    %v2025 = vsel %vm636, %v2007, 0.0
    %2026 = vadd.xlane.f32.xlu0 %v2025
    %v2027 = vpop.xlane.xlu0 %2026
    %v2028 = vsel %vm636, %v2009, 0.0
    %2029 = vadd.xlane.f32.xlu0 %v2028
    %v2030 = vpop.xlane.xlu0 %2029
    %v2031 = vsel %vm636, %v2011, 0.0
    %2032 = vadd.xlane.f32.xlu0 %v2031
    %v2033 = vpop.xlane.xlu0 %2032
    %v2034 = vsel %vm636, %v2013, 0.0
    %2035 = vadd.xlane.f32.xlu0 %v2034
    %v2036 = vpop.xlane.xlu0 %2035
    %v2037 = vsel %vm636, %v2015, 0.0
    %2038 = vadd.xlane.f32.xlu0 %v2037
    %v2039 = vpop.xlane.xlu0 %2038
    %v2040 = vrcp.pop %v2018
    %v2041 = vrcp.pop %v2021
    %v2042 = vrcp.pop %v2024
    %v2043 = vrcp.pop %v2027
    %v2044 = vrcp.pop %v2030
    %v2045 = vrcp.pop %v2033
    %v2046 = vrcp.pop %v2036
    %v2047 = vrcp.pop %v2039
    %v2048 = vmul.f32 %v2001, %v2040
    %v2049 = vmul.f32 %v2003, %v2041
    %v2050 = vmul.f32 %v2005, %v2042
    %v2051 = vmul.f32 %v2007, %v2043
    %v2052 = vmul.f32 %v2009, %v2044
    %v2053 = vmul.f32 %v2011, %v2045
    %v2054 = vmul.f32 %v2013, %v2046
    %v2055 = vmul.f32 %v2015, %v2047
    %v2056 = vpack.c.bf16 %v2049, %v2048
    %v2057 = vpack.c.bf16 %v2051, %v2050
    %v2058 = vpack.c.bf16 %v2053, %v2052
    %v2059 = vpack.c.bf16 %v2055, %v2054
    %2060 = vrot.lane.b32.xlu0 %v1863, 64
    %v2061 = vpop.permute.xlu0 %2060
    %2062 = vrot.lane.b32.xlu0 %v1864, 64
    %v2063 = vpop.permute.xlu0 %2062
    %2064 = vrot.lane.b32.xlu0 %v1865, 64
    %v2065 = vpop.permute.xlu0 %2064
    %2066 = vrot.lane.b32.xlu0 %v1866, 64
    %v2067 = vpop.permute.xlu0 %2066
    %v2073 = vsel %vm636, %v2056, 0
    %v2076 = vsel %vm636, %v2057, 0
    %v2079 = vsel %vm636, %v2058, 0
    %v2082 = vsel %vm636, %v2059, 0
    %2084 = vmatprep.subr.bf16.mxu0 0
    %2085 = vmatpush1.bf16.msra.mxu0 %v2061
    %2086 = vmatprep.subr.bf16.mxu0 0
    %2087 = vmatpush1.bf16.msra.mxu0 %v2063
    %2088 = vmatprep.subr.bf16.mxu0 0
    %2089 = vmatpush1.bf16.msra.mxu0 %v2065
    %2090 = vmatprep.subr.bf16.mxu0 0
    %2091 = vmatpush1.bf16.msra.mxu0 %v2067
    %2092 = vmatprep.subr.bf16.mxu0 0
    %2093 = vmatpush1.bf16.msra.mxu0 0
    %2094 = vmatprep.subr.bf16.mxu0 0
    %2095 = vmatpush1.bf16.msra.mxu0 0
    %2096 = vmatprep.subr.bf16.mxu0 0
    %2097 = vmatpush1.bf16.msra.mxu0 0
    %2098 = vmatprep.subr.bf16.mxu0 0
    %2099 = vmatpush1.bf16.msra.mxu0 0
    %2100 = vmatprep.subr.bf16.mxu0 0
    %2101 = vmatpush1.bf16.msra.mxu0 0
    %2102 = vmatprep.subr.bf16.mxu0 0
    %2103 = vmatpush1.bf16.msra.mxu0 0
    %2104 = vmatprep.subr.bf16.mxu0 0
    %2105 = vmatpush1.bf16.msra.mxu0 0
    %2106 = vmatprep.subr.bf16.mxu0 0
    %2107 = vmatpush1.bf16.msra.mxu0 0
    %2108 = vmatprep.subr.bf16.mxu0 0
    %2109 = vmatpush1.bf16.msra.mxu0 0
    %2110 = vmatprep.subr.bf16.mxu0 0
    %2111 = vmatpush1.bf16.msra.mxu0 0
    %2112 = vmatprep.subr.bf16.mxu0 0
    %2113 = vmatpush1.bf16.msra.mxu0 0
    %2114 = vmatprep.subr.bf16.mxu0 0
    %2115 = vmatpush1.bf16.msra.mxu0 0
    %2116 = vmatprep.mubr.bf16.mxu0 0
    %2117 = vmatmul.mubr.bf16.gmra.mrb[0].mxu0 %v2073
    %v2118 = vpop.f32.mrb[0].mxu0
    %v2119 = vadd.f32 0.0, %v2118
    %v2120 = vpop.f32.mrb[0].mxu0
    %v2121 = vpop.f32.mrb[0].mxu0
    %v2122 = vadd.f32 0.0, %v2121
    %v2123 = vpop.f32.mrb[0].mxu0
    %2124 = vmatprep.mubr.bf16.mxu0 0
    %2125 = vmatmul.mubr.bf16.gmra.mrb[0].mxu0 %v2076
    %v2126 = vpop.f32.mrb[0].mxu0
    %v2127 = vadd.f32 0.0, %v2126
    %v2128 = vpop.f32.mrb[0].mxu0
    %v2129 = vpop.f32.mrb[0].mxu0
    %v2130 = vadd.f32 0.0, %v2129
    %v2131 = vpop.f32.mrb[0].mxu0
    %2132 = vmatprep.mubr.bf16.mxu0 0
    %2133 = vmatmul.mubr.bf16.gmra.mrb[0].mxu0 %v2079
    %v2134 = vpop.f32.mrb[0].mxu0
    %v2135 = vadd.f32 0.0, %v2134
    %v2136 = vpop.f32.mrb[0].mxu0
    %v2137 = vpop.f32.mrb[0].mxu0
    %v2138 = vadd.f32 0.0, %v2137
    %v2139 = vpop.f32.mrb[0].mxu0
    %2140 = vmatprep.mubr.bf16.mxu0 0
    %2141 = vmatmul.mubr.bf16.gmra.mrb[0].mxu0 %v2082
    %v2142 = vpop.f32.mrb[0].mxu0
    %v2143 = vadd.f32 0.0, %v2142
    %v2144 = vpop.f32.mrb[0].mxu0
    %v2145 = vpop.f32.mrb[0].mxu0
    %v2146 = vadd.f32 0.0, %v2145
    %v2147 = vpop.f32.mrb[0].mxu0
    %2148 = vdwg.mxu0
    %2149 = vst.msk [vmem:[#allocation3 + $0x40] sm:$0xff] %vm546, %v2119
    %2150 = vst.msk [vmem:[#allocation3 + $0x48] sm:$0xff] %vm546, %v2122
    %2151 = vst.msk [vmem:[#allocation3 + $0x50] sm:$0xff] %vm546, %v2127
    %2152 = vst.msk [vmem:[#allocation3 + $0x58] sm:$0xff] %vm546, %v2130
    %2153 = vst.msk [vmem:[#allocation3 + $0x60] sm:$0xff] %vm546, %v2135
    %2154 = vst.msk [vmem:[#allocation3 + $0x68] sm:$0xff] %vm546, %v2138
    %2155 = vst.msk [vmem:[#allocation3 + $0x70] sm:$0xff] %vm546, %v2143
    %2156 = vst.msk [vmem:[#allocation3 + $0x78] sm:$0xff] %vm546, %v2146
    %v2157 = vld [vmem:[#allocation2 + $0x40] sm:$0xff]
    %v2158 = vld [vmem:[#allocation2 + $0x48] sm:$0xff]
    %v2159 = vld [vmem:[#allocation2 + $0x50] sm:$0xff]
    %v2160 = vld [vmem:[#allocation2 + $0x58] sm:$0xff]
    %v2161 = vld [vmem:[#allocation2 + $0x60] sm:$0xff]
    %v2162 = vld [vmem:[#allocation2 + $0x68] sm:$0xff]
    %v2163 = vld [vmem:[#allocation2 + $0x70] sm:$0xff]
    %v2164 = vld [vmem:[#allocation2 + $0x78] sm:$0xff]
    %v2165 = vpack.c.bf16 %v2158, %v2157
    %v2166 = vpack.c.bf16 %v2160, %v2159
    %v2167 = vpack.c.bf16 %v2162, %v2161
    %v2168 = vpack.c.bf16 %v2164, %v2163
    %2173 = vrot.lane.b32.xlu0 %v2165, 120
    %v2174 = vpop.permute.xlu0 %2173
    %2175 = vrot.lane.b32.xlu0 %v2166, 120
    %v2176 = vpop.permute.xlu0 %2175
    %2177 = vrot.lane.b32.xlu0 %v2167, 120
    %v2178 = vpop.permute.xlu0 %2177
    %2179 = vrot.lane.b32.xlu0 %v2168, 120
    %v2180 = vpop.permute.xlu0 %2179
    %2181 = vrot.lane.b32.xlu0 %v2165, 88
    %v2182 = vpop.permute.xlu0 %2181
    %2183 = vrot.lane.b32.xlu0 %v2166, 88
    %v2184 = vpop.permute.xlu0 %2183
    %2185 = vrot.lane.b32.xlu0 %v2167, 88
    %v2186 = vpop.permute.xlu0 %2185
    %2187 = vrot.lane.b32.xlu0 %v2168, 88
    %v2188 = vpop.permute.xlu0 %2187
    %v2190 = vsel %vm546, %v2174, 0
    %v2193 = vsel %vm546, %v2176, 0
    %v2196 = vsel %vm546, %v2178, 0
    %v2199 = vsel %vm546, %v2180, 0
    %v2202 = vsel %vm546, %v2182, 0
    %v2205 = vsel %vm546, %v2184, 0
    %v2208 = vsel %vm546, %v2186, 0
    %v2211 = vsel %vm546, %v2188, 0
    %2213 = vmatprep.subr.bf16.mxu0 0
    %2214 = vmatpush1.bf16.xpose.msra.mxu0 %v2202
    %2215 = vmatprep.subr.bf16.mxu0 0
    %2216 = vmatpush1.bf16.xpose.msra.mxu0 %v2205
    %2217 = vmatprep.subr.bf16.mxu0 0
    %2218 = vmatpush1.bf16.xpose.msra.mxu0 %v2208
    %2219 = vmatprep.subr.bf16.mxu0 0
    %2220 = vmatpush1.bf16.xpose.msra.mxu0 %v2211
    %2221 = vmatprep.subr.bf16.mxu0 0
    %2222 = vmatpush1.bf16.xpose.msra.mxu0 0
    %2223 = vmatprep.subr.bf16.mxu0 0
    %2224 = vmatpush1.bf16.xpose.msra.mxu0 0
    %2225 = vmatprep.subr.bf16.mxu0 0
    %2226 = vmatpush1.bf16.xpose.msra.mxu0 0
    %2227 = vmatprep.subr.bf16.mxu0 0
    %2228 = vmatpush1.bf16.xpose.msra.mxu0 0
    %2229 = vmatprep.subr.bf16.mxu0 0
    %2230 = vmatpush1.bf16.xpose.msra.mxu0 0
    %2231 = vmatprep.subr.bf16.mxu0 0
    %2232 = vmatpush1.bf16.xpose.msra.mxu0 0
    %2233 = vmatprep.subr.bf16.mxu0 0
    %2234 = vmatpush1.bf16.xpose.msra.mxu0 0
    %2235 = vmatprep.subr.bf16.mxu0 0
    %2236 = vmatpush1.bf16.xpose.msra.mxu0 0
    %2237 = vmatprep.subr.bf16.mxu0 0
    %2238 = vmatpush1.bf16.xpose.msra.mxu0 0
    %2239 = vmatprep.subr.bf16.mxu0 0
    %2240 = vmatpush1.bf16.xpose.msra.mxu0 0
    %2241 = vmatprep.subr.bf16.mxu0 0
    %2242 = vmatpush1.bf16.xpose.msra.mxu0 0
    %2243 = vmatprep.subr.bf16.mxu0 0
    %2244 = vmatpush1.bf16.xpose.msra.mxu0 0
    %2245 = vmatprep.mubr.bf16.mxu0 0
    %2246 = vmatmul.mubr.bf16.gmra.mrb[0].mxu0 %v2190
    %v2247 = vpop.f32.mrb[0].mxu0
    %v2248 = vadd.f32 0.0, %v2247
    %v2249 = vpop.f32.mrb[0].mxu0
    %v2250 = vpop.f32.mrb[0].mxu0
    %v2251 = vadd.f32 0.0, %v2250
    %v2252 = vpop.f32.mrb[0].mxu0
    %2253 = vmatprep.mubr.bf16.mxu0 0
    %2254 = vmatmul.mubr.bf16.gmra.mrb[0].mxu0 %v2193
    %v2255 = vpop.f32.mrb[0].mxu0
    %v2256 = vadd.f32 0.0, %v2255
    %v2257 = vpop.f32.mrb[0].mxu0
    %v2258 = vpop.f32.mrb[0].mxu0
    %v2259 = vadd.f32 0.0, %v2258
    %v2260 = vpop.f32.mrb[0].mxu0
    %2261 = vmatprep.mubr.bf16.mxu0 0
    %2262 = vmatmul.mubr.bf16.gmra.mrb[0].mxu0 %v2196
    %v2263 = vpop.f32.mrb[0].mxu0
    %v2264 = vadd.f32 0.0, %v2263
    %v2265 = vpop.f32.mrb[0].mxu0
    %v2266 = vpop.f32.mrb[0].mxu0
    %v2267 = vadd.f32 0.0, %v2266
    %v2268 = vpop.f32.mrb[0].mxu0
    %2269 = vmatprep.mubr.bf16.mxu0 0
    %2270 = vmatmul.mubr.bf16.gmra.mrb[0].mxu0 %v2199
    %v2271 = vpop.f32.mrb[0].mxu0
    %v2272 = vadd.f32 0.0, %v2271
    %v2273 = vpop.f32.mrb[0].mxu0
    %v2274 = vpop.f32.mrb[0].mxu0
    %v2275 = vadd.f32 0.0, %v2274
    %v2276 = vpop.f32.mrb[0].mxu0
    %2277 = vdwg.mxu0
    %v2278 = vsel %vm636, %v2248, -inf
    %2279 = vmax.xlane.f32.xlu0 %v2278
    %v2280 = vpop.xlane.xlu0 %2279
    %v2281 = vsel %vm636, %v2251, -inf
    %2282 = vmax.xlane.f32.xlu0 %v2281
    %v2283 = vpop.xlane.xlu0 %2282
    %v2284 = vsel %vm636, %v2256, -inf
    %2285 = vmax.xlane.f32.xlu0 %v2284
    %v2286 = vpop.xlane.xlu0 %2285
    %v2287 = vsel %vm636, %v2259, -inf
    %2288 = vmax.xlane.f32.xlu0 %v2287
    %v2289 = vpop.xlane.xlu0 %2288
    %v2290 = vsel %vm636, %v2264, -inf
    %2291 = vmax.xlane.f32.xlu0 %v2290
    %v2292 = vpop.xlane.xlu0 %2291
    %v2293 = vsel %vm636, %v2267, -inf
    %2294 = vmax.xlane.f32.xlu0 %v2293
    %v2295 = vpop.xlane.xlu0 %2294
    %v2296 = vsel %vm636, %v2272, -inf
    %2297 = vmax.xlane.f32.xlu0 %v2296
    %v2298 = vpop.xlane.xlu0 %2297
    %v2299 = vsel %vm636, %v2275, -inf
    %2300 = vmax.xlane.f32.xlu0 %v2299
    %v2301 = vpop.xlane.xlu0 %2300
    %v2302 = vsub.f32 %v2248, %v2280
    %v2303 = vsub.f32 %v2251, %v2283
    %v2304 = vsub.f32 %v2256, %v2286
    %v2305 = vsub.f32 %v2259, %v2289
    %v2306 = vsub.f32 %v2264, %v2292
    %v2307 = vsub.f32 %v2267, %v2295
    %v2308 = vsub.f32 %v2272, %v2298
    %v2309 = vsub.f32 %v2275, %v2301
    %v2310 = vmul.f32 %v2302, 1.442695
    %v2311 = vpow.pop %v2310
    %v2312 = vmul.f32 %v2303, 1.442695
    %v2313 = vpow.pop %v2312
    %v2314 = vmul.f32 %v2304, 1.442695
    %v2315 = vpow.pop %v2314
    %v2316 = vmul.f32 %v2305, 1.442695
    %v2317 = vpow.pop %v2316
    %v2318 = vmul.f32 %v2306, 1.442695
    %v2319 = vpow.pop %v2318
    %v2320 = vmul.f32 %v2307, 1.442695
    %v2321 = vpow.pop %v2320
    %v2322 = vmul.f32 %v2308, 1.442695
    %v2323 = vpow.pop %v2322
    %v2324 = vmul.f32 %v2309, 1.442695
    %v2325 = vpow.pop %v2324
    %v2326 = vsel %vm636, %v2311, 0.0
    %2327 = vadd.xlane.f32.xlu0 %v2326
    %v2328 = vpop.xlane.xlu0 %2327
    %v2329 = vsel %vm636, %v2313, 0.0
    %2330 = vadd.xlane.f32.xlu0 %v2329
    %v2331 = vpop.xlane.xlu0 %2330
    %v2332 = vsel %vm636, %v2315, 0.0
    %2333 = vadd.xlane.f32.xlu0 %v2332
    %v2334 = vpop.xlane.xlu0 %2333
    %v2335 = vsel %vm636, %v2317, 0.0
    %2336 = vadd.xlane.f32.xlu0 %v2335
    %v2337 = vpop.xlane.xlu0 %2336
    %v2338 = vsel %vm636, %v2319, 0.0
    %2339 = vadd.xlane.f32.xlu0 %v2338
    %v2340 = vpop.xlane.xlu0 %2339
    %v2341 = vsel %vm636, %v2321, 0.0
    %2342 = vadd.xlane.f32.xlu0 %v2341
    %v2343 = vpop.xlane.xlu0 %2342
    %v2344 = vsel %vm636, %v2323, 0.0
    %2345 = vadd.xlane.f32.xlu0 %v2344
    %v2346 = vpop.xlane.xlu0 %2345
    %v2347 = vsel %vm636, %v2325, 0.0
    %2348 = vadd.xlane.f32.xlu0 %v2347
    %v2349 = vpop.xlane.xlu0 %2348
    %v2350 = vrcp.pop %v2328
    %v2351 = vrcp.pop %v2331
    %v2352 = vrcp.pop %v2334
    %v2353 = vrcp.pop %v2337
    %v2354 = vrcp.pop %v2340
    %v2355 = vrcp.pop %v2343
    %v2356 = vrcp.pop %v2346
    %v2357 = vrcp.pop %v2349
    %v2358 = vmul.f32 %v2311, %v2350
    %v2359 = vmul.f32 %v2313, %v2351
    %v2360 = vmul.f32 %v2315, %v2352
    %v2361 = vmul.f32 %v2317, %v2353
    %v2362 = vmul.f32 %v2319, %v2354
    %v2363 = vmul.f32 %v2321, %v2355
    %v2364 = vmul.f32 %v2323, %v2356
    %v2365 = vmul.f32 %v2325, %v2357
    %v2366 = vpack.c.bf16 %v2359, %v2358
    %v2367 = vpack.c.bf16 %v2361, %v2360
    %v2368 = vpack.c.bf16 %v2363, %v2362
    %v2369 = vpack.c.bf16 %v2365, %v2364
    %2370 = vrot.lane.b32.xlu0 %v2165, 56
    %v2371 = vpop.permute.xlu0 %2370
    %2372 = vrot.lane.b32.xlu0 %v2166, 56
    %v2373 = vpop.permute.xlu0 %2372
    %2374 = vrot.lane.b32.xlu0 %v2167, 56
    %v2375 = vpop.permute.xlu0 %2374
    %2376 = vrot.lane.b32.xlu0 %v2168, 56
    %v2377 = vpop.permute.xlu0 %2376
    %v2383 = vsel %vm636, %v2366, 0
    %v2386 = vsel %vm636, %v2367, 0
    %v2389 = vsel %vm636, %v2368, 0
    %v2392 = vsel %vm636, %v2369, 0
    %2394 = vmatprep.subr.bf16.mxu0 0
    %2395 = vmatpush1.bf16.msra.mxu0 %v2371
    %2396 = vmatprep.subr.bf16.mxu0 0
    %2397 = vmatpush1.bf16.msra.mxu0 %v2373
    %2398 = vmatprep.subr.bf16.mxu0 0
    %2399 = vmatpush1.bf16.msra.mxu0 %v2375
    %2400 = vmatprep.subr.bf16.mxu0 0
    %2401 = vmatpush1.bf16.msra.mxu0 %v2377
    %2402 = vmatprep.subr.bf16.mxu0 0
    %2403 = vmatpush1.bf16.msra.mxu0 0
    %2404 = vmatprep.subr.bf16.mxu0 0
    %2405 = vmatpush1.bf16.msra.mxu0 0
    %2406 = vmatprep.subr.bf16.mxu0 0
    %2407 = vmatpush1.bf16.msra.mxu0 0
    %2408 = vmatprep.subr.bf16.mxu0 0
    %2409 = vmatpush1.bf16.msra.mxu0 0
    %2410 = vmatprep.subr.bf16.mxu0 0
    %2411 = vmatpush1.bf16.msra.mxu0 0
    %2412 = vmatprep.subr.bf16.mxu0 0
    %2413 = vmatpush1.bf16.msra.mxu0 0
    %2414 = vmatprep.subr.bf16.mxu0 0
    %2415 = vmatpush1.bf16.msra.mxu0 0
    %2416 = vmatprep.subr.bf16.mxu0 0
    %2417 = vmatpush1.bf16.msra.mxu0 0
    %2418 = vmatprep.subr.bf16.mxu0 0
    %2419 = vmatpush1.bf16.msra.mxu0 0
    %2420 = vmatprep.subr.bf16.mxu0 0
    %2421 = vmatpush1.bf16.msra.mxu0 0
    %2422 = vmatprep.subr.bf16.mxu0 0
    %2423 = vmatpush1.bf16.msra.mxu0 0
    %2424 = vmatprep.subr.bf16.mxu0 0
    %2425 = vmatpush1.bf16.msra.mxu0 0
    %2426 = vmatprep.mubr.bf16.mxu0 0
    %2427 = vmatmul.mubr.bf16.gmra.mrb[0].mxu0 %v2383
    %v2428 = vpop.f32.mrb[0].mxu0
    %v2429 = vadd.f32 0.0, %v2428
    %v2430 = vpop.f32.mrb[0].mxu0
    %v2431 = vpop.f32.mrb[0].mxu0
    %v2432 = vadd.f32 0.0, %v2431
    %v2433 = vpop.f32.mrb[0].mxu0
    %2434 = vmatprep.mubr.bf16.mxu0 0
    %2435 = vmatmul.mubr.bf16.gmra.mrb[0].mxu0 %v2386
    %v2436 = vpop.f32.mrb[0].mxu0
    %v2437 = vadd.f32 0.0, %v2436
    %v2438 = vpop.f32.mrb[0].mxu0
    %v2439 = vpop.f32.mrb[0].mxu0
    %v2440 = vadd.f32 0.0, %v2439
    %v2441 = vpop.f32.mrb[0].mxu0
    %2442 = vmatprep.mubr.bf16.mxu0 0
    %2443 = vmatmul.mubr.bf16.gmra.mrb[0].mxu0 %v2389
    %v2444 = vpop.f32.mrb[0].mxu0
    %v2445 = vadd.f32 0.0, %v2444
    %v2446 = vpop.f32.mrb[0].mxu0
    %v2447 = vpop.f32.mrb[0].mxu0
    %v2448 = vadd.f32 0.0, %v2447
    %v2449 = vpop.f32.mrb[0].mxu0
    %2450 = vmatprep.mubr.bf16.mxu0 0
    %2451 = vmatmul.mubr.bf16.gmra.mrb[0].mxu0 %v2392
    %v2452 = vpop.f32.mrb[0].mxu0
    %v2453 = vadd.f32 0.0, %v2452
    %v2454 = vpop.f32.mrb[0].mxu0
    %v2455 = vpop.f32.mrb[0].mxu0
    %v2456 = vadd.f32 0.0, %v2455
    %v2457 = vpop.f32.mrb[0].mxu0
    %2458 = vdwg.mxu0
    %2467 = vrot.lane.b32.xlu0 %v2429, 8
    %v2468 = vpop.permute.xlu0 %2467
    %2469 = vrot.lane.b32.xlu0 %v2432, 8
    %v2470 = vpop.permute.xlu0 %2469
    %2471 = vrot.lane.b32.xlu0 %v2437, 8
    %v2472 = vpop.permute.xlu0 %2471
    %2473 = vrot.lane.b32.xlu0 %v2440, 8
    %v2474 = vpop.permute.xlu0 %2473
    %2475 = vrot.lane.b32.xlu0 %v2445, 8
    %v2476 = vpop.permute.xlu0 %2475
    %2477 = vrot.lane.b32.xlu0 %v2448, 8
    %v2478 = vpop.permute.xlu0 %2477
    %2479 = vrot.lane.b32.xlu0 %v2453, 8
    %v2480 = vpop.permute.xlu0 %2479
    %2481 = vrot.lane.b32.xlu0 %v2456, 8
    %v2482 = vpop.permute.xlu0 %2481
    %2491 = vst.msk [vmem:[#allocation3 + $0x40] sm:$0xff] %vm1160, %v2468
    %2492 = vst.msk [vmem:[#allocation3 + $0x48] sm:$0xff] %vm1160, %v2470
    %2493 = vst.msk [vmem:[#allocation3 + $0x50] sm:$0xff] %vm1160, %v2472
    %2494 = vst.msk [vmem:[#allocation3 + $0x58] sm:$0xff] %vm1160, %v2474
    %2495 = vst.msk [vmem:[#allocation3 + $0x60] sm:$0xff] %vm1160, %v2476
    %2496 = vst.msk [vmem:[#allocation3 + $0x68] sm:$0xff] %vm1160, %v2478
    %2497 = vst.msk [vmem:[#allocation3 + $0x70] sm:$0xff] %vm1160, %v2480
    %2498 = vst.msk [vmem:[#allocation3 + $0x78] sm:$0xff] %vm1160, %v2482
    %v2499 = vld [vmem:[#allocation2 + $0x40] sm:$0xff]
    %v2500 = vld [vmem:[#allocation2 + $0x48] sm:$0xff]
    %v2501 = vld [vmem:[#allocation2 + $0x50] sm:$0xff]
    %v2502 = vld [vmem:[#allocation2 + $0x58] sm:$0xff]
    %v2503 = vld [vmem:[#allocation2 + $0x60] sm:$0xff]
    %v2504 = vld [vmem:[#allocation2 + $0x68] sm:$0xff]
    %v2505 = vld [vmem:[#allocation2 + $0x70] sm:$0xff]
    %v2506 = vld [vmem:[#allocation2 + $0x78] sm:$0xff]
    %v2507 = vpack.c.bf16 %v2500, %v2499
    %v2508 = vpack.c.bf16 %v2502, %v2501
    %v2509 = vpack.c.bf16 %v2504, %v2503
    %v2510 = vpack.c.bf16 %v2506, %v2505
    %2515 = vrot.lane.b32.xlu0 %v2507, 112
    %v2516 = vpop.permute.xlu0 %2515
    %2517 = vrot.lane.b32.xlu0 %v2508, 112
    %v2518 = vpop.permute.xlu0 %2517
    %2519 = vrot.lane.b32.xlu0 %v2509, 112
    %v2520 = vpop.permute.xlu0 %2519
    %2521 = vrot.lane.b32.xlu0 %v2510, 112
    %v2522 = vpop.permute.xlu0 %2521
    %2523 = vrot.lane.b32.xlu0 %v2507, 80
    %v2524 = vpop.permute.xlu0 %2523
    %2525 = vrot.lane.b32.xlu0 %v2508, 80
    %v2526 = vpop.permute.xlu0 %2525
    %2527 = vrot.lane.b32.xlu0 %v2509, 80
    %v2528 = vpop.permute.xlu0 %2527
    %2529 = vrot.lane.b32.xlu0 %v2510, 80
    %v2530 = vpop.permute.xlu0 %2529
    %v2532 = vsel %vm546, %v2516, 0
    %v2535 = vsel %vm546, %v2518, 0
    %v2538 = vsel %vm546, %v2520, 0
    %v2541 = vsel %vm546, %v2522, 0
    %v2544 = vsel %vm546, %v2524, 0
    %v2547 = vsel %vm546, %v2526, 0
    %v2550 = vsel %vm546, %v2528, 0
    %v2553 = vsel %vm546, %v2530, 0
    %2555 = vmatprep.subr.bf16.mxu0 0
    %2556 = vmatpush1.bf16.xpose.msra.mxu0 %v2544
    %2557 = vmatprep.subr.bf16.mxu0 0
    %2558 = vmatpush1.bf16.xpose.msra.mxu0 %v2547
    %2559 = vmatprep.subr.bf16.mxu0 0
    %2560 = vmatpush1.bf16.xpose.msra.mxu0 %v2550
    %2561 = vmatprep.subr.bf16.mxu0 0
    %2562 = vmatpush1.bf16.xpose.msra.mxu0 %v2553
    %2563 = vmatprep.subr.bf16.mxu0 0
    %2564 = vmatpush1.bf16.xpose.msra.mxu0 0
    %2565 = vmatprep.subr.bf16.mxu0 0
    %2566 = vmatpush1.bf16.xpose.msra.mxu0 0
    %2567 = vmatprep.subr.bf16.mxu0 0
    %2568 = vmatpush1.bf16.xpose.msra.mxu0 0
    %2569 = vmatprep.subr.bf16.mxu0 0
    %2570 = vmatpush1.bf16.xpose.msra.mxu0 0
    %2571 = vmatprep.subr.bf16.mxu0 0
    %2572 = vmatpush1.bf16.xpose.msra.mxu0 0
    %2573 = vmatprep.subr.bf16.mxu0 0
    %2574 = vmatpush1.bf16.xpose.msra.mxu0 0
    %2575 = vmatprep.subr.bf16.mxu0 0
    %2576 = vmatpush1.bf16.xpose.msra.mxu0 0
    %2577 = vmatprep.subr.bf16.mxu0 0
    %2578 = vmatpush1.bf16.xpose.msra.mxu0 0
    %2579 = vmatprep.subr.bf16.mxu0 0
    %2580 = vmatpush1.bf16.xpose.msra.mxu0 0
    %2581 = vmatprep.subr.bf16.mxu0 0
    %2582 = vmatpush1.bf16.xpose.msra.mxu0 0
    %2583 = vmatprep.subr.bf16.mxu0 0
    %2584 = vmatpush1.bf16.xpose.msra.mxu0 0
    %2585 = vmatprep.subr.bf16.mxu0 0
    %2586 = vmatpush1.bf16.xpose.msra.mxu0 0
    %2587 = vmatprep.mubr.bf16.mxu0 0
    %2588 = vmatmul.mubr.bf16.gmra.mrb[0].mxu0 %v2532
    %v2589 = vpop.f32.mrb[0].mxu0
    %v2590 = vadd.f32 0.0, %v2589
    %v2591 = vpop.f32.mrb[0].mxu0
    %v2592 = vpop.f32.mrb[0].mxu0
    %v2593 = vadd.f32 0.0, %v2592
    %v2594 = vpop.f32.mrb[0].mxu0
    %2595 = vmatprep.mubr.bf16.mxu0 0
    %2596 = vmatmul.mubr.bf16.gmra.mrb[0].mxu0 %v2535
    %v2597 = vpop.f32.mrb[0].mxu0
    %v2598 = vadd.f32 0.0, %v2597
    %v2599 = vpop.f32.mrb[0].mxu0
    %v2600 = vpop.f32.mrb[0].mxu0
    %v2601 = vadd.f32 0.0, %v2600
    %v2602 = vpop.f32.mrb[0].mxu0
    %2603 = vmatprep.mubr.bf16.mxu0 0
    %2604 = vmatmul.mubr.bf16.gmra.mrb[0].mxu0 %v2538
    %v2605 = vpop.f32.mrb[0].mxu0
    %v2606 = vadd.f32 0.0, %v2605
    %v2607 = vpop.f32.mrb[0].mxu0
    %v2608 = vpop.f32.mrb[0].mxu0
    %v2609 = vadd.f32 0.0, %v2608
    %v2610 = vpop.f32.mrb[0].mxu0
    %2611 = vmatprep.mubr.bf16.mxu0 0
    %2612 = vmatmul.mubr.bf16.gmra.mrb[0].mxu0 %v2541
    %v2613 = vpop.f32.mrb[0].mxu0
    %v2614 = vadd.f32 0.0, %v2613
    %v2615 = vpop.f32.mrb[0].mxu0
    %v2616 = vpop.f32.mrb[0].mxu0
    %v2617 = vadd.f32 0.0, %v2616
    %v2618 = vpop.f32.mrb[0].mxu0
    %2619 = vdwg.mxu0
    %v2620 = vsel %vm636, %v2590, -inf
    %2621 = vmax.xlane.f32.xlu0 %v2620
    %v2622 = vpop.xlane.xlu0 %2621
    %v2623 = vsel %vm636, %v2593, -inf
    %2624 = vmax.xlane.f32.xlu0 %v2623
    %v2625 = vpop.xlane.xlu0 %2624
    %v2626 = vsel %vm636, %v2598, -inf
    %2627 = vmax.xlane.f32.xlu0 %v2626
    %v2628 = vpop.xlane.xlu0 %2627
    %v2629 = vsel %vm636, %v2601, -inf
    %2630 = vmax.xlane.f32.xlu0 %v2629
    %v2631 = vpop.xlane.xlu0 %2630
    %v2632 = vsel %vm636, %v2606, -inf
    %2633 = vmax.xlane.f32.xlu0 %v2632
    %v2634 = vpop.xlane.xlu0 %2633
    %v2635 = vsel %vm636, %v2609, -inf
    %2636 = vmax.xlane.f32.xlu0 %v2635
    %v2637 = vpop.xlane.xlu0 %2636
    %v2638 = vsel %vm636, %v2614, -inf
    %2639 = vmax.xlane.f32.xlu0 %v2638
    %v2640 = vpop.xlane.xlu0 %2639
    %v2641 = vsel %vm636, %v2617, -inf
    %2642 = vmax.xlane.f32.xlu0 %v2641
    %v2643 = vpop.xlane.xlu0 %2642
    %v2644 = vsub.f32 %v2590, %v2622
    %v2645 = vsub.f32 %v2593, %v2625
    %v2646 = vsub.f32 %v2598, %v2628
    %v2647 = vsub.f32 %v2601, %v2631
    %v2648 = vsub.f32 %v2606, %v2634
    %v2649 = vsub.f32 %v2609, %v2637
    %v2650 = vsub.f32 %v2614, %v2640
    %v2651 = vsub.f32 %v2617, %v2643
    %v2652 = vmul.f32 %v2644, 1.442695
    %v2653 = vpow.pop %v2652
    %v2654 = vmul.f32 %v2645, 1.442695
    %v2655 = vpow.pop %v2654
    %v2656 = vmul.f32 %v2646, 1.442695
    %v2657 = vpow.pop %v2656
    %v2658 = vmul.f32 %v2647, 1.442695
    %v2659 = vpow.pop %v2658
    %v2660 = vmul.f32 %v2648, 1.442695
    %v2661 = vpow.pop %v2660
    %v2662 = vmul.f32 %v2649, 1.442695
    %v2663 = vpow.pop %v2662
    %v2664 = vmul.f32 %v2650, 1.442695
    %v2665 = vpow.pop %v2664
    %v2666 = vmul.f32 %v2651, 1.442695
    %v2667 = vpow.pop %v2666
    %v2668 = vsel %vm636, %v2653, 0.0
    %2669 = vadd.xlane.f32.xlu0 %v2668
    %v2670 = vpop.xlane.xlu0 %2669
    %v2671 = vsel %vm636, %v2655, 0.0
    %2672 = vadd.xlane.f32.xlu0 %v2671
    %v2673 = vpop.xlane.xlu0 %2672
    %v2674 = vsel %vm636, %v2657, 0.0
    %2675 = vadd.xlane.f32.xlu0 %v2674
    %v2676 = vpop.xlane.xlu0 %2675
    %v2677 = vsel %vm636, %v2659, 0.0
    %2678 = vadd.xlane.f32.xlu0 %v2677
    %v2679 = vpop.xlane.xlu0 %2678
    %v2680 = vsel %vm636, %v2661, 0.0
    %2681 = vadd.xlane.f32.xlu0 %v2680
    %v2682 = vpop.xlane.xlu0 %2681
    %v2683 = vsel %vm636, %v2663, 0.0
    %2684 = vadd.xlane.f32.xlu0 %v2683
    %v2685 = vpop.xlane.xlu0 %2684
    %v2686 = vsel %vm636, %v2665, 0.0
    %2687 = vadd.xlane.f32.xlu0 %v2686
    %v2688 = vpop.xlane.xlu0 %2687
    %v2689 = vsel %vm636, %v2667, 0.0
    %2690 = vadd.xlane.f32.xlu0 %v2689
    %v2691 = vpop.xlane.xlu0 %2690
    %v2692 = vrcp.pop %v2670
    %v2693 = vrcp.pop %v2673
    %v2694 = vrcp.pop %v2676
    %v2695 = vrcp.pop %v2679
    %v2696 = vrcp.pop %v2682
    %v2697 = vrcp.pop %v2685
    %v2698 = vrcp.pop %v2688
    %v2699 = vrcp.pop %v2691
    %v2700 = vmul.f32 %v2653, %v2692
    %v2701 = vmul.f32 %v2655, %v2693
    %v2702 = vmul.f32 %v2657, %v2694
    %v2703 = vmul.f32 %v2659, %v2695
    %v2704 = vmul.f32 %v2661, %v2696
    %v2705 = vmul.f32 %v2663, %v2697
    %v2706 = vmul.f32 %v2665, %v2698
    %v2707 = vmul.f32 %v2667, %v2699
    %v2708 = vpack.c.bf16 %v2701, %v2700
    %v2709 = vpack.c.bf16 %v2703, %v2702
    %v2710 = vpack.c.bf16 %v2705, %v2704
    %v2711 = vpack.c.bf16 %v2707, %v2706
    %2712 = vrot.lane.b32.xlu0 %v2507, 48
    %v2713 = vpop.permute.xlu0 %2712
    %2714 = vrot.lane.b32.xlu0 %v2508, 48
    %v2715 = vpop.permute.xlu0 %2714
    %2716 = vrot.lane.b32.xlu0 %v2509, 48
    %v2717 = vpop.permute.xlu0 %2716
    %2718 = vrot.lane.b32.xlu0 %v2510, 48
    %v2719 = vpop.permute.xlu0 %2718
    %v2725 = vsel %vm636, %v2708, 0
    %v2728 = vsel %vm636, %v2709, 0
    %v2731 = vsel %vm636, %v2710, 0
    %v2734 = vsel %vm636, %v2711, 0
    %2736 = vmatprep.subr.bf16.mxu0 0
    %2737 = vmatpush1.bf16.msra.mxu0 %v2713
    %2738 = vmatprep.subr.bf16.mxu0 0
    %2739 = vmatpush1.bf16.msra.mxu0 %v2715
    %2740 = vmatprep.subr.bf16.mxu0 0
    %2741 = vmatpush1.bf16.msra.mxu0 %v2717
    %2742 = vmatprep.subr.bf16.mxu0 0
    %2743 = vmatpush1.bf16.msra.mxu0 %v2719
    %2744 = vmatprep.subr.bf16.mxu0 0
    %2745 = vmatpush1.bf16.msra.mxu0 0
    %2746 = vmatprep.subr.bf16.mxu0 0
    %2747 = vmatpush1.bf16.msra.mxu0 0
    %2748 = vmatprep.subr.bf16.mxu0 0
    %2749 = vmatpush1.bf16.msra.mxu0 0
    %2750 = vmatprep.subr.bf16.mxu0 0
    %2751 = vmatpush1.bf16.msra.mxu0 0
    %2752 = vmatprep.subr.bf16.mxu0 0
    %2753 = vmatpush1.bf16.msra.mxu0 0
    %2754 = vmatprep.subr.bf16.mxu0 0
    %2755 = vmatpush1.bf16.msra.mxu0 0
    %2756 = vmatprep.subr.bf16.mxu0 0
    %2757 = vmatpush1.bf16.msra.mxu0 0
    %2758 = vmatprep.subr.bf16.mxu0 0
    %2759 = vmatpush1.bf16.msra.mxu0 0
    %2760 = vmatprep.subr.bf16.mxu0 0
    %2761 = vmatpush1.bf16.msra.mxu0 0
    %2762 = vmatprep.subr.bf16.mxu0 0
    %2763 = vmatpush1.bf16.msra.mxu0 0
    %2764 = vmatprep.subr.bf16.mxu0 0
    %2765 = vmatpush1.bf16.msra.mxu0 0
    %2766 = vmatprep.subr.bf16.mxu0 0
    %2767 = vmatpush1.bf16.msra.mxu0 0
    %2768 = vmatprep.mubr.bf16.mxu0 0
    %2769 = vmatmul.mubr.bf16.gmra.mrb[0].mxu0 %v2725
    %v2770 = vpop.f32.mrb[0].mxu0
    %v2771 = vadd.f32 0.0, %v2770
    %v2772 = vpop.f32.mrb[0].mxu0
    %v2773 = vpop.f32.mrb[0].mxu0
    %v2774 = vadd.f32 0.0, %v2773
    %v2775 = vpop.f32.mrb[0].mxu0
    %2776 = vmatprep.mubr.bf16.mxu0 0
    %2777 = vmatmul.mubr.bf16.gmra.mrb[0].mxu0 %v2728
    %v2778 = vpop.f32.mrb[0].mxu0
    %v2779 = vadd.f32 0.0, %v2778
    %v2780 = vpop.f32.mrb[0].mxu0
    %v2781 = vpop.f32.mrb[0].mxu0
    %v2782 = vadd.f32 0.0, %v2781
    %v2783 = vpop.f32.mrb[0].mxu0
    %2784 = vmatprep.mubr.bf16.mxu0 0
    %2785 = vmatmul.mubr.bf16.gmra.mrb[0].mxu0 %v2731
    %v2786 = vpop.f32.mrb[0].mxu0
    %v2787 = vadd.f32 0.0, %v2786
    %v2788 = vpop.f32.mrb[0].mxu0
    %v2789 = vpop.f32.mrb[0].mxu0
    %v2790 = vadd.f32 0.0, %v2789
    %v2791 = vpop.f32.mrb[0].mxu0
    %2792 = vmatprep.mubr.bf16.mxu0 0
    %2793 = vmatmul.mubr.bf16.gmra.mrb[0].mxu0 %v2734
    %v2794 = vpop.f32.mrb[0].mxu0
    %v2795 = vadd.f32 0.0, %v2794
    %v2796 = vpop.f32.mrb[0].mxu0
    %v2797 = vpop.f32.mrb[0].mxu0
    %v2798 = vadd.f32 0.0, %v2797
    %v2799 = vpop.f32.mrb[0].mxu0
    %2800 = vdwg.mxu0
    %2809 = vrot.lane.b32.xlu0 %v2771, 16
    %v2810 = vpop.permute.xlu0 %2809
    %2811 = vrot.lane.b32.xlu0 %v2774, 16
    %v2812 = vpop.permute.xlu0 %2811
    %2813 = vrot.lane.b32.xlu0 %v2779, 16
    %v2814 = vpop.permute.xlu0 %2813
    %2815 = vrot.lane.b32.xlu0 %v2782, 16
    %v2816 = vpop.permute.xlu0 %2815
    %2817 = vrot.lane.b32.xlu0 %v2787, 16
    %v2818 = vpop.permute.xlu0 %2817
    %2819 = vrot.lane.b32.xlu0 %v2790, 16
    %v2820 = vpop.permute.xlu0 %2819
    %2821 = vrot.lane.b32.xlu0 %v2795, 16
    %v2822 = vpop.permute.xlu0 %2821
    %2823 = vrot.lane.b32.xlu0 %v2798, 16
    %v2824 = vpop.permute.xlu0 %2823
    %2833 = vst.msk [vmem:[#allocation3 + $0x40] sm:$0xff] %vm1503, %v2810
    %2834 = vst.msk [vmem:[#allocation3 + $0x48] sm:$0xff] %vm1503, %v2812
    %2835 = vst.msk [vmem:[#allocation3 + $0x50] sm:$0xff] %vm1503, %v2814
    %2836 = vst.msk [vmem:[#allocation3 + $0x58] sm:$0xff] %vm1503, %v2816
    %2837 = vst.msk [vmem:[#allocation3 + $0x60] sm:$0xff] %vm1503, %v2818
    %2838 = vst.msk [vmem:[#allocation3 + $0x68] sm:$0xff] %vm1503, %v2820
    %2839 = vst.msk [vmem:[#allocation3 + $0x70] sm:$0xff] %vm1503, %v2822
    %2840 = vst.msk [vmem:[#allocation3 + $0x78] sm:$0xff] %vm1503, %v2824
    %v2841 = vld [vmem:[#allocation2 + $0x40] sm:$0xff]
    %v2842 = vld [vmem:[#allocation2 + $0x48] sm:$0xff]
    %v2843 = vld [vmem:[#allocation2 + $0x50] sm:$0xff]
    %v2844 = vld [vmem:[#allocation2 + $0x58] sm:$0xff]
    %v2845 = vld [vmem:[#allocation2 + $0x60] sm:$0xff]
    %v2846 = vld [vmem:[#allocation2 + $0x68] sm:$0xff]
    %v2847 = vld [vmem:[#allocation2 + $0x70] sm:$0xff]
    %v2848 = vld [vmem:[#allocation2 + $0x78] sm:$0xff]
    %v2849 = vpack.c.bf16 %v2842, %v2841
    %v2850 = vpack.c.bf16 %v2844, %v2843
    %v2851 = vpack.c.bf16 %v2846, %v2845
    %v2852 = vpack.c.bf16 %v2848, %v2847
    %2857 = vrot.lane.b32.xlu0 %v2849, 104
    %v2858 = vpop.permute.xlu0 %2857
    %2859 = vrot.lane.b32.xlu0 %v2850, 104
    %v2860 = vpop.permute.xlu0 %2859
    %2861 = vrot.lane.b32.xlu0 %v2851, 104
    %v2862 = vpop.permute.xlu0 %2861
    %2863 = vrot.lane.b32.xlu0 %v2852, 104
    %v2864 = vpop.permute.xlu0 %2863
    %2865 = vrot.lane.b32.xlu0 %v2849, 72
    %v2866 = vpop.permute.xlu0 %2865
    %2867 = vrot.lane.b32.xlu0 %v2850, 72
    %v2868 = vpop.permute.xlu0 %2867
    %2869 = vrot.lane.b32.xlu0 %v2851, 72
    %v2870 = vpop.permute.xlu0 %2869
    %2871 = vrot.lane.b32.xlu0 %v2852, 72
    %v2872 = vpop.permute.xlu0 %2871
    %v2874 = vsel %vm546, %v2858, 0
    %v2877 = vsel %vm546, %v2860, 0
    %v2880 = vsel %vm546, %v2862, 0
    %v2883 = vsel %vm546, %v2864, 0
    %v2886 = vsel %vm546, %v2866, 0
    %v2889 = vsel %vm546, %v2868, 0
    %v2892 = vsel %vm546, %v2870, 0
    %v2895 = vsel %vm546, %v2872, 0
    %2897 = vmatprep.subr.bf16.mxu0 0
    %2898 = vmatpush1.bf16.xpose.msra.mxu0 %v2886
    %2899 = vmatprep.subr.bf16.mxu0 0
    %2900 = vmatpush1.bf16.xpose.msra.mxu0 %v2889
    %2901 = vmatprep.subr.bf16.mxu0 0
    %2902 = vmatpush1.bf16.xpose.msra.mxu0 %v2892
    %2903 = vmatprep.subr.bf16.mxu0 0
    %2904 = vmatpush1.bf16.xpose.msra.mxu0 %v2895
    %2905 = vmatprep.subr.bf16.mxu0 0
    %2906 = vmatpush1.bf16.xpose.msra.mxu0 0
    %2907 = vmatprep.subr.bf16.mxu0 0
    %2908 = vmatpush1.bf16.xpose.msra.mxu0 0
    %2909 = vmatprep.subr.bf16.mxu0 0
    %2910 = vmatpush1.bf16.xpose.msra.mxu0 0
    %2911 = vmatprep.subr.bf16.mxu0 0
    %2912 = vmatpush1.bf16.xpose.msra.mxu0 0
    %2913 = vmatprep.subr.bf16.mxu0 0
    %2914 = vmatpush1.bf16.xpose.msra.mxu0 0
    %2915 = vmatprep.subr.bf16.mxu0 0
    %2916 = vmatpush1.bf16.xpose.msra.mxu0 0
    %2917 = vmatprep.subr.bf16.mxu0 0
    %2918 = vmatpush1.bf16.xpose.msra.mxu0 0
    %2919 = vmatprep.subr.bf16.mxu0 0
    %2920 = vmatpush1.bf16.xpose.msra.mxu0 0
    %2921 = vmatprep.subr.bf16.mxu0 0
    %2922 = vmatpush1.bf16.xpose.msra.mxu0 0
    %2923 = vmatprep.subr.bf16.mxu0 0
    %2924 = vmatpush1.bf16.xpose.msra.mxu0 0
    %2925 = vmatprep.subr.bf16.mxu0 0
    %2926 = vmatpush1.bf16.xpose.msra.mxu0 0
    %2927 = vmatprep.subr.bf16.mxu0 0
    %2928 = vmatpush1.bf16.xpose.msra.mxu0 0
    %2929 = vmatprep.mubr.bf16.mxu0 0
    %2930 = vmatmul.mubr.bf16.gmra.mrb[0].mxu0 %v2874
    %v2931 = vpop.f32.mrb[0].mxu0
    %v2932 = vadd.f32 0.0, %v2931
    %v2933 = vpop.f32.mrb[0].mxu0
    %v2934 = vpop.f32.mrb[0].mxu0
    %v2935 = vadd.f32 0.0, %v2934
    %v2936 = vpop.f32.mrb[0].mxu0
    %2937 = vmatprep.mubr.bf16.mxu0 0
    %2938 = vmatmul.mubr.bf16.gmra.mrb[0].mxu0 %v2877
    %v2939 = vpop.f32.mrb[0].mxu0
    %v2940 = vadd.f32 0.0, %v2939
    %v2941 = vpop.f32.mrb[0].mxu0
    %v2942 = vpop.f32.mrb[0].mxu0
    %v2943 = vadd.f32 0.0, %v2942
    %v2944 = vpop.f32.mrb[0].mxu0
    %2945 = vmatprep.mubr.bf16.mxu0 0
    %2946 = vmatmul.mubr.bf16.gmra.mrb[0].mxu0 %v2880
    %v2947 = vpop.f32.mrb[0].mxu0
    %v2948 = vadd.f32 0.0, %v2947
    %v2949 = vpop.f32.mrb[0].mxu0
    %v2950 = vpop.f32.mrb[0].mxu0
    %v2951 = vadd.f32 0.0, %v2950
    %v2952 = vpop.f32.mrb[0].mxu0
    %2953 = vmatprep.mubr.bf16.mxu0 0
    %2954 = vmatmul.mubr.bf16.gmra.mrb[0].mxu0 %v2883
    %v2955 = vpop.f32.mrb[0].mxu0
    %v2956 = vadd.f32 0.0, %v2955
    %v2957 = vpop.f32.mrb[0].mxu0
    %v2958 = vpop.f32.mrb[0].mxu0
    %v2959 = vadd.f32 0.0, %v2958
    %v2960 = vpop.f32.mrb[0].mxu0
    %2961 = vdwg.mxu0
    %v2962 = vsel %vm636, %v2932, -inf
    %2963 = vmax.xlane.f32.xlu0 %v2962
    %v2964 = vpop.xlane.xlu0 %2963
    %v2965 = vsel %vm636, %v2935, -inf
    %2966 = vmax.xlane.f32.xlu0 %v2965
    %v2967 = vpop.xlane.xlu0 %2966
    %v2968 = vsel %vm636, %v2940, -inf
    %2969 = vmax.xlane.f32.xlu0 %v2968
    %v2970 = vpop.xlane.xlu0 %2969
    %v2971 = vsel %vm636, %v2943, -inf
    %2972 = vmax.xlane.f32.xlu0 %v2971
    %v2973 = vpop.xlane.xlu0 %2972
    %v2974 = vsel %vm636, %v2948, -inf
    %2975 = vmax.xlane.f32.xlu0 %v2974
    %v2976 = vpop.xlane.xlu0 %2975
    %v2977 = vsel %vm636, %v2951, -inf
    %2978 = vmax.xlane.f32.xlu0 %v2977
    %v2979 = vpop.xlane.xlu0 %2978
    %v2980 = vsel %vm636, %v2956, -inf
    %2981 = vmax.xlane.f32.xlu0 %v2980
    %v2982 = vpop.xlane.xlu0 %2981
    %v2983 = vsel %vm636, %v2959, -inf
    %2984 = vmax.xlane.f32.xlu0 %v2983
    %v2985 = vpop.xlane.xlu0 %2984
    %v2986 = vsub.f32 %v2932, %v2964
    %v2987 = vsub.f32 %v2935, %v2967
    %v2988 = vsub.f32 %v2940, %v2970
    %v2989 = vsub.f32 %v2943, %v2973
    %v2990 = vsub.f32 %v2948, %v2976
    %v2991 = vsub.f32 %v2951, %v2979
    %v2992 = vsub.f32 %v2956, %v2982
    %v2993 = vsub.f32 %v2959, %v2985
    %v2994 = vmul.f32 %v2986, 1.442695
    %v2995 = vpow.pop %v2994
    %v2996 = vmul.f32 %v2987, 1.442695
    %v2997 = vpow.pop %v2996
    %v2998 = vmul.f32 %v2988, 1.442695
    %v2999 = vpow.pop %v2998
    %v3000 = vmul.f32 %v2989, 1.442695
    %v3001 = vpow.pop %v3000
    %v3002 = vmul.f32 %v2990, 1.442695
    %v3003 = vpow.pop %v3002
    %v3004 = vmul.f32 %v2991, 1.442695
    %v3005 = vpow.pop %v3004
    %v3006 = vmul.f32 %v2992, 1.442695
    %v3007 = vpow.pop %v3006
    %v3008 = vmul.f32 %v2993, 1.442695
    %v3009 = vpow.pop %v3008
    %v3010 = vsel %vm636, %v2995, 0.0
    %3011 = vadd.xlane.f32.xlu0 %v3010
    %v3012 = vpop.xlane.xlu0 %3011
    %v3013 = vsel %vm636, %v2997, 0.0
    %3014 = vadd.xlane.f32.xlu0 %v3013
    %v3015 = vpop.xlane.xlu0 %3014
    %v3016 = vsel %vm636, %v2999, 0.0
    %3017 = vadd.xlane.f32.xlu0 %v3016
    %v3018 = vpop.xlane.xlu0 %3017
    %v3019 = vsel %vm636, %v3001, 0.0
    %3020 = vadd.xlane.f32.xlu0 %v3019
    %v3021 = vpop.xlane.xlu0 %3020
    %v3022 = vsel %vm636, %v3003, 0.0
    %3023 = vadd.xlane.f32.xlu0 %v3022
    %v3024 = vpop.xlane.xlu0 %3023
    %v3025 = vsel %vm636, %v3005, 0.0
    %3026 = vadd.xlane.f32.xlu0 %v3025
    %v3027 = vpop.xlane.xlu0 %3026
    %v3028 = vsel %vm636, %v3007, 0.0
    %3029 = vadd.xlane.f32.xlu0 %v3028
    %v3030 = vpop.xlane.xlu0 %3029
    %v3031 = vsel %vm636, %v3009, 0.0
    %3032 = vadd.xlane.f32.xlu0 %v3031
    %v3033 = vpop.xlane.xlu0 %3032
    %v3034 = vrcp.pop %v3012
    %v3035 = vrcp.pop %v3015
    %v3036 = vrcp.pop %v3018
    %v3037 = vrcp.pop %v3021
    %v3038 = vrcp.pop %v3024
    %v3039 = vrcp.pop %v3027
    %v3040 = vrcp.pop %v3030
    %v3041 = vrcp.pop %v3033
    %v3042 = vmul.f32 %v2995, %v3034
    %v3043 = vmul.f32 %v2997, %v3035
    %v3044 = vmul.f32 %v2999, %v3036
    %v3045 = vmul.f32 %v3001, %v3037
    %v3046 = vmul.f32 %v3003, %v3038
    %v3047 = vmul.f32 %v3005, %v3039
    %v3048 = vmul.f32 %v3007, %v3040
    %v3049 = vmul.f32 %v3009, %v3041
    %v3050 = vpack.c.bf16 %v3043, %v3042
    %v3051 = vpack.c.bf16 %v3045, %v3044
    %v3052 = vpack.c.bf16 %v3047, %v3046
    %v3053 = vpack.c.bf16 %v3049, %v3048
    %3054 = vrot.lane.b32.xlu0 %v2849, 40
    %v3055 = vpop.permute.xlu0 %3054
    %3056 = vrot.lane.b32.xlu0 %v2850, 40
    %v3057 = vpop.permute.xlu0 %3056
    %3058 = vrot.lane.b32.xlu0 %v2851, 40
    %v3059 = vpop.permute.xlu0 %3058
    %3060 = vrot.lane.b32.xlu0 %v2852, 40
    %v3061 = vpop.permute.xlu0 %3060
    %v3067 = vsel %vm636, %v3050, 0
    %v3070 = vsel %vm636, %v3051, 0
    %v3073 = vsel %vm636, %v3052, 0
    %v3076 = vsel %vm636, %v3053, 0
    %3078 = vmatprep.subr.bf16.mxu0 0
    %3079 = vmatpush1.bf16.msra.mxu0 %v3055
    %3080 = vmatprep.subr.bf16.mxu0 0
    %3081 = vmatpush1.bf16.msra.mxu0 %v3057
    %3082 = vmatprep.subr.bf16.mxu0 0
    %3083 = vmatpush1.bf16.msra.mxu0 %v3059
    %3084 = vmatprep.subr.bf16.mxu0 0
    %3085 = vmatpush1.bf16.msra.mxu0 %v3061
    %3086 = vmatprep.subr.bf16.mxu0 0
    %3087 = vmatpush1.bf16.msra.mxu0 0
    %3088 = vmatprep.subr.bf16.mxu0 0
    %3089 = vmatpush1.bf16.msra.mxu0 0
    %3090 = vmatprep.subr.bf16.mxu0 0
    %3091 = vmatpush1.bf16.msra.mxu0 0
    %3092 = vmatprep.subr.bf16.mxu0 0
    %3093 = vmatpush1.bf16.msra.mxu0 0
    %3094 = vmatprep.subr.bf16.mxu0 0
    %3095 = vmatpush1.bf16.msra.mxu0 0
    %3096 = vmatprep.subr.bf16.mxu0 0
    %3097 = vmatpush1.bf16.msra.mxu0 0
    %3098 = vmatprep.subr.bf16.mxu0 0
    %3099 = vmatpush1.bf16.msra.mxu0 0
    %3100 = vmatprep.subr.bf16.mxu0 0
    %3101 = vmatpush1.bf16.msra.mxu0 0
    %3102 = vmatprep.subr.bf16.mxu0 0
    %3103 = vmatpush1.bf16.msra.mxu0 0
    %3104 = vmatprep.subr.bf16.mxu0 0
    %3105 = vmatpush1.bf16.msra.mxu0 0
    %3106 = vmatprep.subr.bf16.mxu0 0
    %3107 = vmatpush1.bf16.msra.mxu0 0
    %3108 = vmatprep.subr.bf16.mxu0 0
    %3109 = vmatpush1.bf16.msra.mxu0 0
    %3110 = vmatprep.mubr.bf16.mxu0 0
    %3111 = vmatmul.mubr.bf16.gmra.mrb[0].mxu0 %v3067
    %v3112 = vpop.f32.mrb[0].mxu0
    %v3113 = vadd.f32 0.0, %v3112
    %v3114 = vpop.f32.mrb[0].mxu0
    %v3115 = vpop.f32.mrb[0].mxu0
    %v3116 = vadd.f32 0.0, %v3115
    %v3117 = vpop.f32.mrb[0].mxu0
    %3118 = vmatprep.mubr.bf16.mxu0 0
    %3119 = vmatmul.mubr.bf16.gmra.mrb[0].mxu0 %v3070
    %v3120 = vpop.f32.mrb[0].mxu0
    %v3121 = vadd.f32 0.0, %v3120
    %v3122 = vpop.f32.mrb[0].mxu0
    %v3123 = vpop.f32.mrb[0].mxu0
    %v3124 = vadd.f32 0.0, %v3123
    %v3125 = vpop.f32.mrb[0].mxu0
    %3126 = vmatprep.mubr.bf16.mxu0 0
    %3127 = vmatmul.mubr.bf16.gmra.mrb[0].mxu0 %v3073
    %v3128 = vpop.f32.mrb[0].mxu0
    %v3129 = vadd.f32 0.0, %v3128
    %v3130 = vpop.f32.mrb[0].mxu0
    %v3131 = vpop.f32.mrb[0].mxu0
    %v3132 = vadd.f32 0.0, %v3131
    %v3133 = vpop.f32.mrb[0].mxu0
    %3134 = vmatprep.mubr.bf16.mxu0 0
    %3135 = vmatmul.mubr.bf16.gmra.mrb[0].mxu0 %v3076
    %v3136 = vpop.f32.mrb[0].mxu0
    %v3137 = vadd.f32 0.0, %v3136
    %v3138 = vpop.f32.mrb[0].mxu0
    %v3139 = vpop.f32.mrb[0].mxu0
    %v3140 = vadd.f32 0.0, %v3139
    %v3141 = vpop.f32.mrb[0].mxu0
    %3142 = vdwg.mxu0
    %3151 = vrot.lane.b32.xlu0 %v3113, 24
    %v3152 = vpop.permute.xlu0 %3151
    %3153 = vrot.lane.b32.xlu0 %v3116, 24
    %v3154 = vpop.permute.xlu0 %3153
    %3155 = vrot.lane.b32.xlu0 %v3121, 24
    %v3156 = vpop.permute.xlu0 %3155
    %3157 = vrot.lane.b32.xlu0 %v3124, 24
    %v3158 = vpop.permute.xlu0 %3157
    %3159 = vrot.lane.b32.xlu0 %v3129, 24
    %v3160 = vpop.permute.xlu0 %3159
    %3161 = vrot.lane.b32.xlu0 %v3132, 24
    %v3162 = vpop.permute.xlu0 %3161
    %3163 = vrot.lane.b32.xlu0 %v3137, 24
    %v3164 = vpop.permute.xlu0 %3163
    %3165 = vrot.lane.b32.xlu0 %v3140, 24
    %v3166 = vpop.permute.xlu0 %3165
    %3175 = vst.msk [vmem:[#allocation3 + $0x40] sm:$0xff] %vm1846, %v3152
    %3176 = vst.msk [vmem:[#allocation3 + $0x48] sm:$0xff] %vm1846, %v3154
    %3177 = vst.msk [vmem:[#allocation3 + $0x50] sm:$0xff] %vm1846, %v3156
    %3178 = vst.msk [vmem:[#allocation3 + $0x58] sm:$0xff] %vm1846, %v3158
    %3179 = vst.msk [vmem:[#allocation3 + $0x60] sm:$0xff] %vm1846, %v3160
    %3180 = vst.msk [vmem:[#allocation3 + $0x68] sm:$0xff] %vm1846, %v3162
    %3181 = vst.msk [vmem:[#allocation3 + $0x70] sm:$0xff] %vm1846, %v3164
    %3182 = vst.msk [vmem:[#allocation3 + $0x78] sm:$0xff] %vm1846, %v3166
    %v3183 = vld [vmem:[#allocation3] sm:$0xff]
    %v3184 = vld [vmem:[#allocation3 + $0x8] sm:$0xff]
    %v3185 = vld [vmem:[#allocation3 + $0x10] sm:$0xff]
    %v3186 = vld [vmem:[#allocation3 + $0x18] sm:$0xff]
    %v3187 = vld [vmem:[#allocation3 + $0x20] sm:$0xff]
    %v3188 = vld [vmem:[#allocation3 + $0x28] sm:$0xff]
    %v3189 = vld [vmem:[#allocation3 + $0x30] sm:$0xff]
    %v3190 = vld [vmem:[#allocation3 + $0x38] sm:$0xff]
    %v3191 = vld [vmem:[#allocation3 + $0x40] sm:$0xff]
    %v3192 = vld [vmem:[#allocation3 + $0x48] sm:$0xff]
    %v3193 = vld [vmem:[#allocation3 + $0x50] sm:$0xff]
    %v3194 = vld [vmem:[#allocation3 + $0x58] sm:$0xff]
    %v3195 = vld [vmem:[#allocation3 + $0x60] sm:$0xff]
    %v3196 = vld [vmem:[#allocation3 + $0x68] sm:$0xff]
    %v3197 = vld [vmem:[#allocation3 + $0x70] sm:$0xff]
    %v3198 = vld [vmem:[#allocation3 + $0x78] sm:$0xff]
    %v3199 = vpack.c.bf16 %v3184, %v3183
    %v3200 = vpack.c.bf16 %v3186, %v3185
    %v3201 = vpack.c.bf16 %v3188, %v3187
    %v3202 = vpack.c.bf16 %v3190, %v3189
    %v3203 = vpack.c.bf16 %v3192, %v3191
    %v3204 = vpack.c.bf16 %v3194, %v3193
    %v3205 = vpack.c.bf16 %v3196, %v3195
    %v3206 = vpack.c.bf16 %v3198, %v3197
    %v3208 = vlaneseq
    %v3209 = vshrl.u32 %v3208, 7
    %v3210 = vsub.s32 0, %v3209
    %v3211 = vrot.slane %v73, %v3210
    %v3217 = vunpack.c.l.b16 %v69
    %v3218 = vunpack.c.l.b16 %v70
    %v3219 = vunpack.c.l.b16 %v71
    %v3220 = vunpack.c.l.b16 %v72
    %v3221 = vpack.c.b16 %v3218, %v3217
    %v3222 = vpack.c.b16 %v3220, %v3219
    %v3226 = vsel %vm104, %v3199, 0
    %v3229 = vsel %vm104, %v3200, 0
    %v3232 = vsel %vm104, %v3201, 0
    %v3235 = vsel %vm104, %v3202, 0
    %v3238 = vsel %vm104, %v3203, 0
    %v3241 = vsel %vm104, %v3204, 0
    %v3244 = vsel %vm104, %v3205, 0
    %v3247 = vsel %vm104, %v3206, 0
    %3249 = vmatprep.subr.bf16.mxu0 0
    %3250 = vmatpush1.bf16.msra.mxu0 %v3221
    %3251 = vmatprep.subr.bf16.mxu0 0
    %3252 = vmatpush1.bf16.msra.mxu0 %v3222
    %3253 = vmatprep.subr.bf16.mxu0 0
    %3254 = vmatpush1.bf16.msra.mxu0 0
    %3255 = vmatprep.subr.bf16.mxu0 0
    %3256 = vmatpush1.bf16.msra.mxu0 0
    %3257 = vmatprep.subr.bf16.mxu0 0
    %3258 = vmatpush1.bf16.msra.mxu0 0
    %3259 = vmatprep.subr.bf16.mxu0 0
    %3260 = vmatpush1.bf16.msra.mxu0 0
    %3261 = vmatprep.subr.bf16.mxu0 0
    %3262 = vmatpush1.bf16.msra.mxu0 0
    %3263 = vmatprep.subr.bf16.mxu0 0
    %3264 = vmatpush1.bf16.msra.mxu0 0
    %3265 = vmatprep.subr.bf16.mxu0 0
    %3266 = vmatpush1.bf16.msra.mxu0 0
    %3267 = vmatprep.subr.bf16.mxu0 0
    %3268 = vmatpush1.bf16.msra.mxu0 0
    %3269 = vmatprep.subr.bf16.mxu0 0
    %3270 = vmatpush1.bf16.msra.mxu0 0
    %3271 = vmatprep.subr.bf16.mxu0 0
    %3272 = vmatpush1.bf16.msra.mxu0 0
    %3273 = vmatprep.subr.bf16.mxu0 0
    %3274 = vmatpush1.bf16.msra.mxu0 0
    %3275 = vmatprep.subr.bf16.mxu0 0
    %3276 = vmatpush1.bf16.msra.mxu0 0
    %3277 = vmatprep.subr.bf16.mxu0 0
    %3278 = vmatpush1.bf16.msra.mxu0 0
    %3279 = vmatprep.subr.bf16.mxu0 0
    %3280 = vmatpush1.bf16.msra.mxu0 0
    %3281 = vmatprep.mubr.bf16.mxu0 0
    %3282 = vmatmul.mubr.bf16.gmra.mrb[0].mxu0 %v3226
    %v3283 = vpop.f32.mrb[0].mxu0
    %v3284 = vadd.f32 %v3211, %v3283
    %v3285 = vpop.f32.mrb[0].mxu0
    %v3286 = vpop.f32.mrb[0].mxu0
    %v3287 = vadd.f32 %v3211, %v3286
    %v3288 = vpop.f32.mrb[0].mxu0
    %3289 = vmatprep.mubr.bf16.mxu0 0
    %3290 = vmatmul.mubr.bf16.gmra.mrb[0].mxu0 %v3229
    %v3291 = vpop.f32.mrb[0].mxu0
    %v3292 = vadd.f32 %v3211, %v3291
    %v3293 = vpop.f32.mrb[0].mxu0
    %v3294 = vpop.f32.mrb[0].mxu0
    %v3295 = vadd.f32 %v3211, %v3294
    %v3296 = vpop.f32.mrb[0].mxu0
    %3297 = vmatprep.mubr.bf16.mxu0 0
    %3298 = vmatmul.mubr.bf16.gmra.mrb[0].mxu0 %v3232
    %v3299 = vpop.f32.mrb[0].mxu0
    %v3300 = vadd.f32 %v3211, %v3299
    %v3301 = vpop.f32.mrb[0].mxu0
    %v3302 = vpop.f32.mrb[0].mxu0
    %v3303 = vadd.f32 %v3211, %v3302
    %v3304 = vpop.f32.mrb[0].mxu0
    %3305 = vmatprep.mubr.bf16.mxu0 0
    %3306 = vmatmul.mubr.bf16.gmra.mrb[0].mxu0 %v3235
    %v3307 = vpop.f32.mrb[0].mxu0
    %v3308 = vadd.f32 %v3211, %v3307
    %v3309 = vpop.f32.mrb[0].mxu0
    %v3310 = vpop.f32.mrb[0].mxu0
    %v3311 = vadd.f32 %v3211, %v3310
    %v3312 = vpop.f32.mrb[0].mxu0
    %3313 = vmatprep.mubr.bf16.mxu0 0
    %3314 = vmatmul.mubr.bf16.gmra.mrb[0].mxu0 %v3238
    %v3315 = vpop.f32.mrb[0].mxu0
    %v3316 = vadd.f32 %v3211, %v3315
    %v3317 = vpop.f32.mrb[0].mxu0
    %v3318 = vpop.f32.mrb[0].mxu0
    %v3319 = vadd.f32 %v3211, %v3318
    %v3320 = vpop.f32.mrb[0].mxu0
    %3321 = vmatprep.mubr.bf16.mxu0 0
    %3322 = vmatmul.mubr.bf16.gmra.mrb[0].mxu0 %v3241
    %v3323 = vpop.f32.mrb[0].mxu0
    %v3324 = vadd.f32 %v3211, %v3323
    %v3325 = vpop.f32.mrb[0].mxu0
    %v3326 = vpop.f32.mrb[0].mxu0
    %v3327 = vadd.f32 %v3211, %v3326
    %v3328 = vpop.f32.mrb[0].mxu0
    %3329 = vmatprep.mubr.bf16.mxu0 0
    %3330 = vmatmul.mubr.bf16.gmra.mrb[0].mxu0 %v3244
    %v3331 = vpop.f32.mrb[0].mxu0
    %v3332 = vadd.f32 %v3211, %v3331
    %v3333 = vpop.f32.mrb[0].mxu0
    %v3334 = vpop.f32.mrb[0].mxu0
    %v3335 = vadd.f32 %v3211, %v3334
    %v3336 = vpop.f32.mrb[0].mxu0
    %3337 = vmatprep.mubr.bf16.mxu0 0
    %3338 = vmatmul.mubr.bf16.gmra.mrb[0].mxu0 %v3247
    %v3339 = vpop.f32.mrb[0].mxu0
    %v3340 = vadd.f32 %v3211, %v3339
    %v3341 = vpop.f32.mrb[0].mxu0
    %v3342 = vpop.f32.mrb[0].mxu0
    %v3343 = vadd.f32 %v3211, %v3342
    %v3344 = vpop.f32.mrb[0].mxu0
    %3345 = vdwg.mxu0
    %v3346 = vadd.f32 %v88, %v3284
    %v3347 = vadd.f32 %v89, %v3287
    %v3348 = vadd.f32 %v90, %v3292
    %v3349 = vadd.f32 %v91, %v3295
    %v3350 = vadd.f32 %v92, %v3300
    %v3351 = vadd.f32 %v93, %v3303
    %v3352 = vadd.f32 %v94, %v3308
    %v3353 = vadd.f32 %v95, %v3311
    %v3354 = vadd.f32 %v96, %v3316
    %v3355 = vadd.f32 %v97, %v3319
    %v3356 = vadd.f32 %v98, %v3324
    %v3357 = vadd.f32 %v99, %v3327
    %v3358 = vadd.f32 %v100, %v3332
    %v3359 = vadd.f32 %v101, %v3335
    %v3360 = vadd.f32 %v102, %v3340
    %v3361 = vadd.f32 %v103, %v3343
    %v3362 = vsel %vm104, %v3346, 0.0
    %3363 = vadd.xlane.f32.xlu0 %v3362
    %v3364 = vpop.xlane.xlu0 %3363
    %v3365 = vsel %vm104, %v3347, 0.0
    %3366 = vadd.xlane.f32.xlu0 %v3365
    %v3367 = vpop.xlane.xlu0 %3366
    %v3368 = vsel %vm104, %v3348, 0.0
    %3369 = vadd.xlane.f32.xlu0 %v3368
    %v3370 = vpop.xlane.xlu0 %3369
    %v3371 = vsel %vm104, %v3349, 0.0
    %3372 = vadd.xlane.f32.xlu0 %v3371
    %v3373 = vpop.xlane.xlu0 %3372
    %v3374 = vsel %vm104, %v3350, 0.0
    %3375 = vadd.xlane.f32.xlu0 %v3374
    %v3376 = vpop.xlane.xlu0 %3375
    %v3377 = vsel %vm104, %v3351, 0.0
    %3378 = vadd.xlane.f32.xlu0 %v3377
    %v3379 = vpop.xlane.xlu0 %3378
    %v3380 = vsel %vm104, %v3352, 0.0
    %3381 = vadd.xlane.f32.xlu0 %v3380
    %v3382 = vpop.xlane.xlu0 %3381
    %v3383 = vsel %vm104, %v3353, 0.0
    %3384 = vadd.xlane.f32.xlu0 %v3383
    %v3385 = vpop.xlane.xlu0 %3384
    %v3386 = vsel %vm104, %v3354, 0.0
    %3387 = vadd.xlane.f32.xlu0 %v3386
    %v3388 = vpop.xlane.xlu0 %3387
    %v3389 = vsel %vm104, %v3355, 0.0
    %3390 = vadd.xlane.f32.xlu0 %v3389
    %v3391 = vpop.xlane.xlu0 %3390
    %v3392 = vsel %vm104, %v3356, 0.0
    %3393 = vadd.xlane.f32.xlu0 %v3392
    %v3394 = vpop.xlane.xlu0 %3393
    %v3395 = vsel %vm104, %v3357, 0.0
    %3396 = vadd.xlane.f32.xlu0 %v3395
    %v3397 = vpop.xlane.xlu0 %3396
    %v3398 = vsel %vm104, %v3358, 0.0
    %3399 = vadd.xlane.f32.xlu0 %v3398
    %v3400 = vpop.xlane.xlu0 %3399
    %v3401 = vsel %vm104, %v3359, 0.0
    %3402 = vadd.xlane.f32.xlu0 %v3401
    %v3403 = vpop.xlane.xlu0 %3402
    %v3404 = vsel %vm104, %v3360, 0.0
    %3405 = vadd.xlane.f32.xlu0 %v3404
    %v3406 = vpop.xlane.xlu0 %3405
    %v3407 = vsel %vm104, %v3361, 0.0
    %3408 = vadd.xlane.f32.xlu0 %v3407
    %v3409 = vpop.xlane.xlu0 %3408
    %v3410 = vmul.f32 %v3364, %v153
    %v3411 = vmul.f32 %v3367, %v153
    %v3412 = vmul.f32 %v3370, %v153
    %v3413 = vmul.f32 %v3373, %v153
    %v3414 = vmul.f32 %v3376, %v153
    %v3415 = vmul.f32 %v3379, %v153
    %v3416 = vmul.f32 %v3382, %v153
    %v3417 = vmul.f32 %v3385, %v153
    %v3418 = vmul.f32 %v3388, %v153
    %v3419 = vmul.f32 %v3391, %v153
    %v3420 = vmul.f32 %v3394, %v153
    %v3421 = vmul.f32 %v3397, %v153
    %v3422 = vmul.f32 %v3400, %v153
    %v3423 = vmul.f32 %v3403, %v153
    %v3424 = vmul.f32 %v3406, %v153
    %v3425 = vmul.f32 %v3409, %v153
    %v3426 = vsub.f32 %v3346, %v3410
    %v3427 = vsub.f32 %v3347, %v3411
    %v3428 = vsub.f32 %v3348, %v3412
    %v3429 = vsub.f32 %v3349, %v3413
    %v3430 = vsub.f32 %v3350, %v3414
    %v3431 = vsub.f32 %v3351, %v3415
    %v3432 = vsub.f32 %v3352, %v3416
    %v3433 = vsub.f32 %v3353, %v3417
    %v3434 = vsub.f32 %v3354, %v3418
    %v3435 = vsub.f32 %v3355, %v3419
    %v3436 = vsub.f32 %v3356, %v3420
    %v3437 = vsub.f32 %v3357, %v3421
    %v3438 = vsub.f32 %v3358, %v3422
    %v3439 = vsub.f32 %v3359, %v3423
    %v3440 = vsub.f32 %v3360, %v3424
    %v3441 = vsub.f32 %v3361, %v3425
    %v3442 = vmul.f32 %v3426, %v3426
    %v3443 = vmul.f32 %v3427, %v3427
    %v3444 = vmul.f32 %v3428, %v3428
    %v3445 = vmul.f32 %v3429, %v3429
    %v3446 = vmul.f32 %v3430, %v3430
    %v3447 = vmul.f32 %v3431, %v3431
    %v3448 = vmul.f32 %v3432, %v3432
    %v3449 = vmul.f32 %v3433, %v3433
    %v3450 = vmul.f32 %v3434, %v3434
    %v3451 = vmul.f32 %v3435, %v3435
    %v3452 = vmul.f32 %v3436, %v3436
    %v3453 = vmul.f32 %v3437, %v3437
    %v3454 = vmul.f32 %v3438, %v3438
    %v3455 = vmul.f32 %v3439, %v3439
    %v3456 = vmul.f32 %v3440, %v3440
    %v3457 = vmul.f32 %v3441, %v3441
    %v3458 = vsel %vm104, %v3442, 0.0
    %3459 = vadd.xlane.f32.xlu0 %v3458
    %v3460 = vpop.xlane.xlu0 %3459
    %v3461 = vsel %vm104, %v3443, 0.0
    %3462 = vadd.xlane.f32.xlu0 %v3461
    %v3463 = vpop.xlane.xlu0 %3462
    %v3464 = vsel %vm104, %v3444, 0.0
    %3465 = vadd.xlane.f32.xlu0 %v3464
    %v3466 = vpop.xlane.xlu0 %3465
    %v3467 = vsel %vm104, %v3445, 0.0
    %3468 = vadd.xlane.f32.xlu0 %v3467
    %v3469 = vpop.xlane.xlu0 %3468
    %v3470 = vsel %vm104, %v3446, 0.0
    %3471 = vadd.xlane.f32.xlu0 %v3470
    %v3472 = vpop.xlane.xlu0 %3471
    %v3473 = vsel %vm104, %v3447, 0.0
    %3474 = vadd.xlane.f32.xlu0 %v3473
    %v3475 = vpop.xlane.xlu0 %3474
    %v3476 = vsel %vm104, %v3448, 0.0
    %3477 = vadd.xlane.f32.xlu0 %v3476
    %v3478 = vpop.xlane.xlu0 %3477
    %v3479 = vsel %vm104, %v3449, 0.0
    %3480 = vadd.xlane.f32.xlu0 %v3479
    %v3481 = vpop.xlane.xlu0 %3480
    %v3482 = vsel %vm104, %v3450, 0.0
    %3483 = vadd.xlane.f32.xlu0 %v3482
    %v3484 = vpop.xlane.xlu0 %3483
    %v3485 = vsel %vm104, %v3451, 0.0
    %3486 = vadd.xlane.f32.xlu0 %v3485
    %v3487 = vpop.xlane.xlu0 %3486
    %v3488 = vsel %vm104, %v3452, 0.0
    %3489 = vadd.xlane.f32.xlu0 %v3488
    %v3490 = vpop.xlane.xlu0 %3489
    %v3491 = vsel %vm104, %v3453, 0.0
    %3492 = vadd.xlane.f32.xlu0 %v3491
    %v3493 = vpop.xlane.xlu0 %3492
    %v3494 = vsel %vm104, %v3454, 0.0
    %3495 = vadd.xlane.f32.xlu0 %v3494
    %v3496 = vpop.xlane.xlu0 %3495
    %v3497 = vsel %vm104, %v3455, 0.0
    %3498 = vadd.xlane.f32.xlu0 %v3497
    %v3499 = vpop.xlane.xlu0 %3498
    %v3500 = vsel %vm104, %v3456, 0.0
    %3501 = vadd.xlane.f32.xlu0 %v3500
    %v3502 = vpop.xlane.xlu0 %3501
    %v3503 = vsel %vm104, %v3457, 0.0
    %3504 = vadd.xlane.f32.xlu0 %v3503
    %v3505 = vpop.xlane.xlu0 %3504
    %v3506 = vmul.f32 %v3460, %v153
    %v3507 = vmul.f32 %v3463, %v153
    %v3508 = vmul.f32 %v3466, %v153
    %v3509 = vmul.f32 %v3469, %v153
    %v3510 = vmul.f32 %v3472, %v153
    %v3511 = vmul.f32 %v3475, %v153
    %v3512 = vmul.f32 %v3478, %v153
    %v3513 = vmul.f32 %v3481, %v153
    %v3514 = vmul.f32 %v3484, %v153
    %v3515 = vmul.f32 %v3487, %v153
    %v3516 = vmul.f32 %v3490, %v153
    %v3517 = vmul.f32 %v3493, %v153
    %v3518 = vmul.f32 %v3496, %v153
    %v3519 = vmul.f32 %v3499, %v153
    %v3520 = vmul.f32 %v3502, %v153
    %v3521 = vmul.f32 %v3505, %v153
    %v3522 = vadd.f32 %v3506, 1e-05
    %v3523 = vadd.f32 %v3507, 1e-05
    %v3524 = vadd.f32 %v3508, 1e-05
    %v3525 = vadd.f32 %v3509, 1e-05
    %v3526 = vadd.f32 %v3510, 1e-05
    %v3527 = vadd.f32 %v3511, 1e-05
    %v3528 = vadd.f32 %v3512, 1e-05
    %v3529 = vadd.f32 %v3513, 1e-05
    %v3530 = vadd.f32 %v3514, 1e-05
    %v3531 = vadd.f32 %v3515, 1e-05
    %v3532 = vadd.f32 %v3516, 1e-05
    %v3533 = vadd.f32 %v3517, 1e-05
    %v3534 = vadd.f32 %v3518, 1e-05
    %v3535 = vadd.f32 %v3519, 1e-05
    %v3536 = vadd.f32 %v3520, 1e-05
    %v3537 = vadd.f32 %v3521, 1e-05
    %v3538 = vrsqrt.pop %v3522
    %v3539 = vrsqrt.pop %v3523
    %v3540 = vrsqrt.pop %v3524
    %v3541 = vrsqrt.pop %v3525
    %v3542 = vrsqrt.pop %v3526
    %v3543 = vrsqrt.pop %v3527
    %v3544 = vrsqrt.pop %v3528
    %v3545 = vrsqrt.pop %v3529
    %v3546 = vrsqrt.pop %v3530
    %v3547 = vrsqrt.pop %v3531
    %v3548 = vrsqrt.pop %v3532
    %v3549 = vrsqrt.pop %v3533
    %v3550 = vrsqrt.pop %v3534
    %v3551 = vrsqrt.pop %v3535
    %v3552 = vrsqrt.pop %v3536
    %v3553 = vrsqrt.pop %v3537
    %v3554 = vmul.f32 %v3426, %v3538
    %v3555 = vmul.f32 %v3427, %v3539
    %v3556 = vmul.f32 %v3428, %v3540
    %v3557 = vmul.f32 %v3429, %v3541
    %v3558 = vmul.f32 %v3430, %v3542
    %v3559 = vmul.f32 %v3431, %v3543
    %v3560 = vmul.f32 %v3432, %v3544
    %v3561 = vmul.f32 %v3433, %v3545
    %v3562 = vmul.f32 %v3434, %v3546
    %v3563 = vmul.f32 %v3435, %v3547
    %v3564 = vmul.f32 %v3436, %v3548
    %v3565 = vmul.f32 %v3437, %v3549
    %v3566 = vmul.f32 %v3438, %v3550
    %v3567 = vmul.f32 %v3439, %v3551
    %v3568 = vmul.f32 %v3440, %v3552
    %v3569 = vmul.f32 %v3441, %v3553
    %v3571 = vlaneseq
    %v3572 = vshrl.u32 %v3571, 7
    %v3573 = vsub.s32 0, %v3572
    %v3574 = vrot.slane %v62, %v3573
    %v3576 = vmul.f32 %v3554, %v3574
    %v3577 = vmul.f32 %v3555, %v3574
    %v3578 = vmul.f32 %v3556, %v3574
    %v3579 = vmul.f32 %v3557, %v3574
    %v3580 = vmul.f32 %v3558, %v3574
    %v3581 = vmul.f32 %v3559, %v3574
    %v3582 = vmul.f32 %v3560, %v3574
    %v3583 = vmul.f32 %v3561, %v3574
    %v3584 = vmul.f32 %v3562, %v3574
    %v3585 = vmul.f32 %v3563, %v3574
    %v3586 = vmul.f32 %v3564, %v3574
    %v3587 = vmul.f32 %v3565, %v3574
    %v3588 = vmul.f32 %v3566, %v3574
    %v3589 = vmul.f32 %v3567, %v3574
    %v3590 = vmul.f32 %v3568, %v3574
    %v3591 = vmul.f32 %v3569, %v3574
    %v3593 = vlaneseq
    %v3594 = vshrl.u32 %v3593, 7
    %v3595 = vsub.s32 0, %v3594
    %v3596 = vrot.slane %v63, %v3595
    %v3598 = vadd.f32 %v3576, %v3596
    %v3599 = vadd.f32 %v3577, %v3596
    %v3600 = vadd.f32 %v3578, %v3596
    %v3601 = vadd.f32 %v3579, %v3596
    %v3602 = vadd.f32 %v3580, %v3596
    %v3603 = vadd.f32 %v3581, %v3596
    %v3604 = vadd.f32 %v3582, %v3596
    %v3605 = vadd.f32 %v3583, %v3596
    %v3606 = vadd.f32 %v3584, %v3596
    %v3607 = vadd.f32 %v3585, %v3596
    %v3608 = vadd.f32 %v3586, %v3596
    %v3609 = vadd.f32 %v3587, %v3596
    %v3610 = vadd.f32 %v3588, %v3596
    %v3611 = vadd.f32 %v3589, %v3596
    %v3612 = vadd.f32 %v3590, %v3596
    %v3613 = vadd.f32 %v3591, %v3596
    %v3614 = vpack.c.bf16 %v3599, %v3598
    %v3615 = vpack.c.bf16 %v3601, %v3600
    %v3616 = vpack.c.bf16 %v3603, %v3602
    %v3617 = vpack.c.bf16 %v3605, %v3604
    %v3618 = vpack.c.bf16 %v3607, %v3606
    %v3619 = vpack.c.bf16 %v3609, %v3608
    %v3620 = vpack.c.bf16 %v3611, %v3610
    %v3621 = vpack.c.bf16 %v3613, %v3612
    %v3623 = vlaneseq
    %v3624 = vshrl.u32 %v3623, 7
    %v3625 = vsub.s32 0, %v3624
    %v3626 = vrot.slane %v78, %v3625
    %v3632 = vunpack.c.l.b16 %v74
    %v3633 = vunpack.c.l.b16 %v75
    %v3634 = vunpack.c.l.b16 %v76
    %v3635 = vunpack.c.l.b16 %v77
    %v3636 = vpack.c.b16 %v3633, %v3632
    %v3637 = vpack.c.b16 %v3635, %v3634
    %v3641 = vsel %vm104, %v3614, 0
    %v3644 = vsel %vm104, %v3615, 0
    %v3647 = vsel %vm104, %v3616, 0
    %v3650 = vsel %vm104, %v3617, 0
    %v3653 = vsel %vm104, %v3618, 0
    %v3656 = vsel %vm104, %v3619, 0
    %v3659 = vsel %vm104, %v3620, 0
    %v3662 = vsel %vm104, %v3621, 0
    %3664 = vmatprep.subr.bf16.mxu0 0
    %3665 = vmatpush1.bf16.msra.mxu0 %v3636
    %3666 = vmatprep.subr.bf16.mxu0 0
    %3667 = vmatpush1.bf16.msra.mxu0 %v3637
    %3668 = vmatprep.subr.bf16.mxu0 0
    %3669 = vmatpush1.bf16.msra.mxu0 0
    %3670 = vmatprep.subr.bf16.mxu0 0
    %3671 = vmatpush1.bf16.msra.mxu0 0
    %3672 = vmatprep.subr.bf16.mxu0 0
    %3673 = vmatpush1.bf16.msra.mxu0 0
    %3674 = vmatprep.subr.bf16.mxu0 0
    %3675 = vmatpush1.bf16.msra.mxu0 0
    %3676 = vmatprep.subr.bf16.mxu0 0
    %3677 = vmatpush1.bf16.msra.mxu0 0
    %3678 = vmatprep.subr.bf16.mxu0 0
    %3679 = vmatpush1.bf16.msra.mxu0 0
    %3680 = vmatprep.subr.bf16.mxu0 0
    %3681 = vmatpush1.bf16.msra.mxu0 0
    %3682 = vmatprep.subr.bf16.mxu0 0
    %3683 = vmatpush1.bf16.msra.mxu0 0
    %3684 = vmatprep.subr.bf16.mxu0 0
    %3685 = vmatpush1.bf16.msra.mxu0 0
    %3686 = vmatprep.subr.bf16.mxu0 0
    %3687 = vmatpush1.bf16.msra.mxu0 0
    %3688 = vmatprep.subr.bf16.mxu0 0
    %3689 = vmatpush1.bf16.msra.mxu0 0
    %3690 = vmatprep.subr.bf16.mxu0 0
    %3691 = vmatpush1.bf16.msra.mxu0 0
    %3692 = vmatprep.subr.bf16.mxu0 0
    %3693 = vmatpush1.bf16.msra.mxu0 0
    %3694 = vmatprep.subr.bf16.mxu0 0
    %3695 = vmatpush1.bf16.msra.mxu0 0
    %3696 = vmatprep.mubr.bf16.mxu0 0
    %3697 = vmatmul.mubr.bf16.gmra.mrb[0].mxu0 %v3641
    %v3698 = vpop.f32.mrb[0].mxu0
    %v3699 = vadd.f32 %v3626, %v3698
    %v3700 = vpop.f32.mrb[0].mxu0
    %v3701 = vpop.f32.mrb[0].mxu0
    %v3702 = vadd.f32 %v3626, %v3701
    %v3703 = vpop.f32.mrb[0].mxu0
    %3704 = vmatprep.mubr.bf16.mxu0 0
    %3705 = vmatmul.mubr.bf16.gmra.mrb[0].mxu0 %v3644
    %v3706 = vpop.f32.mrb[0].mxu0
    %v3707 = vadd.f32 %v3626, %v3706
    %v3708 = vpop.f32.mrb[0].mxu0
    %v3709 = vpop.f32.mrb[0].mxu0
    %v3710 = vadd.f32 %v3626, %v3709
    %v3711 = vpop.f32.mrb[0].mxu0
    %3712 = vmatprep.mubr.bf16.mxu0 0
    %3713 = vmatmul.mubr.bf16.gmra.mrb[0].mxu0 %v3647
    %v3714 = vpop.f32.mrb[0].mxu0
    %v3715 = vadd.f32 %v3626, %v3714
    %v3716 = vpop.f32.mrb[0].mxu0
    %v3717 = vpop.f32.mrb[0].mxu0
    %v3718 = vadd.f32 %v3626, %v3717
    %v3719 = vpop.f32.mrb[0].mxu0
    %3720 = vmatprep.mubr.bf16.mxu0 0
    %3721 = vmatmul.mubr.bf16.gmra.mrb[0].mxu0 %v3650
    %v3722 = vpop.f32.mrb[0].mxu0
    %v3723 = vadd.f32 %v3626, %v3722
    %v3724 = vpop.f32.mrb[0].mxu0
    %v3725 = vpop.f32.mrb[0].mxu0
    %v3726 = vadd.f32 %v3626, %v3725
    %v3727 = vpop.f32.mrb[0].mxu0
    %3728 = vmatprep.mubr.bf16.mxu0 0
    %3729 = vmatmul.mubr.bf16.gmra.mrb[0].mxu0 %v3653
    %v3730 = vpop.f32.mrb[0].mxu0
    %v3731 = vadd.f32 %v3626, %v3730
    %v3732 = vpop.f32.mrb[0].mxu0
    %v3733 = vpop.f32.mrb[0].mxu0
    %v3734 = vadd.f32 %v3626, %v3733
    %v3735 = vpop.f32.mrb[0].mxu0
    %3736 = vmatprep.mubr.bf16.mxu0 0
    %3737 = vmatmul.mubr.bf16.gmra.mrb[0].mxu0 %v3656
    %v3738 = vpop.f32.mrb[0].mxu0
    %v3739 = vadd.f32 %v3626, %v3738
    %v3740 = vpop.f32.mrb[0].mxu0
    %v3741 = vpop.f32.mrb[0].mxu0
    %v3742 = vadd.f32 %v3626, %v3741
    %v3743 = vpop.f32.mrb[0].mxu0
    %3744 = vmatprep.mubr.bf16.mxu0 0
    %3745 = vmatmul.mubr.bf16.gmra.mrb[0].mxu0 %v3659
    %v3746 = vpop.f32.mrb[0].mxu0
    %v3747 = vadd.f32 %v3626, %v3746
    %v3748 = vpop.f32.mrb[0].mxu0
    %v3749 = vpop.f32.mrb[0].mxu0
    %v3750 = vadd.f32 %v3626, %v3749
    %v3751 = vpop.f32.mrb[0].mxu0
    %3752 = vmatprep.mubr.bf16.mxu0 0
    %3753 = vmatmul.mubr.bf16.gmra.mrb[0].mxu0 %v3662
    %v3754 = vpop.f32.mrb[0].mxu0
    %v3755 = vadd.f32 %v3626, %v3754
    %v3756 = vpop.f32.mrb[0].mxu0
    %v3757 = vpop.f32.mrb[0].mxu0
    %v3758 = vadd.f32 %v3626, %v3757
    %v3759 = vpop.f32.mrb[0].mxu0
    %3760 = vdwg.mxu0
    %v3761 = vmul.f32 %v3699, 0.5
    %v3762 = vmul.f32 %v3702, 0.5
    %v3763 = vmul.f32 %v3707, 0.5
    %v3764 = vmul.f32 %v3710, 0.5
    %v3765 = vmul.f32 %v3715, 0.5
    %v3766 = vmul.f32 %v3718, 0.5
    %v3767 = vmul.f32 %v3723, 0.5
    %v3768 = vmul.f32 %v3726, 0.5
    %v3769 = vmul.f32 %v3731, 0.5
    %v3770 = vmul.f32 %v3734, 0.5
    %v3771 = vmul.f32 %v3739, 0.5
    %v3772 = vmul.f32 %v3742, 0.5
    %v3773 = vmul.f32 %v3747, 0.5
    %v3774 = vmul.f32 %v3750, 0.5
    %v3775 = vmul.f32 %v3755, 0.5
    %v3776 = vmul.f32 %v3758, 0.5
    %v3777 = vmul.f32 %v3699, %v3699
    %v3778 = vmul.f32 %v3702, %v3702
    %v3779 = vmul.f32 %v3707, %v3707
    %v3780 = vmul.f32 %v3710, %v3710
    %v3781 = vmul.f32 %v3715, %v3715
    %v3782 = vmul.f32 %v3718, %v3718
    %v3783 = vmul.f32 %v3723, %v3723
    %v3784 = vmul.f32 %v3726, %v3726
    %v3785 = vmul.f32 %v3731, %v3731
    %v3786 = vmul.f32 %v3734, %v3734
    %v3787 = vmul.f32 %v3739, %v3739
    %v3788 = vmul.f32 %v3742, %v3742
    %v3789 = vmul.f32 %v3747, %v3747
    %v3790 = vmul.f32 %v3750, %v3750
    %v3791 = vmul.f32 %v3755, %v3755
    %v3792 = vmul.f32 %v3758, %v3758
    %v3793 = vmul.f32 %v3777, %v3699
    %v3794 = vmul.f32 %v3778, %v3702
    %v3795 = vmul.f32 %v3779, %v3707
    %v3796 = vmul.f32 %v3780, %v3710
    %v3797 = vmul.f32 %v3781, %v3715
    %v3798 = vmul.f32 %v3782, %v3718
    %v3799 = vmul.f32 %v3783, %v3723
    %v3800 = vmul.f32 %v3784, %v3726
    %v3801 = vmul.f32 %v3785, %v3731
    %v3802 = vmul.f32 %v3786, %v3734
    %v3803 = vmul.f32 %v3787, %v3739
    %v3804 = vmul.f32 %v3788, %v3742
    %v3805 = vmul.f32 %v3789, %v3747
    %v3806 = vmul.f32 %v3790, %v3750
    %v3807 = vmul.f32 %v3791, %v3755
    %v3808 = vmul.f32 %v3792, %v3758
    %v3809 = vmul.f32 %v3793, 0.044715
    %v3810 = vmul.f32 %v3794, 0.044715
    %v3811 = vmul.f32 %v3795, 0.044715
    %v3812 = vmul.f32 %v3796, 0.044715
    %v3813 = vmul.f32 %v3797, 0.044715
    %v3814 = vmul.f32 %v3798, 0.044715
    %v3815 = vmul.f32 %v3799, 0.044715
    %v3816 = vmul.f32 %v3800, 0.044715
    %v3817 = vmul.f32 %v3801, 0.044715
    %v3818 = vmul.f32 %v3802, 0.044715
    %v3819 = vmul.f32 %v3803, 0.044715
    %v3820 = vmul.f32 %v3804, 0.044715
    %v3821 = vmul.f32 %v3805, 0.044715
    %v3822 = vmul.f32 %v3806, 0.044715
    %v3823 = vmul.f32 %v3807, 0.044715
    %v3824 = vmul.f32 %v3808, 0.044715
    %v3825 = vadd.f32 %v3699, %v3809
    %v3826 = vadd.f32 %v3702, %v3810
    %v3827 = vadd.f32 %v3707, %v3811
    %v3828 = vadd.f32 %v3710, %v3812
    %v3829 = vadd.f32 %v3715, %v3813
    %v3830 = vadd.f32 %v3718, %v3814
    %v3831 = vadd.f32 %v3723, %v3815
    %v3832 = vadd.f32 %v3726, %v3816
    %v3833 = vadd.f32 %v3731, %v3817
    %v3834 = vadd.f32 %v3734, %v3818
    %v3835 = vadd.f32 %v3739, %v3819
    %v3836 = vadd.f32 %v3742, %v3820
    %v3837 = vadd.f32 %v3747, %v3821
    %v3838 = vadd.f32 %v3750, %v3822
    %v3839 = vadd.f32 %v3755, %v3823
    %v3840 = vadd.f32 %v3758, %v3824
    %v3841 = vmul.f32 %v3825, 0.7978846
    %v3842 = vmul.f32 %v3826, 0.7978846
    %v3843 = vmul.f32 %v3827, 0.7978846
    %v3844 = vmul.f32 %v3828, 0.7978846
    %v3845 = vmul.f32 %v3829, 0.7978846
    %v3846 = vmul.f32 %v3830, 0.7978846
    %v3847 = vmul.f32 %v3831, 0.7978846
    %v3848 = vmul.f32 %v3832, 0.7978846
    %v3849 = vmul.f32 %v3833, 0.7978846
    %v3850 = vmul.f32 %v3834, 0.7978846
    %v3851 = vmul.f32 %v3835, 0.7978846
    %v3852 = vmul.f32 %v3836, 0.7978846
    %v3853 = vmul.f32 %v3837, 0.7978846
    %v3854 = vmul.f32 %v3838, 0.7978846
    %v3855 = vmul.f32 %v3839, 0.7978846
    %v3856 = vmul.f32 %v3840, 0.7978846
    %v3857 = vtanh.pop %v3841
    %v3858 = vtanh.pop %v3842
    %v3859 = vtanh.pop %v3843
    %v3860 = vtanh.pop %v3844
    %v3861 = vtanh.pop %v3845
    %v3862 = vtanh.pop %v3846
    %v3863 = vtanh.pop %v3847
    %v3864 = vtanh.pop %v3848
    %v3865 = vtanh.pop %v3849
    %v3866 = vtanh.pop %v3850
    %v3867 = vtanh.pop %v3851
    %v3868 = vtanh.pop %v3852
    %v3869 = vtanh.pop %v3853
    %v3870 = vtanh.pop %v3854
    %v3871 = vtanh.pop %v3855
    %v3872 = vtanh.pop %v3856
    %v3873 = vadd.f32 %v3857, 1.0
    %v3874 = vadd.f32 %v3858, 1.0
    %v3875 = vadd.f32 %v3859, 1.0
    %v3876 = vadd.f32 %v3860, 1.0
    %v3877 = vadd.f32 %v3861, 1.0
    %v3878 = vadd.f32 %v3862, 1.0
    %v3879 = vadd.f32 %v3863, 1.0
    %v3880 = vadd.f32 %v3864, 1.0
    %v3881 = vadd.f32 %v3865, 1.0
    %v3882 = vadd.f32 %v3866, 1.0
    %v3883 = vadd.f32 %v3867, 1.0
    %v3884 = vadd.f32 %v3868, 1.0
    %v3885 = vadd.f32 %v3869, 1.0
    %v3886 = vadd.f32 %v3870, 1.0
    %v3887 = vadd.f32 %v3871, 1.0
    %v3888 = vadd.f32 %v3872, 1.0
    %v3889 = vmul.f32 %v3761, %v3873
    %v3890 = vmul.f32 %v3762, %v3874
    %v3891 = vmul.f32 %v3763, %v3875
    %v3892 = vmul.f32 %v3764, %v3876
    %v3893 = vmul.f32 %v3765, %v3877
    %v3894 = vmul.f32 %v3766, %v3878
    %v3895 = vmul.f32 %v3767, %v3879
    %v3896 = vmul.f32 %v3768, %v3880
    %v3897 = vmul.f32 %v3769, %v3881
    %v3898 = vmul.f32 %v3770, %v3882
    %v3899 = vmul.f32 %v3771, %v3883
    %v3900 = vmul.f32 %v3772, %v3884
    %v3901 = vmul.f32 %v3773, %v3885
    %v3902 = vmul.f32 %v3774, %v3886
    %v3903 = vmul.f32 %v3775, %v3887
    %v3904 = vmul.f32 %v3776, %v3888
    %v3905 = vpack.c.bf16 %v3890, %v3889
    %v3906 = vpack.c.bf16 %v3892, %v3891
    %v3907 = vpack.c.bf16 %v3894, %v3893
    %v3908 = vpack.c.bf16 %v3896, %v3895
    %v3909 = vpack.c.bf16 %v3898, %v3897
    %v3910 = vpack.c.bf16 %v3900, %v3899
    %v3911 = vpack.c.bf16 %v3902, %v3901
    %v3912 = vpack.c.bf16 %v3904, %v3903
    %v3914 = vlaneseq
    %v3915 = vshrl.u32 %v3914, 7
    %v3916 = vsub.s32 0, %v3915
    %v3917 = vrot.slane %v87, %v3916
    %v3927 = vunpack.c.l.b16 %v79
    %v3928 = vunpack.c.l.b16 %v80
    %v3929 = vunpack.c.l.b16 %v81
    %v3930 = vunpack.c.l.b16 %v82
    %v3931 = vunpack.c.l.b16 %v83
    %v3932 = vunpack.c.l.b16 %v84
    %v3933 = vunpack.c.l.b16 %v85
    %v3934 = vunpack.c.l.b16 %v86
    %v3935 = vpack.c.b16 %v3928, %v3927
    %v3936 = vpack.c.b16 %v3930, %v3929
    %v3937 = vpack.c.b16 %v3932, %v3931
    %v3938 = vpack.c.b16 %v3934, %v3933
    %v3944 = vsel %vm636, %v3905, 0
    %v3947 = vsel %vm636, %v3906, 0
    %v3950 = vsel %vm636, %v3907, 0
    %v3953 = vsel %vm636, %v3908, 0
    %v3956 = vsel %vm636, %v3909, 0
    %v3959 = vsel %vm636, %v3910, 0
    %v3962 = vsel %vm636, %v3911, 0
    %v3965 = vsel %vm636, %v3912, 0
    %3967 = vmatprep.subr.bf16.mxu0 0
    %3968 = vmatpush1.bf16.msra.mxu0 %v3935
    %3969 = vmatprep.subr.bf16.mxu0 0
    %3970 = vmatpush1.bf16.msra.mxu0 %v3936
    %3971 = vmatprep.subr.bf16.mxu0 0
    %3972 = vmatpush1.bf16.msra.mxu0 %v3937
    %3973 = vmatprep.subr.bf16.mxu0 0
    %3974 = vmatpush1.bf16.msra.mxu0 %v3938
    %3975 = vmatprep.subr.bf16.mxu0 0
    %3976 = vmatpush1.bf16.msra.mxu0 0
    %3977 = vmatprep.subr.bf16.mxu0 0
    %3978 = vmatpush1.bf16.msra.mxu0 0
    %3979 = vmatprep.subr.bf16.mxu0 0
    %3980 = vmatpush1.bf16.msra.mxu0 0
    %3981 = vmatprep.subr.bf16.mxu0 0
    %3982 = vmatpush1.bf16.msra.mxu0 0
    %3983 = vmatprep.subr.bf16.mxu0 0
    %3984 = vmatpush1.bf16.msra.mxu0 0
    %3985 = vmatprep.subr.bf16.mxu0 0
    %3986 = vmatpush1.bf16.msra.mxu0 0
    %3987 = vmatprep.subr.bf16.mxu0 0
    %3988 = vmatpush1.bf16.msra.mxu0 0
    %3989 = vmatprep.subr.bf16.mxu0 0
    %3990 = vmatpush1.bf16.msra.mxu0 0
    %3991 = vmatprep.subr.bf16.mxu0 0
    %3992 = vmatpush1.bf16.msra.mxu0 0
    %3993 = vmatprep.subr.bf16.mxu0 0
    %3994 = vmatpush1.bf16.msra.mxu0 0
    %3995 = vmatprep.subr.bf16.mxu0 0
    %3996 = vmatpush1.bf16.msra.mxu0 0
    %3997 = vmatprep.subr.bf16.mxu0 0
    %3998 = vmatpush1.bf16.msra.mxu0 0
    %3999 = vmatprep.mubr.bf16.mxu0 0
    %4000 = vmatmul.mubr.bf16.gmra.mrb[0].mxu0 %v3944
    %v4001 = vpop.f32.mrb[0].mxu0
    %v4002 = vadd.f32 %v3917, %v4001
    %v4003 = vpop.f32.mrb[0].mxu0
    %v4004 = vpop.f32.mrb[0].mxu0
    %v4005 = vadd.f32 %v3917, %v4004
    %v4006 = vpop.f32.mrb[0].mxu0
    %4007 = vmatprep.mubr.bf16.mxu0 0
    %4008 = vmatmul.mubr.bf16.gmra.mrb[0].mxu0 %v3947
    %v4009 = vpop.f32.mrb[0].mxu0
    %v4010 = vadd.f32 %v3917, %v4009
    %v4011 = vpop.f32.mrb[0].mxu0
    %v4012 = vpop.f32.mrb[0].mxu0
    %v4013 = vadd.f32 %v3917, %v4012
    %v4014 = vpop.f32.mrb[0].mxu0
    %4015 = vmatprep.mubr.bf16.mxu0 0
    %4016 = vmatmul.mubr.bf16.gmra.mrb[0].mxu0 %v3950
    %v4017 = vpop.f32.mrb[0].mxu0
    %v4018 = vadd.f32 %v3917, %v4017
    %v4019 = vpop.f32.mrb[0].mxu0
    %v4020 = vpop.f32.mrb[0].mxu0
    %v4021 = vadd.f32 %v3917, %v4020
    %v4022 = vpop.f32.mrb[0].mxu0
    %4023 = vmatprep.mubr.bf16.mxu0 0
    %4024 = vmatmul.mubr.bf16.gmra.mrb[0].mxu0 %v3953
    %v4025 = vpop.f32.mrb[0].mxu0
    %v4026 = vadd.f32 %v3917, %v4025
    %v4027 = vpop.f32.mrb[0].mxu0
    %v4028 = vpop.f32.mrb[0].mxu0
    %v4029 = vadd.f32 %v3917, %v4028
    %v4030 = vpop.f32.mrb[0].mxu0
    %4031 = vmatprep.mubr.bf16.mxu0 0
    %4032 = vmatmul.mubr.bf16.gmra.mrb[0].mxu0 %v3956
    %v4033 = vpop.f32.mrb[0].mxu0
    %v4034 = vadd.f32 %v3917, %v4033
    %v4035 = vpop.f32.mrb[0].mxu0
    %v4036 = vpop.f32.mrb[0].mxu0
    %v4037 = vadd.f32 %v3917, %v4036
    %v4038 = vpop.f32.mrb[0].mxu0
    %4039 = vmatprep.mubr.bf16.mxu0 0
    %4040 = vmatmul.mubr.bf16.gmra.mrb[0].mxu0 %v3959
    %v4041 = vpop.f32.mrb[0].mxu0
    %v4042 = vadd.f32 %v3917, %v4041
    %v4043 = vpop.f32.mrb[0].mxu0
    %v4044 = vpop.f32.mrb[0].mxu0
    %v4045 = vadd.f32 %v3917, %v4044
    %v4046 = vpop.f32.mrb[0].mxu0
    %4047 = vmatprep.mubr.bf16.mxu0 0
    %4048 = vmatmul.mubr.bf16.gmra.mrb[0].mxu0 %v3962
    %v4049 = vpop.f32.mrb[0].mxu0
    %v4050 = vadd.f32 %v3917, %v4049
    %v4051 = vpop.f32.mrb[0].mxu0
    %v4052 = vpop.f32.mrb[0].mxu0
    %v4053 = vadd.f32 %v3917, %v4052
    %v4054 = vpop.f32.mrb[0].mxu0
    %4055 = vmatprep.mubr.bf16.mxu0 0
    %4056 = vmatmul.mubr.bf16.gmra.mrb[0].mxu0 %v3965
    %v4057 = vpop.f32.mrb[0].mxu0
    %v4058 = vadd.f32 %v3917, %v4057
    %v4059 = vpop.f32.mrb[0].mxu0
    %v4060 = vpop.f32.mrb[0].mxu0
    %v4061 = vadd.f32 %v3917, %v4060
    %v4062 = vpop.f32.mrb[0].mxu0
    %4063 = vdwg.mxu0
    %v4064 = vmul.f32 %v4002, 0.5
    %v4065 = vmul.f32 %v4005, 0.5
    %v4066 = vmul.f32 %v4010, 0.5
    %v4067 = vmul.f32 %v4013, 0.5
    %v4068 = vmul.f32 %v4018, 0.5
    %v4069 = vmul.f32 %v4021, 0.5
    %v4070 = vmul.f32 %v4026, 0.5
    %v4071 = vmul.f32 %v4029, 0.5
    %v4072 = vmul.f32 %v4034, 0.5
    %v4073 = vmul.f32 %v4037, 0.5
    %v4074 = vmul.f32 %v4042, 0.5
    %v4075 = vmul.f32 %v4045, 0.5
    %v4076 = vmul.f32 %v4050, 0.5
    %v4077 = vmul.f32 %v4053, 0.5
    %v4078 = vmul.f32 %v4058, 0.5
    %v4079 = vmul.f32 %v4061, 0.5
    %v4080 = vmul.f32 %v4002, %v4002
    %v4081 = vmul.f32 %v4005, %v4005
    %v4082 = vmul.f32 %v4010, %v4010
    %v4083 = vmul.f32 %v4013, %v4013
    %v4084 = vmul.f32 %v4018, %v4018
    %v4085 = vmul.f32 %v4021, %v4021
    %v4086 = vmul.f32 %v4026, %v4026
    %v4087 = vmul.f32 %v4029, %v4029
    %v4088 = vmul.f32 %v4034, %v4034
    %v4089 = vmul.f32 %v4037, %v4037
    %v4090 = vmul.f32 %v4042, %v4042
    %v4091 = vmul.f32 %v4045, %v4045
    %v4092 = vmul.f32 %v4050, %v4050
    %v4093 = vmul.f32 %v4053, %v4053
    %v4094 = vmul.f32 %v4058, %v4058
    %v4095 = vmul.f32 %v4061, %v4061
    %v4096 = vmul.f32 %v4080, %v4002
    %v4097 = vmul.f32 %v4081, %v4005
    %v4098 = vmul.f32 %v4082, %v4010
    %v4099 = vmul.f32 %v4083, %v4013
    %v4100 = vmul.f32 %v4084, %v4018
    %v4101 = vmul.f32 %v4085, %v4021
    %v4102 = vmul.f32 %v4086, %v4026
    %v4103 = vmul.f32 %v4087, %v4029
    %v4104 = vmul.f32 %v4088, %v4034
    %v4105 = vmul.f32 %v4089, %v4037
    %v4106 = vmul.f32 %v4090, %v4042
    %v4107 = vmul.f32 %v4091, %v4045
    %v4108 = vmul.f32 %v4092, %v4050
    %v4109 = vmul.f32 %v4093, %v4053
    %v4110 = vmul.f32 %v4094, %v4058
    %v4111 = vmul.f32 %v4095, %v4061
    %v4112 = vmul.f32 %v4096, 0.044715
    %v4113 = vmul.f32 %v4097, 0.044715
    %v4114 = vmul.f32 %v4098, 0.044715
    %v4115 = vmul.f32 %v4099, 0.044715
    %v4116 = vmul.f32 %v4100, 0.044715
    %v4117 = vmul.f32 %v4101, 0.044715
    %v4118 = vmul.f32 %v4102, 0.044715
    %v4119 = vmul.f32 %v4103, 0.044715
    %v4120 = vmul.f32 %v4104, 0.044715
    %v4121 = vmul.f32 %v4105, 0.044715
    %v4122 = vmul.f32 %v4106, 0.044715
    %v4123 = vmul.f32 %v4107, 0.044715
    %v4124 = vmul.f32 %v4108, 0.044715
    %v4125 = vmul.f32 %v4109, 0.044715
    %v4126 = vmul.f32 %v4110, 0.044715
    %v4127 = vmul.f32 %v4111, 0.044715
    %v4128 = vadd.f32 %v4002, %v4112
    %v4129 = vadd.f32 %v4005, %v4113
    %v4130 = vadd.f32 %v4010, %v4114
    %v4131 = vadd.f32 %v4013, %v4115
    %v4132 = vadd.f32 %v4018, %v4116
    %v4133 = vadd.f32 %v4021, %v4117
    %v4134 = vadd.f32 %v4026, %v4118
    %v4135 = vadd.f32 %v4029, %v4119
    %v4136 = vadd.f32 %v4034, %v4120
    %v4137 = vadd.f32 %v4037, %v4121
    %v4138 = vadd.f32 %v4042, %v4122
    %v4139 = vadd.f32 %v4045, %v4123
    %v4140 = vadd.f32 %v4050, %v4124
    %v4141 = vadd.f32 %v4053, %v4125
    %v4142 = vadd.f32 %v4058, %v4126
    %v4143 = vadd.f32 %v4061, %v4127
    %v4144 = vmul.f32 %v4128, 0.7978846
    %v4145 = vmul.f32 %v4129, 0.7978846
    %v4146 = vmul.f32 %v4130, 0.7978846
    %v4147 = vmul.f32 %v4131, 0.7978846
    %v4148 = vmul.f32 %v4132, 0.7978846
    %v4149 = vmul.f32 %v4133, 0.7978846
    %v4150 = vmul.f32 %v4134, 0.7978846
    %v4151 = vmul.f32 %v4135, 0.7978846
    %v4152 = vmul.f32 %v4136, 0.7978846
    %v4153 = vmul.f32 %v4137, 0.7978846
    %v4154 = vmul.f32 %v4138, 0.7978846
    %v4155 = vmul.f32 %v4139, 0.7978846
    %v4156 = vmul.f32 %v4140, 0.7978846
    %v4157 = vmul.f32 %v4141, 0.7978846
    %v4158 = vmul.f32 %v4142, 0.7978846
    %v4159 = vmul.f32 %v4143, 0.7978846
    %v4160 = vtanh.pop %v4144
    %v4161 = vtanh.pop %v4145
    %v4162 = vtanh.pop %v4146
    %v4163 = vtanh.pop %v4147
    %v4164 = vtanh.pop %v4148
    %v4165 = vtanh.pop %v4149
    %v4166 = vtanh.pop %v4150
    %v4167 = vtanh.pop %v4151
    %v4168 = vtanh.pop %v4152
    %v4169 = vtanh.pop %v4153
    %v4170 = vtanh.pop %v4154
    %v4171 = vtanh.pop %v4155
    %v4172 = vtanh.pop %v4156
    %v4173 = vtanh.pop %v4157
    %v4174 = vtanh.pop %v4158
    %v4175 = vtanh.pop %v4159
    %v4176 = vadd.f32 %v4160, 1.0
    %v4177 = vadd.f32 %v4161, 1.0
    %v4178 = vadd.f32 %v4162, 1.0
    %v4179 = vadd.f32 %v4163, 1.0
    %v4180 = vadd.f32 %v4164, 1.0
    %v4181 = vadd.f32 %v4165, 1.0
    %v4182 = vadd.f32 %v4166, 1.0
    %v4183 = vadd.f32 %v4167, 1.0
    %v4184 = vadd.f32 %v4168, 1.0
    %v4185 = vadd.f32 %v4169, 1.0
    %v4186 = vadd.f32 %v4170, 1.0
    %v4187 = vadd.f32 %v4171, 1.0
    %v4188 = vadd.f32 %v4172, 1.0
    %v4189 = vadd.f32 %v4173, 1.0
    %v4190 = vadd.f32 %v4174, 1.0
    %v4191 = vadd.f32 %v4175, 1.0
    %v4192 = vmul.f32 %v4064, %v4176
    %v4193 = vmul.f32 %v4065, %v4177
    %v4194 = vmul.f32 %v4066, %v4178
    %v4195 = vmul.f32 %v4067, %v4179
    %v4196 = vmul.f32 %v4068, %v4180
    %v4197 = vmul.f32 %v4069, %v4181
    %v4198 = vmul.f32 %v4070, %v4182
    %v4199 = vmul.f32 %v4071, %v4183
    %v4200 = vmul.f32 %v4072, %v4184
    %v4201 = vmul.f32 %v4073, %v4185
    %v4202 = vmul.f32 %v4074, %v4186
    %v4203 = vmul.f32 %v4075, %v4187
    %v4204 = vmul.f32 %v4076, %v4188
    %v4205 = vmul.f32 %v4077, %v4189
    %v4206 = vmul.f32 %v4078, %v4190
    %v4207 = vmul.f32 %v4079, %v4191
    %v4208 = vadd.f32 %v3346, %v4192
    %v4209 = vadd.f32 %v3347, %v4193
    %v4210 = vadd.f32 %v3348, %v4194
    %v4211 = vadd.f32 %v3349, %v4195
    %v4212 = vadd.f32 %v3350, %v4196
    %v4213 = vadd.f32 %v3351, %v4197
    %v4214 = vadd.f32 %v3352, %v4198
    %v4215 = vadd.f32 %v3353, %v4199
    %v4216 = vadd.f32 %v3354, %v4200
    %v4217 = vadd.f32 %v3355, %v4201
    %v4218 = vadd.f32 %v3356, %v4202
    %v4219 = vadd.f32 %v3357, %v4203
    %v4220 = vadd.f32 %v3358, %v4204
    %v4221 = vadd.f32 %v3359, %v4205
    %v4222 = vadd.f32 %v3360, %v4206
    %v4223 = vadd.f32 %v3361, %v4207
    %4224 = vst.msk [vmem:[#allocation7] sm:$0xff] %vm104, %v4208
    %4225 = vst.msk [vmem:[#allocation7 + $0x8] sm:$0xff] %vm104, %v4209
    %4226 = vst.msk [vmem:[#allocation7 + $0x10] sm:$0xff] %vm104, %v4210
    %4227 = vst.msk [vmem:[#allocation7 + $0x18] sm:$0xff] %vm104, %v4211
    %4228 = vst.msk [vmem:[#allocation7 + $0x20] sm:$0xff] %vm104, %v4212
    %4229 = vst.msk [vmem:[#allocation7 + $0x28] sm:$0xff] %vm104, %v4213
    %4230 = vst.msk [vmem:[#allocation7 + $0x30] sm:$0xff] %vm104, %v4214
    %4231 = vst.msk [vmem:[#allocation7 + $0x38] sm:$0xff] %vm104, %v4215
    %4232 = vst.msk [vmem:[#allocation7 + $0x40] sm:$0xff] %vm104, %v4216
    %4233 = vst.msk [vmem:[#allocation7 + $0x48] sm:$0xff] %vm104, %v4217
    %4234 = vst.msk [vmem:[#allocation7 + $0x50] sm:$0xff] %vm104, %v4218
    %4235 = vst.msk [vmem:[#allocation7 + $0x58] sm:$0xff] %vm104, %v4219
    %4236 = vst.msk [vmem:[#allocation7 + $0x60] sm:$0xff] %vm104, %v4220
    %4237 = vst.msk [vmem:[#allocation7 + $0x68] sm:$0xff] %vm104, %v4221
    %4238 = vst.msk [vmem:[#allocation7 + $0x70] sm:$0xff] %vm104, %v4222
    %4239 = vst.msk [vmem:[#allocation7 + $0x78] sm:$0xff] %vm104, %v4223
    // Predicated region
    $region58: #{transformer_encoder_sa.1} parent=1 // pred_check
      _
    $region59: #{transformer_encoder_sa.1} parent=1 // pred_check_branch
      %4241 = sbr.rel (0) target = $region61
    $region60: #{transformer_encoder_sa.1} parent=1 // pred_region
      %s4243 = ssub.s32 2048, 2048
      %4244 = vsyncadd [#allocation6], %s4243
      %s4245 = sshll.u32 [#allocation7], 4
      %s4246 = int_to_ptr.vmem [resolvable:$true] %s4245
      %4251 = dma.vmem_to_hbm [thread:$0]  %s4246, 2048, %s13, [#allocation6], 128, 128, 8
    $region61: #{transformer_encoder_sa.1} parent=1 // pred_fallthru
      _
    // Predicated region
    $region62: #{transformer_encoder_sa.1} parent=1 // pred_check
      _
    $region63: #{transformer_encoder_sa.1} parent=1 // pred_check_branch
      %4253 = sbr.rel (0) target = $region65
    $region64: #{transformer_encoder_sa.1} parent=1 // pred_region
      %4254 = dma.done [#allocation6], 2048
    $region65: #{transformer_encoder_sa.1} parent=1 // pred_fallthru
      _
    %4255 = vsyncpa [#allocation5], 1
    %4256 = vsyncpa [#allocation6], 1

</llo_original>
